<compile_context>
chip_gen: v7x
topology: tpu7x:2x2x1
jax: 0.10.0
libtpu: 0.0.40
codegen_flags: <defaults>
</compile_context>

<pallas_src>
import functools

import jax
import jax.numpy as jnp
import numpy as np
from jax import lax
from jax.experimental import pallas as pl
from jax.experimental.pallas import tpu as pltpu


def ggsnn_kernel(adj_ref, ann0_ref, wpack_ref, logits_ref, *,
                 out_feats, num_cls, n_steps, n_etypes, seq_len):
    D = out_feats
    C = num_cls
    E = n_etypes
    N = ann0_ref.shape[0]
    PW = 4 * D + E * D          # prop-matmul output width: [pre_r|pre_z|gi_n|gh_n | msgs]
    TW = D + 1 + C + 1          # tail-matmul output width: [ann_pad | gate | proj | ones]

    # ---- loop-invariant loads (once per call) ----
    adj = adj_ref[...]                                       # (E, N, N)
    w_prop = wpack_ref[0:D, 0:PW]                            # (D, PW)  = [W_gru_h4 | W_msg]
    w_gru_a = wpack_ref[D:2 * D, 0:4 * D]                    # (D, 4D)
    w_tail_h = wpack_ref[2 * D:3 * D, 0:TW]                  # (D, TW)
    w_tail_a = wpack_ref[3 * D:4 * D, 0:TW]                  # (D, TW)  (rows >= A are zero)
    # biases pre-broadcast ONCE (hoisted out of the unrolled loops)
    b_prop = jnp.broadcast_to(wpack_ref[4 * D:4 * D + 1, 0:PW], (N, PW))
    b_tail = jnp.broadcast_to(wpack_ref[4 * D + 1:4 * D + 2, 0:TW], (N, TW))
    b_out = wpack_ref[4 * D + 2:4 * D + 3, 0:C]              # (1, C)

    ann_pad = ann0_ref[...]                                  # (N, D): [annotation | zeros]
    rows = []
    for _ in range(seq_len):                                 # static unroll (L is small)
        h = ann_pad                                          # h1 = cat([annotation, zeros])
        for _ in range(n_steps):                             # static unroll
            # GRU hidden projection + every per-etype message linear in one matmul.
            hp = jnp.dot(h, w_prop, preferred_element_type=jnp.float32) + b_prop
            msgs = hp[:, 4 * D:PW]                           # (N, E*D), message bias folded in
            # typed aggregation: a[v] = sum_t sum_u adj[t, v, u] * msg_t[u]
            a = jnp.dot(adj[0], msgs[:, 0:D], preferred_element_type=jnp.float32)
            for t in range(1, E):                            # E is tiny (static)
                a = a + jnp.dot(adj[t], msgs[:, t * D:(t + 1) * D],
                                preferred_element_type=jnp.float32)
            # fused GRUCell: g = [pre_r | pre_z | gi_n | gh_n]  (exact block structure)
            g = jnp.dot(a, w_gru_a, preferred_element_type=jnp.float32) + hp[:, 0:4 * D]
            rz = jax.nn.sigmoid(g[:, 0:2 * D])               # one EUP dispatch for r and z
            r = rz[:, 0:D]
            z = rz[:, D:2 * D]
            n = jnp.tanh(g[:, 2 * D:3 * D] + r * g[:, 3 * D:4 * D])
            h = (1.0 - z) * n + z * h

        # tail: annotation-out, pooling-gate, output projection and a ones column,
        # K-split over the h-path and the (zero-padded) annotation-path (no concat).
        tail = (jnp.dot(h, w_tail_h, preferred_element_type=jnp.float32)
                + jnp.dot(ann_pad, w_tail_a, preferred_element_type=jnp.float32)
                + b_tail)                                     # (N, TW)

        # Next annotation carry: softmax over D columns; the D-A padding columns carry a
        # -1e30 bias, so they exp to 0 and the carry stays zero-padded for the next h1.
        al = tail[:, 0:D]
        al = al - jnp.max(al, axis=-1, keepdims=True)
        ea = jnp.exp(al)
        ann_pad = ea / jnp.sum(ea, axis=-1, keepdims=True)    # (N, D)

        # GlobalAttentionPooling + output layer.  The trailing ones column of `tail` makes
        # the same MXU contraction also produce sum(exp(gate)) (the softmax normaliser).
        gate = tail[:, D:D + 1]                               # (N, 1)
        eg = jnp.exp(gate - jnp.max(gate, axis=0, keepdims=True))
        pooled = lax.dot_general(eg, tail, (((0,), (0,)), ((), ())),
                                 preferred_element_type=jnp.float32)   # (1, TW)
        denom = pooled[:, D + 1 + C:D + 2 + C]                # (1, 1) = sum(exp(gate))
        rows.append(pooled[:, D + 1:D + 1 + C] / denom + b_out)        # (1, C)

    # single contiguous writeback of all L logit rows
    logits_ref[...] = jnp.concatenate(rows, axis=0)


def ggsnn_forward(adj, annotation, params, *, out_feats, n_steps, max_seq_length, num_cls):
    """Returns (all_logits (1, L, C), preds (1, L)) for a single (batch=1) graph."""
    N, A = annotation.shape
    E = adj.shape[0]
    D = out_feats
    C = num_cls
    assert D >= A, "GGNN requires out_feats >= annotation_size"
    PW = 4 * D + E * D
    TW = D + 1 + C + 1
    PACK_W = max(PW, TW)
    f32 = jnp.float32

    # ---- host-side fusion / zero-padding of Linear weights (PyTorch stores (out, in)) ----
    # per-edge-type message linears -> (D, E*D), block t = w_msg[t].T
    w_msg_cat = jnp.transpose(params["w_msg"], (2, 0, 1)).reshape(D, E * D)
    b_msg_cat = params["b_msg"].reshape(1, E * D)

    # GRU: g = a @ Wa4 + h @ Wh4 + b  ->  [pre_r | pre_z | gi_n | gh_n]  (exact)
    wih_t = params["w_ih"].T                                  # (D, 3D) cols [r | z | n]
    whh_t = params["w_hh"].T
    zDD = jnp.zeros((D, D), f32)
    w_gru_h4 = jnp.concatenate([whh_t[:, 0:2 * D], zDD, whh_t[:, 2 * D:3 * D]], axis=1)
    w_gru_a4 = jnp.concatenate([wih_t[:, 0:3 * D], zDD], axis=1)
    b_gru = jnp.concatenate([params["b_ih"][:, 0:2 * D] + params["b_hh"][:, 0:2 * D],
                             params["b_ih"][:, 2 * D:3 * D],
                             params["b_hh"][:, 2 * D:3 * D]], axis=1)   # (1, 4D)

    w_prop = jnp.concatenate([w_gru_h4, w_msg_cat], axis=1)   # (D, PW)
    b_prop = jnp.concatenate([b_gru, b_msg_cat], axis=1)      # (1, PW)

    # tail columns: [ annotation logits (D, padded) | gate (1) | output proj (C) | ones (1) ]
    w_ann, b_ann = params["w_ann"], params["b_ann"]           # (A, D+A), (1, A)
    w_gate, b_gate = params["w_gate"], params["b_gate"]       # (1, D+A), (1, 1)
    w_out, b_out = params["w_out"], params["b_out"]           # (C, D+A), (1, C)

    w_tail_h = jnp.zeros((D, TW), f32)
    w_tail_h = w_tail_h.at[:, 0:A].set(w_ann[:, 0:D].T)
    w_tail_h = w_tail_h.at[:, D:D + 1].set(w_gate[:, 0:D].T)
    w_tail_h = w_tail_h.at[:, D + 1:D + 1 + C].set(w_out[:, 0:D].T)

    w_tail_a = jnp.zeros((D, TW), f32)                        # rows >= A stay zero
    w_tail_a = w_tail_a.at[0:A, 0:A].set(w_ann[:, D:D + A].T)
    w_tail_a = w_tail_a.at[0:A, D:D + 1].set(w_gate[:, D:D + A].T)
    w_tail_a = w_tail_a.at[0:A, D + 1:D + 1 + C].set(w_out[:, D:D + A].T)

    b_tail = jnp.zeros((1, TW), f32)
    b_tail = b_tail.at[:, 0:A].set(b_ann)
    b_tail = b_tail.at[:, A:D].set(-1e30)                     # padding cols -> exp == 0
    b_tail = b_tail.at[:, D:D + 1].set(b_gate)
    b_tail = b_tail.at[:, D + 1 + C:TW].set(1.0)              # ones column (pool normaliser)

    def _pad_cols(x):
        x = x.astype(f32)
        return jnp.pad(x, ((0, 0), (0, PACK_W - x.shape[1])))

    # one packed weight/bias buffer -> one DMA
    wpack = jnp.concatenate([
        _pad_cols(w_prop),                    # rows [0, D)
        _pad_cols(w_gru_a4),                  # rows [D, 2D)
        _pad_cols(w_tail_h),                  # rows [2D, 3D)
        _pad_cols(w_tail_a),                  # rows [3D, 4D)
        _pad_cols(b_prop),                    # row 4D
        _pad_cols(b_tail),                    # row 4D+1
        _pad_cols(b_out),                     # row 4D+2
        jnp.zeros((5, PACK_W), f32),          # pad to 4D+8 rows
    ], axis=0)

    # annotation pre-padded to (N, D): the in-kernel carry shape (h1 = this directly)
    ann0_pad = jnp.concatenate([annotation.astype(f32),
                                jnp.zeros((N, D - A), f32)], axis=1)

    kernel = functools.partial(
        ggsnn_kernel,
        out_feats=D, num_cls=C, n_steps=n_steps, n_etypes=E, seq_len=max_seq_length)

    vmem = pl.BlockSpec(memory_space=pltpu.MemorySpace.VMEM)
    all_logits = pl.pallas_call(
        kernel,
        out_shape=jax.ShapeDtypeStruct((max_seq_length, C), f32),
        in_specs=[vmem, vmem, vmem],
        out_specs=vmem,
    )(adj.astype(f32), ann0_pad, wpack)

    all_logits = all_logits[None]                             # (1, L, C)
    preds = jnp.argmax(all_logits, axis=-1)                   # (1, L)
    return all_logits, preds


def ggsnn_reference(adj, annotation, params, *, out_feats, n_steps, max_seq_length, num_cls):
    """Plain-JAX reference mirroring the PyTorch forward (batch of one graph)."""
    D = out_feats
    N, A = annotation.shape
    E = adj.shape[0]
    ann = annotation
    logits_list = []
    for _ in range(max_seq_length):
        h = jnp.concatenate([ann, jnp.zeros((N, D - A), jnp.float32)], -1)
        for _ in range(n_steps):
            a = jnp.zeros((N, D), jnp.float32)
            for t in range(E):
                m = h @ params["w_msg"][t].T + params["b_msg"][t]
                a = a + adj[t] @ m
            gi = a @ params["w_ih"].T + params["b_ih"]
            gh = h @ params["w_hh"].T + params["b_hh"]
            r = jax.nn.sigmoid(gi[:, :D] + gh[:, :D])
            z = jax.nn.sigmoid(gi[:, D:2 * D] + gh[:, D:2 * D])
            n = jnp.tanh(gi[:, 2 * D:] + r * gh[:, 2 * D:])
            h = (1.0 - z) * n + z * h
        out = jnp.concatenate([h, ann], -1)
        gate = jax.nn.softmax(out @ params["w_gate"].T + params["b_gate"], axis=0)
        readout = jnp.sum(out * gate, axis=0, keepdims=True)
        logits_list.append(readout @ params["w_out"].T + params["b_out"])
        ann = jax.nn.softmax(out @ params["w_ann"].T + params["b_ann"], axis=-1)
    all_logits = jnp.stack(logits_list, 1)                    # (1, L, C)
    return all_logits, jnp.argmax(all_logits, -1)


if __name__ == "__main__":
    # Small, forward-consistent sizes.
    N = 16            # nodes in the (single) graph
    A = 8             # annotation_size
    D = 32            # out_feats (>= annotation_size, as GGNN requires)
    N_STEPS = 2       # ggnn propagation steps
    E = 2             # n_etypes
    L = 4             # max_seq_length
    C = 8             # num_cls

    key = jax.random.PRNGKey(0)
    keys = jax.random.split(key, 14)

    # Dense graph: adjacency per edge type, adj[t, dst, src] in {0, 1}.
    adj = (jax.random.uniform(keys[0], (E, N, N)) < 0.25).astype(jnp.float32)
    # Binary node annotations, as in bAbI-style GGNN tasks.
    annotation = (jax.random.uniform(keys[1], (N, A)) < 0.5).astype(jnp.float32)
    # seq_lengths / ground_truth only feed the (unported) loss branch; ground_truth=None path.

    s = 0.1
    params = {
        # GatedGraphConv: one Linear(D, D) per edge type
        "w_msg": s * jax.random.normal(keys[2], (E, D, D), jnp.float32),
        "b_msg": s * jax.random.normal(keys[3], (E, D), jnp.float32),
        # nn.GRUCell(D, D): weight_ih/hh (3D, D), bias_ih/hh stored as (1, 3D)
        "w_ih": s * jax.random.normal(keys[4], (3 * D, D), jnp.float32),
        "b_ih": s * jax.random.normal(keys[5], (1, 3 * D), jnp.float32),
        "w_hh": s * jax.random.normal(keys[6], (3 * D, D), jnp.float32),
        "b_hh": s * jax.random.normal(keys[7], (1, 3 * D), jnp.float32),
        # annotation_out_layer: Linear(D + A, A)
        "w_ann": s * jax.random.normal(keys[8], (A, D + A), jnp.float32),
        "b_ann": s * jax.random.normal(keys[9], (1, A), jnp.float32),
        # pooling gate: Linear(D + A, 1)
        "w_gate": s * jax.random.normal(keys[10], (1, D + A), jnp.float32),
        "b_gate": s * jax.random.normal(keys[11], (1, 1), jnp.float32),
        # output_layer: Linear(D + A, C)
        "w_out": s * jax.random.normal(keys[12], (C, D + A), jnp.float32),
        "b_out": s * jax.random.normal(keys[13], (1, C), jnp.float32),
    }

    logits, preds = ggsnn_forward(
        adj, annotation, params,
        out_feats=D, n_steps=N_STEPS, max_seq_length=L, num_cls=C)
    logits = jax.block_until_ready(logits)
    preds = jax.block_until_ready(preds)

    ref_logits, ref_preds = ggsnn_reference(
        adj, annotation, params,
        out_feats=D, n_steps=N_STEPS, max_seq_length=L, num_cls=C)

    np.testing.assert_allclose(np.asarray(logits), np.asarray(ref_logits),
                               rtol=1e-3, atol=1e-4)
    assert preds.shape == (1, L)

    print("KERNEL_OK")
</pallas_src>

<mosaic_0001>
module attributes {stable_mosaic.version = 11 : i64} {
  func.func @ggsnn_kernel(%arg0: memref<2x16x16xf32, #tpu.memory_space<vmem>>, %arg1: memref<16x32xf32, #tpu.memory_space<vmem>>, %arg2: memref<136x192xf32, #tpu.memory_space<vmem>>, %arg3: memref<4x8xf32, #tpu.memory_space<vmem>>) attributes {dimension_semantics = [], scalar_prefetch = 0 : i64, scratch_operands = 0 : i64, tpu.core_type = #tpu.core_type<tc>} {
    %c0 = arith.constant 0 : index
    %c0_0 = arith.constant 0 : index
    %c0_1 = arith.constant 0 : index
    %0 = vector.load %arg0[%c0, %c0_0, %c0_1] : memref<2x16x16xf32, #tpu.memory_space<vmem>>, vector<2x16x16xf32>
    %c0_2 = arith.constant 0 : index
    %c0_3 = arith.constant 0 : index
    %1 = vector.load %arg2[%c0_2, %c0_3] : memref<136x192xf32, #tpu.memory_space<vmem>>, vector<32x192xf32>
    %c32 = arith.constant 32 : index
    %c0_4 = arith.constant 0 : index
    %2 = vector.load %arg2[%c32, %c0_4] : memref<136x192xf32, #tpu.memory_space<vmem>>, vector<32x128xf32>
    %c64 = arith.constant 64 : index
    %c0_5 = arith.constant 0 : index
    %3 = vector.load %arg2[%c64, %c0_5] : memref<136x192xf32, #tpu.memory_space<vmem>>, vector<32x42xf32>
    %c96 = arith.constant 96 : index
    %c0_6 = arith.constant 0 : index
    %4 = vector.load %arg2[%c96, %c0_6] : memref<136x192xf32, #tpu.memory_space<vmem>>, vector<32x42xf32>
    %c128 = arith.constant 128 : index
    %c0_7 = arith.constant 0 : index
    %5 = vector.load %arg2[%c128, %c0_7] : memref<136x192xf32, #tpu.memory_space<vmem>>, vector<1x192xf32>
    %6 = vector.shape_cast %5 : vector<1x192xf32> to vector<1x192xf32>
    %7 = vector.broadcast %6 : vector<1x192xf32> to vector<16x192xf32>
    %c129 = arith.constant 129 : index
    %c0_8 = arith.constant 0 : index
    %8 = vector.load %arg2[%c129, %c0_8] : memref<136x192xf32, #tpu.memory_space<vmem>>, vector<1x42xf32>
    %9 = vector.shape_cast %8 : vector<1x42xf32> to vector<1x42xf32>
    %10 = vector.broadcast %9 : vector<1x42xf32> to vector<16x42xf32>
    %c130 = arith.constant 130 : index
    %c0_9 = arith.constant 0 : index
    %11 = vector.load %arg2[%c130, %c0_9] : memref<136x192xf32, #tpu.memory_space<vmem>>, vector<1x8xf32>
    %c0_10 = arith.constant 0 : index
    %c0_11 = arith.constant 0 : index
    %12 = vector.load %arg1[%c0_10, %c0_11] : memref<16x32xf32, #tpu.memory_space<vmem>>, vector<16x32xf32>
    %cst = arith.constant dense<0.000000e+00> : vector<16x192xf32>
    %13 = tpu.matmul %12, %1, %cst {dimension_numbers = #tpu.dot_dimension_numbers<[1], [0], [0], [1], [0, 0, 1, 1], [], []>} : vector<16x32xf32>, vector<32x192xf32>, vector<16x192xf32> -> vector<16x192xf32>
    %14 = arith.addf %13, %7 : vector<16x192xf32>
    %15 = vector.extract_strided_slice %14 {offsets = [0, 128], sizes = [16, 64], strides = [1, 1]} : vector<16x192xf32> to vector<16x64xf32>
    %16 = vector.extract_strided_slice %0 {offsets = [0, 0, 0], sizes = [1, 16, 16], strides = [1, 1, 1]} : vector<2x16x16xf32> to vector<1x16x16xf32>
    %17 = vector.shape_cast %16 : vector<1x16x16xf32> to vector<16x16xf32>
    %18 = vector.extract_strided_slice %15 {offsets = [0, 0], sizes = [16, 32], strides = [1, 1]} : vector<16x64xf32> to vector<16x32xf32>
    %cst_12 = arith.constant dense<0.000000e+00> : vector<16x32xf32>
    %19 = tpu.matmul %17, %18, %cst_12 {dimension_numbers = #tpu.dot_dimension_numbers<[1], [0], [0], [1], [0, 0, 1, 1], [], []>} : vector<16x16xf32>, vector<16x32xf32>, vector<16x32xf32> -> vector<16x32xf32>
    %20 = vector.extract_strided_slice %0 {offsets = [1, 0, 0], sizes = [1, 16, 16], strides = [1, 1, 1]} : vector<2x16x16xf32> to vector<1x16x16xf32>
    %21 = vector.shape_cast %20 : vector<1x16x16xf32> to vector<16x16xf32>
    %22 = vector.extract_strided_slice %15 {offsets = [0, 32], sizes = [16, 32], strides = [1, 1]} : vector<16x64xf32> to vector<16x32xf32>
    %cst_13 = arith.constant dense<0.000000e+00> : vector<16x32xf32>
    %23 = tpu.matmul %21, %22, %cst_13 {dimension_numbers = #tpu.dot_dimension_numbers<[1], [0], [0], [1], [0, 0, 1, 1], [], []>} : vector<16x16xf32>, vector<16x32xf32>, vector<16x32xf32> -> vector<16x32xf32>
    %24 = arith.addf %19, %23 : vector<16x32xf32>
    %cst_14 = arith.constant dense<0.000000e+00> : vector<16x128xf32>
    %25 = tpu.matmul %24, %2, %cst_14 {dimension_numbers = #tpu.dot_dimension_numbers<[1], [0], [0], [1], [0, 0, 1, 1], [], []>} : vector<16x32xf32>, vector<32x128xf32>, vector<16x128xf32> -> vector<16x128xf32>
    %26 = vector.extract_strided_slice %14 {offsets = [0, 0], sizes = [16, 128], strides = [1, 1]} : vector<16x192xf32> to vector<16x128xf32>
    %27 = arith.addf %25, %26 : vector<16x128xf32>
    %28 = vector.extract_strided_slice %27 {offsets = [0, 0], sizes = [16, 64], strides = [1, 1]} : vector<16x128xf32> to vector<16x64xf32>
    %29 = arith.negf %28 : vector<16x64xf32>
    %30 = math.exp %29 : vector<16x64xf32>
    %cst_15 = arith.constant 1.000000e+00 : f32
    %31 = vector.broadcast %cst_15 : f32 to vector<16x64xf32>
    %32 = arith.addf %31, %30 : vector<16x64xf32>
    %33 = arith.divf %31, %32 : vector<16x64xf32>
    %34 = vector.extract_strided_slice %33 {offsets = [0, 0], sizes = [16, 32], strides = [1, 1]} : vector<16x64xf32> to vector<16x32xf32>
    %35 = vector.extract_strided_slice %33 {offsets = [0, 32], sizes = [16, 32], strides = [1, 1]} : vector<16x64xf32> to vector<16x32xf32>
    %36 = vector.extract_strided_slice %27 {offsets = [0, 64], sizes = [16, 32], strides = [1, 1]} : vector<16x128xf32> to vector<16x32xf32>
    %37 = vector.extract_strided_slice %27 {offsets = [0, 96], sizes = [16, 32], strides = [1, 1]} : vector<16x128xf32> to vector<16x32xf32>
    %38 = arith.mulf %34, %37 : vector<16x32xf32>
    %39 = arith.addf %36, %38 : vector<16x32xf32>
    %40 = math.tanh %39 : vector<16x32xf32>
    %cst_16 = arith.constant 1.000000e+00 : f32
    %41 = vector.broadcast %cst_16 : f32 to vector<16x32xf32>
    %42 = arith.subf %41, %35 : vector<16x32xf32>
    %43 = arith.mulf %42, %40 : vector<16x32xf32>
    %44 = arith.mulf %35, %12 : vector<16x32xf32>
    %45 = arith.addf %43, %44 : vector<16x32xf32>
    %cst_17 = arith.constant dense<0.000000e+00> : vector<16x192xf32>
    %46 = tpu.matmul %45, %1, %cst_17 {dimension_numbers = #tpu.dot_dimension_numbers<[1], [0], [0], [1], [0, 0, 1, 1], [], []>} : vector<16x32xf32>, vector<32x192xf32>, vector<16x192xf32> -> vector<16x192xf32>
    %47 = arith.addf %46, %7 : vector<16x192xf32>
    %48 = vector.extract_strided_slice %47 {offsets = [0, 128], sizes = [16, 64], strides = [1, 1]} : vector<16x192xf32> to vector<16x64xf32>
    %49 = vector.extract_strided_slice %0 {offsets = [0, 0, 0], sizes = [1, 16, 16], strides = [1, 1, 1]} : vector<2x16x16xf32> to vector<1x16x16xf32>
    %50 = vector.shape_cast %49 : vector<1x16x16xf32> to vector<16x16xf32>
    %51 = vector.extract_strided_slice %48 {offsets = [0, 0], sizes = [16, 32], strides = [1, 1]} : vector<16x64xf32> to vector<16x32xf32>
    %cst_18 = arith.constant dense<0.000000e+00> : vector<16x32xf32>
    %52 = tpu.matmul %50, %51, %cst_18 {dimension_numbers = #tpu.dot_dimension_numbers<[1], [0], [0], [1], [0, 0, 1, 1], [], []>} : vector<16x16xf32>, vector<16x32xf32>, vector<16x32xf32> -> vector<16x32xf32>
    %53 = vector.extract_strided_slice %0 {offsets = [1, 0, 0], sizes = [1, 16, 16], strides = [1, 1, 1]} : vector<2x16x16xf32> to vector<1x16x16xf32>
    %54 = vector.shape_cast %53 : vector<1x16x16xf32> to vector<16x16xf32>
    %55 = vector.extract_strided_slice %48 {offsets = [0, 32], sizes = [16, 32], strides = [1, 1]} : vector<16x64xf32> to vector<16x32xf32>
    %cst_19 = arith.constant dense<0.000000e+00> : vector<16x32xf32>
    %56 = tpu.matmul %54, %55, %cst_19 {dimension_numbers = #tpu.dot_dimension_numbers<[1], [0], [0], [1], [0, 0, 1, 1], [], []>} : vector<16x16xf32>, vector<16x32xf32>, vector<16x32xf32> -> vector<16x32xf32>
    %57 = arith.addf %52, %56 : vector<16x32xf32>
    %cst_20 = arith.constant dense<0.000000e+00> : vector<16x128xf32>
    %58 = tpu.matmul %57, %2, %cst_20 {dimension_numbers = #tpu.dot_dimension_numbers<[1], [0], [0], [1], [0, 0, 1, 1], [], []>} : vector<16x32xf32>, vector<32x128xf32>, vector<16x128xf32> -> vector<16x128xf32>
    %59 = vector.extract_strided_slice %47 {offsets = [0, 0], sizes = [16, 128], strides = [1, 1]} : vector<16x192xf32> to vector<16x128xf32>
    %60 = arith.addf %58, %59 : vector<16x128xf32>
    %61 = vector.extract_strided_slice %60 {offsets = [0, 0], sizes = [16, 64], strides = [1, 1]} : vector<16x128xf32> to vector<16x64xf32>
    %62 = arith.negf %61 : vector<16x64xf32>
    %63 = math.exp %62 : vector<16x64xf32>
    %cst_21 = arith.constant 1.000000e+00 : f32
    %64 = vector.broadcast %cst_21 : f32 to vector<16x64xf32>
    %65 = arith.addf %64, %63 : vector<16x64xf32>
    %66 = arith.divf %64, %65 : vector<16x64xf32>
    %67 = vector.extract_strided_slice %66 {offsets = [0, 0], sizes = [16, 32], strides = [1, 1]} : vector<16x64xf32> to vector<16x32xf32>
    %68 = vector.extract_strided_slice %66 {offsets = [0, 32], sizes = [16, 32], strides = [1, 1]} : vector<16x64xf32> to vector<16x32xf32>
    %69 = vector.extract_strided_slice %60 {offsets = [0, 64], sizes = [16, 32], strides = [1, 1]} : vector<16x128xf32> to vector<16x32xf32>
    %70 = vector.extract_strided_slice %60 {offsets = [0, 96], sizes = [16, 32], strides = [1, 1]} : vector<16x128xf32> to vector<16x32xf32>
    %71 = arith.mulf %67, %70 : vector<16x32xf32>
    %72 = arith.addf %69, %71 : vector<16x32xf32>
    %73 = math.tanh %72 : vector<16x32xf32>
    %cst_22 = arith.constant 1.000000e+00 : f32
    %74 = vector.broadcast %cst_22 : f32 to vector<16x32xf32>
    %75 = arith.subf %74, %68 : vector<16x32xf32>
    %76 = arith.mulf %75, %73 : vector<16x32xf32>
    %77 = arith.mulf %68, %45 : vector<16x32xf32>
    %78 = arith.addf %76, %77 : vector<16x32xf32>
    %cst_23 = arith.constant dense<0.000000e+00> : vector<16x42xf32>
    %79 = tpu.matmul %78, %3, %cst_23 {dimension_numbers = #tpu.dot_dimension_numbers<[1], [0], [0], [1], [0, 0, 1, 1], [], []>} : vector<16x32xf32>, vector<32x42xf32>, vector<16x42xf32> -> vector<16x42xf32>
    %cst_24 = arith.constant dense<0.000000e+00> : vector<16x42xf32>
    %80 = tpu.matmul %12, %4, %cst_24 {dimension_numbers = #tpu.dot_dimension_numbers<[1], [0], [0], [1], [0, 0, 1, 1], [], []>} : vector<16x32xf32>, vector<32x42xf32>, vector<16x42xf32> -> vector<16x42xf32>
    %81 = arith.addf %79, %80 : vector<16x42xf32>
    %82 = arith.addf %81, %10 : vector<16x42xf32>
    %83 = vector.extract_strided_slice %82 {offsets = [0, 0], sizes = [16, 32], strides = [1, 1]} : vector<16x42xf32> to vector<16x32xf32>
    %cst_25 = arith.constant dense<0xFF800000> : vector<16xf32>
    %84 = vector.multi_reduction <maximumf>, %83, %cst_25 [1] : vector<16x32xf32> to vector<16xf32>
    %85 = vector.shape_cast %84 : vector<16xf32> to vector<16x1xf32>
    %86 = vector.broadcast %85 : vector<16x1xf32> to vector<16x32xf32>
    %87 = arith.subf %83, %86 : vector<16x32xf32>
    %88 = math.exp %87 : vector<16x32xf32>
    %cst_26 = arith.constant dense<0.000000e+00> : vector<16xf32>
    %89 = vector.multi_reduction <add>, %88, %cst_26 [1] : vector<16x32xf32> to vector<16xf32>
    %90 = vector.shape_cast %89 : vector<16xf32> to vector<16x1xf32>
    %91 = vector.broadcast %90 : vector<16x1xf32> to vector<16x32xf32>
    %92 = arith.divf %88, %91 : vector<16x32xf32>
    %93 = vector.extract_strided_slice %82 {offsets = [0, 32], sizes = [16, 1], strides = [1, 1]} : vector<16x42xf32> to vector<16x1xf32>
    %cst_27 = arith.constant dense<0xFF800000> : vector<1xf32>
    %94 = vector.multi_reduction <maximumf>, %93, %cst_27 [0] : vector<16x1xf32> to vector<1xf32>
    %95 = vector.shape_cast %94 : vector<1xf32> to vector<1x1xf32>
    %96 = vector.broadcast %95 : vector<1x1xf32> to vector<16x1xf32>
    %97 = arith.subf %93, %96 : vector<16x1xf32>
    %98 = math.exp %97 : vector<16x1xf32>
    %cst_28 = arith.constant dense<0.000000e+00> : vector<1x42xf32>
    %99 = tpu.matmul %98, %82, %cst_28 {dimension_numbers = #tpu.dot_dimension_numbers<[0], [0], [1], [1], [0, 1, 1, 1], [], []>} : vector<16x1xf32>, vector<16x42xf32>, vector<1x42xf32> -> vector<1x42xf32>
    %100 = vector.extract_strided_slice %99 {offsets = [0, 41], sizes = [1, 1], strides = [1, 1]} : vector<1x42xf32> to vector<1x1xf32>
    %101 = vector.extract_strided_slice %99 {offsets = [0, 33], sizes = [1, 8], strides = [1, 1]} : vector<1x42xf32> to vector<1x8xf32>
    %102 = vector.broadcast %100 : vector<1x1xf32> to vector<1x8xf32>
    %103 = arith.divf %101, %102 : vector<1x8xf32>
    %104 = arith.addf %103, %11 : vector<1x8xf32>
    %cst_29 = arith.constant dense<0.000000e+00> : vector<16x192xf32>
    %105 = tpu.matmul %92, %1, %cst_29 {dimension_numbers = #tpu.dot_dimension_numbers<[1], [0], [0], [1], [0, 0, 1, 1], [], []>} : vector<16x32xf32>, vector<32x192xf32>, vector<16x192xf32> -> vector<16x192xf32>
    %106 = arith.addf %105, %7 : vector<16x192xf32>
    %107 = vector.extract_strided_slice %106 {offsets = [0, 128], sizes = [16, 64], strides = [1, 1]} : vector<16x192xf32> to vector<16x64xf32>
    %108 = vector.extract_strided_slice %0 {offsets = [0, 0, 0], sizes = [1, 16, 16], strides = [1, 1, 1]} : vector<2x16x16xf32> to vector<1x16x16xf32>
    %109 = vector.shape_cast %108 : vector<1x16x16xf32> to vector<16x16xf32>
    %110 = vector.extract_strided_slice %107 {offsets = [0, 0], sizes = [16, 32], strides = [1, 1]} : vector<16x64xf32> to vector<16x32xf32>
    %cst_30 = arith.constant dense<0.000000e+00> : vector<16x32xf32>
    %111 = tpu.matmul %109, %110, %cst_30 {dimension_numbers = #tpu.dot_dimension_numbers<[1], [0], [0], [1], [0, 0, 1, 1], [], []>} : vector<16x16xf32>, vector<16x32xf32>, vector<16x32xf32> -> vector<16x32xf32>
    %112 = vector.extract_strided_slice %0 {offsets = [1, 0, 0], sizes = [1, 16, 16], strides = [1, 1, 1]} : vector<2x16x16xf32> to vector<1x16x16xf32>
    %113 = vector.shape_cast %112 : vector<1x16x16xf32> to vector<16x16xf32>
    %114 = vector.extract_strided_slice %107 {offsets = [0, 32], sizes = [16, 32], strides = [1, 1]} : vector<16x64xf32> to vector<16x32xf32>
    %cst_31 = arith.constant dense<0.000000e+00> : vector<16x32xf32>
    %115 = tpu.matmul %113, %114, %cst_31 {dimension_numbers = #tpu.dot_dimension_numbers<[1], [0], [0], [1], [0, 0, 1, 1], [], []>} : vector<16x16xf32>, vector<16x32xf32>, vector<16x32xf32> -> vector<16x32xf32>
    %116 = arith.addf %111, %115 : vector<16x32xf32>
    %cst_32 = arith.constant dense<0.000000e+00> : vector<16x128xf32>
    %117 = tpu.matmul %116, %2, %cst_32 {dimension_numbers = #tpu.dot_dimension_numbers<[1], [0], [0], [1], [0, 0, 1, 1], [], []>} : vector<16x32xf32>, vector<32x128xf32>, vector<16x128xf32> -> vector<16x128xf32>
    %118 = vector.extract_strided_slice %106 {offsets = [0, 0], sizes = [16, 128], strides = [1, 1]} : vector<16x192xf32> to vector<16x128xf32>
    %119 = arith.addf %117, %118 : vector<16x128xf32>
    %120 = vector.extract_strided_slice %119 {offsets = [0, 0], sizes = [16, 64], strides = [1, 1]} : vector<16x128xf32> to vector<16x64xf32>
    %121 = arith.negf %120 : vector<16x64xf32>
    %122 = math.exp %121 : vector<16x64xf32>
    %cst_33 = arith.constant 1.000000e+00 : f32
    %123 = vector.broadcast %cst_33 : f32 to vector<16x64xf32>
    %124 = arith.addf %123, %122 : vector<16x64xf32>
    %125 = arith.divf %123, %124 : vector<16x64xf32>
    %126 = vector.extract_strided_slice %125 {offsets = [0, 0], sizes = [16, 32], strides = [1, 1]} : vector<16x64xf32> to vector<16x32xf32>
    %127 = vector.extract_strided_slice %125 {offsets = [0, 32], sizes = [16, 32], strides = [1, 1]} : vector<16x64xf32> to vector<16x32xf32>
    %128 = vector.extract_strided_slice %119 {offsets = [0, 64], sizes = [16, 32], strides = [1, 1]} : vector<16x128xf32> to vector<16x32xf32>
    %129 = vector.extract_strided_slice %119 {offsets = [0, 96], sizes = [16, 32], strides = [1, 1]} : vector<16x128xf32> to vector<16x32xf32>
    %130 = arith.mulf %126, %129 : vector<16x32xf32>
    %131 = arith.addf %128, %130 : vector<16x32xf32>
    %132 = math.tanh %131 : vector<16x32xf32>
    %cst_34 = arith.constant 1.000000e+00 : f32
    %133 = vector.broadcast %cst_34 : f32 to vector<16x32xf32>
    %134 = arith.subf %133, %127 : vector<16x32xf32>
    %135 = arith.mulf %134, %132 : vector<16x32xf32>
    %136 = arith.mulf %127, %92 : vector<16x32xf32>
    %137 = arith.addf %135, %136 : vector<16x32xf32>
    %cst_35 = arith.constant dense<0.000000e+00> : vector<16x192xf32>
    %138 = tpu.matmul %137, %1, %cst_35 {dimension_numbers = #tpu.dot_dimension_numbers<[1], [0], [0], [1], [0, 0, 1, 1], [], []>} : vector<16x32xf32>, vector<32x192xf32>, vector<16x192xf32> -> vector<16x192xf32>
    %139 = arith.addf %138, %7 : vector<16x192xf32>
    %140 = vector.extract_strided_slice %139 {offsets = [0, 128], sizes = [16, 64], strides = [1, 1]} : vector<16x192xf32> to vector<16x64xf32>
    %141 = vector.extract_strided_slice %0 {offsets = [0, 0, 0], sizes = [1, 16, 16], strides = [1, 1, 1]} : vector<2x16x16xf32> to vector<1x16x16xf32>
    %142 = vector.shape_cast %141 : vector<1x16x16xf32> to vector<16x16xf32>
    %143 = vector.extract_strided_slice %140 {offsets = [0, 0], sizes = [16, 32], strides = [1, 1]} : vector<16x64xf32> to vector<16x32xf32>
    %cst_36 = arith.constant dense<0.000000e+00> : vector<16x32xf32>
    %144 = tpu.matmul %142, %143, %cst_36 {dimension_numbers = #tpu.dot_dimension_numbers<[1], [0], [0], [1], [0, 0, 1, 1], [], []>} : vector<16x16xf32>, vector<16x32xf32>, vector<16x32xf32> -> vector<16x32xf32>
    %145 = vector.extract_strided_slice %0 {offsets = [1, 0, 0], sizes = [1, 16, 16], strides = [1, 1, 1]} : vector<2x16x16xf32> to vector<1x16x16xf32>
    %146 = vector.shape_cast %145 : vector<1x16x16xf32> to vector<16x16xf32>
    %147 = vector.extract_strided_slice %140 {offsets = [0, 32], sizes = [16, 32], strides = [1, 1]} : vector<16x64xf32> to vector<16x32xf32>
    %cst_37 = arith.constant dense<0.000000e+00> : vector<16x32xf32>
    %148 = tpu.matmul %146, %147, %cst_37 {dimension_numbers = #tpu.dot_dimension_numbers<[1], [0], [0], [1], [0, 0, 1, 1], [], []>} : vector<16x16xf32>, vector<16x32xf32>, vector<16x32xf32> -> vector<16x32xf32>
    %149 = arith.addf %144, %148 : vector<16x32xf32>
    %cst_38 = arith.constant dense<0.000000e+00> : vector<16x128xf32>
    %150 = tpu.matmul %149, %2, %cst_38 {dimension_numbers = #tpu.dot_dimension_numbers<[1], [0], [0], [1], [0, 0, 1, 1], [], []>} : vector<16x32xf32>, vector<32x128xf32>, vector<16x128xf32> -> vector<16x128xf32>
    %151 = vector.extract_strided_slice %139 {offsets = [0, 0], sizes = [16, 128], strides = [1, 1]} : vector<16x192xf32> to vector<16x128xf32>
    %152 = arith.addf %150, %151 : vector<16x128xf32>
    %153 = vector.extract_strided_slice %152 {offsets = [0, 0], sizes = [16, 64], strides = [1, 1]} : vector<16x128xf32> to vector<16x64xf32>
    %154 = arith.negf %153 : vector<16x64xf32>
    %155 = math.exp %154 : vector<16x64xf32>
    %cst_39 = arith.constant 1.000000e+00 : f32
    %156 = vector.broadcast %cst_39 : f32 to vector<16x64xf32>
    %157 = arith.addf %156, %155 : vector<16x64xf32>
    %158 = arith.divf %156, %157 : vector<16x64xf32>
    %159 = vector.extract_strided_slice %158 {offsets = [0, 0], sizes = [16, 32], strides = [1, 1]} : vector<16x64xf32> to vector<16x32xf32>
    %160 = vector.extract_strided_slice %158 {offsets = [0, 32], sizes = [16, 32], strides = [1, 1]} : vector<16x64xf32> to vector<16x32xf32>
    %161 = vector.extract_strided_slice %152 {offsets = [0, 64], sizes = [16, 32], strides = [1, 1]} : vector<16x128xf32> to vector<16x32xf32>
    %162 = vector.extract_strided_slice %152 {offsets = [0, 96], sizes = [16, 32], strides = [1, 1]} : vector<16x128xf32> to vector<16x32xf32>
    %163 = arith.mulf %159, %162 : vector<16x32xf32>
    %164 = arith.addf %161, %163 : vector<16x32xf32>
    %165 = math.tanh %164 : vector<16x32xf32>
    %cst_40 = arith.constant 1.000000e+00 : f32
    %166 = vector.broadcast %cst_40 : f32 to vector<16x32xf32>
    %167 = arith.subf %166, %160 : vector<16x32xf32>
    %168 = arith.mulf %167, %165 : vector<16x32xf32>
    %169 = arith.mulf %160, %137 : vector<16x32xf32>
    %170 = arith.addf %168, %169 : vector<16x32xf32>
    %cst_41 = arith.constant dense<0.000000e+00> : vector<16x42xf32>
    %171 = tpu.matmul %170, %3, %cst_41 {dimension_numbers = #tpu.dot_dimension_numbers<[1], [0], [0], [1], [0, 0, 1, 1], [], []>} : vector<16x32xf32>, vector<32x42xf32>, vector<16x42xf32> -> vector<16x42xf32>
    %cst_42 = arith.constant dense<0.000000e+00> : vector<16x42xf32>
    %172 = tpu.matmul %92, %4, %cst_42 {dimension_numbers = #tpu.dot_dimension_numbers<[1], [0], [0], [1], [0, 0, 1, 1], [], []>} : vector<16x32xf32>, vector<32x42xf32>, vector<16x42xf32> -> vector<16x42xf32>
    %173 = arith.addf %171, %172 : vector<16x42xf32>
    %174 = arith.addf %173, %10 : vector<16x42xf32>
    %175 = vector.extract_strided_slice %174 {offsets = [0, 0], sizes = [16, 32], strides = [1, 1]} : vector<16x42xf32> to vector<16x32xf32>
    %cst_43 = arith.constant dense<0xFF800000> : vector<16xf32>
    %176 = vector.multi_reduction <maximumf>, %175, %cst_43 [1] : vector<16x32xf32> to vector<16xf32>
    %177 = vector.shape_cast %176 : vector<16xf32> to vector<16x1xf32>
    %178 = vector.broadcast %177 : vector<16x1xf32> to vector<16x32xf32>
    %179 = arith.subf %175, %178 : vector<16x32xf32>
    %180 = math.exp %179 : vector<16x32xf32>
    %cst_44 = arith.constant dense<0.000000e+00> : vector<16xf32>
    %181 = vector.multi_reduction <add>, %180, %cst_44 [1] : vector<16x32xf32> to vector<16xf32>
    %182 = vector.shape_cast %181 : vector<16xf32> to vector<16x1xf32>
    %183 = vector.broadcast %182 : vector<16x1xf32> to vector<16x32xf32>
    %184 = arith.divf %180, %183 : vector<16x32xf32>
    %185 = vector.extract_strided_slice %174 {offsets = [0, 32], sizes = [16, 1], strides = [1, 1]} : vector<16x42xf32> to vector<16x1xf32>
    %cst_45 = arith.constant dense<0xFF800000> : vector<1xf32>
    %186 = vector.multi_reduction <maximumf>, %185, %cst_45 [0] : vector<16x1xf32> to vector<1xf32>
    %187 = vector.shape_cast %186 : vector<1xf32> to vector<1x1xf32>
    %188 = vector.broadcast %187 : vector<1x1xf32> to vector<16x1xf32>
    %189 = arith.subf %185, %188 : vector<16x1xf32>
    %190 = math.exp %189 : vector<16x1xf32>
    %cst_46 = arith.constant dense<0.000000e+00> : vector<1x42xf32>
    %191 = tpu.matmul %190, %174, %cst_46 {dimension_numbers = #tpu.dot_dimension_numbers<[0], [0], [1], [1], [0, 1, 1, 1], [], []>} : vector<16x1xf32>, vector<16x42xf32>, vector<1x42xf32> -> vector<1x42xf32>
    %192 = vector.extract_strided_slice %191 {offsets = [0, 41], sizes = [1, 1], strides = [1, 1]} : vector<1x42xf32> to vector<1x1xf32>
    %193 = vector.extract_strided_slice %191 {offsets = [0, 33], sizes = [1, 8], strides = [1, 1]} : vector<1x42xf32> to vector<1x8xf32>
    %194 = vector.broadcast %192 : vector<1x1xf32> to vector<1x8xf32>
    %195 = arith.divf %193, %194 : vector<1x8xf32>
    %196 = arith.addf %195, %11 : vector<1x8xf32>
    %cst_47 = arith.constant dense<0.000000e+00> : vector<16x192xf32>
    %197 = tpu.matmul %184, %1, %cst_47 {dimension_numbers = #tpu.dot_dimension_numbers<[1], [0], [0], [1], [0, 0, 1, 1], [], []>} : vector<16x32xf32>, vector<32x192xf32>, vector<16x192xf32> -> vector<16x192xf32>
    %198 = arith.addf %197, %7 : vector<16x192xf32>
    %199 = vector.extract_strided_slice %198 {offsets = [0, 128], sizes = [16, 64], strides = [1, 1]} : vector<16x192xf32> to vector<16x64xf32>
    %200 = vector.extract_strided_slice %0 {offsets = [0, 0, 0], sizes = [1, 16, 16], strides = [1, 1, 1]} : vector<2x16x16xf32> to vector<1x16x16xf32>
    %201 = vector.shape_cast %200 : vector<1x16x16xf32> to vector<16x16xf32>
    %202 = vector.extract_strided_slice %199 {offsets = [0, 0], sizes = [16, 32], strides = [1, 1]} : vector<16x64xf32> to vector<16x32xf32>
    %cst_48 = arith.constant dense<0.000000e+00> : vector<16x32xf32>
    %203 = tpu.matmul %201, %202, %cst_48 {dimension_numbers = #tpu.dot_dimension_numbers<[1], [0], [0], [1], [0, 0, 1, 1], [], []>} : vector<16x16xf32>, vector<16x32xf32>, vector<16x32xf32> -> vector<16x32xf32>
    %204 = vector.extract_strided_slice %0 {offsets = [1, 0, 0], sizes = [1, 16, 16], strides = [1, 1, 1]} : vector<2x16x16xf32> to vector<1x16x16xf32>
    %205 = vector.shape_cast %204 : vector<1x16x16xf32> to vector<16x16xf32>
    %206 = vector.extract_strided_slice %199 {offsets = [0, 32], sizes = [16, 32], strides = [1, 1]} : vector<16x64xf32> to vector<16x32xf32>
    %cst_49 = arith.constant dense<0.000000e+00> : vector<16x32xf32>
    %207 = tpu.matmul %205, %206, %cst_49 {dimension_numbers = #tpu.dot_dimension_numbers<[1], [0], [0], [1], [0, 0, 1, 1], [], []>} : vector<16x16xf32>, vector<16x32xf32>, vector<16x32xf32> -> vector<16x32xf32>
    %208 = arith.addf %203, %207 : vector<16x32xf32>
    %cst_50 = arith.constant dense<0.000000e+00> : vector<16x128xf32>
    %209 = tpu.matmul %208, %2, %cst_50 {dimension_numbers = #tpu.dot_dimension_numbers<[1], [0], [0], [1], [0, 0, 1, 1], [], []>} : vector<16x32xf32>, vector<32x128xf32>, vector<16x128xf32> -> vector<16x128xf32>
    %210 = vector.extract_strided_slice %198 {offsets = [0, 0], sizes = [16, 128], strides = [1, 1]} : vector<16x192xf32> to vector<16x128xf32>
    %211 = arith.addf %209, %210 : vector<16x128xf32>
    %212 = vector.extract_strided_slice %211 {offsets = [0, 0], sizes = [16, 64], strides = [1, 1]} : vector<16x128xf32> to vector<16x64xf32>
    %213 = arith.negf %212 : vector<16x64xf32>
    %214 = math.exp %213 : vector<16x64xf32>
    %cst_51 = arith.constant 1.000000e+00 : f32
    %215 = vector.broadcast %cst_51 : f32 to vector<16x64xf32>
    %216 = arith.addf %215, %214 : vector<16x64xf32>
    %217 = arith.divf %215, %216 : vector<16x64xf32>
    %218 = vector.extract_strided_slice %217 {offsets = [0, 0], sizes = [16, 32], strides = [1, 1]} : vector<16x64xf32> to vector<16x32xf32>
    %219 = vector.extract_strided_slice %217 {offsets = [0, 32], sizes = [16, 32], strides = [1, 1]} : vector<16x64xf32> to vector<16x32xf32>
    %220 = vector.extract_strided_slice %211 {offsets = [0, 64], sizes = [16, 32], strides = [1, 1]} : vector<16x128xf32> to vector<16x32xf32>
    %221 = vector.extract_strided_slice %211 {offsets = [0, 96], sizes = [16, 32], strides = [1, 1]} : vector<16x128xf32> to vector<16x32xf32>
    %222 = arith.mulf %218, %221 : vector<16x32xf32>
    %223 = arith.addf %220, %222 : vector<16x32xf32>
    %224 = math.tanh %223 : vector<16x32xf32>
    %cst_52 = arith.constant 1.000000e+00 : f32
    %225 = vector.broadcast %cst_52 : f32 to vector<16x32xf32>
    %226 = arith.subf %225, %219 : vector<16x32xf32>
    %227 = arith.mulf %226, %224 : vector<16x32xf32>
    %228 = arith.mulf %219, %184 : vector<16x32xf32>
    %229 = arith.addf %227, %228 : vector<16x32xf32>
    %cst_53 = arith.constant dense<0.000000e+00> : vector<16x192xf32>
    %230 = tpu.matmul %229, %1, %cst_53 {dimension_numbers = #tpu.dot_dimension_numbers<[1], [0], [0], [1], [0, 0, 1, 1], [], []>} : vector<16x32xf32>, vector<32x192xf32>, vector<16x192xf32> -> vector<16x192xf32>
    %231 = arith.addf %230, %7 : vector<16x192xf32>
    %232 = vector.extract_strided_slice %231 {offsets = [0, 128], sizes = [16, 64], strides = [1, 1]} : vector<16x192xf32> to vector<16x64xf32>
    %233 = vector.extract_strided_slice %0 {offsets = [0, 0, 0], sizes = [1, 16, 16], strides = [1, 1, 1]} : vector<2x16x16xf32> to vector<1x16x16xf32>
    %234 = vector.shape_cast %233 : vector<1x16x16xf32> to vector<16x16xf32>
    %235 = vector.extract_strided_slice %232 {offsets = [0, 0], sizes = [16, 32], strides = [1, 1]} : vector<16x64xf32> to vector<16x32xf32>
    %cst_54 = arith.constant dense<0.000000e+00> : vector<16x32xf32>
    %236 = tpu.matmul %234, %235, %cst_54 {dimension_numbers = #tpu.dot_dimension_numbers<[1], [0], [0], [1], [0, 0, 1, 1], [], []>} : vector<16x16xf32>, vector<16x32xf32>, vector<16x32xf32> -> vector<16x32xf32>
    %237 = vector.extract_strided_slice %0 {offsets = [1, 0, 0], sizes = [1, 16, 16], strides = [1, 1, 1]} : vector<2x16x16xf32> to vector<1x16x16xf32>
    %238 = vector.shape_cast %237 : vector<1x16x16xf32> to vector<16x16xf32>
    %239 = vector.extract_strided_slice %232 {offsets = [0, 32], sizes = [16, 32], strides = [1, 1]} : vector<16x64xf32> to vector<16x32xf32>
    %cst_55 = arith.constant dense<0.000000e+00> : vector<16x32xf32>
    %240 = tpu.matmul %238, %239, %cst_55 {dimension_numbers = #tpu.dot_dimension_numbers<[1], [0], [0], [1], [0, 0, 1, 1], [], []>} : vector<16x16xf32>, vector<16x32xf32>, vector<16x32xf32> -> vector<16x32xf32>
    %241 = arith.addf %236, %240 : vector<16x32xf32>
    %cst_56 = arith.constant dense<0.000000e+00> : vector<16x128xf32>
    %242 = tpu.matmul %241, %2, %cst_56 {dimension_numbers = #tpu.dot_dimension_numbers<[1], [0], [0], [1], [0, 0, 1, 1], [], []>} : vector<16x32xf32>, vector<32x128xf32>, vector<16x128xf32> -> vector<16x128xf32>
    %243 = vector.extract_strided_slice %231 {offsets = [0, 0], sizes = [16, 128], strides = [1, 1]} : vector<16x192xf32> to vector<16x128xf32>
    %244 = arith.addf %242, %243 : vector<16x128xf32>
    %245 = vector.extract_strided_slice %244 {offsets = [0, 0], sizes = [16, 64], strides = [1, 1]} : vector<16x128xf32> to vector<16x64xf32>
    %246 = arith.negf %245 : vector<16x64xf32>
    %247 = math.exp %246 : vector<16x64xf32>
    %cst_57 = arith.constant 1.000000e+00 : f32
    %248 = vector.broadcast %cst_57 : f32 to vector<16x64xf32>
    %249 = arith.addf %248, %247 : vector<16x64xf32>
    %250 = arith.divf %248, %249 : vector<16x64xf32>
    %251 = vector.extract_strided_slice %250 {offsets = [0, 0], sizes = [16, 32], strides = [1, 1]} : vector<16x64xf32> to vector<16x32xf32>
    %252 = vector.extract_strided_slice %250 {offsets = [0, 32], sizes = [16, 32], strides = [1, 1]} : vector<16x64xf32> to vector<16x32xf32>
    %253 = vector.extract_strided_slice %244 {offsets = [0, 64], sizes = [16, 32], strides = [1, 1]} : vector<16x128xf32> to vector<16x32xf32>
    %254 = vector.extract_strided_slice %244 {offsets = [0, 96], sizes = [16, 32], strides = [1, 1]} : vector<16x128xf32> to vector<16x32xf32>
    %255 = arith.mulf %251, %254 : vector<16x32xf32>
    %256 = arith.addf %253, %255 : vector<16x32xf32>
    %257 = math.tanh %256 : vector<16x32xf32>
    %cst_58 = arith.constant 1.000000e+00 : f32
    %258 = vector.broadcast %cst_58 : f32 to vector<16x32xf32>
    %259 = arith.subf %258, %252 : vector<16x32xf32>
    %260 = arith.mulf %259, %257 : vector<16x32xf32>
    %261 = arith.mulf %252, %229 : vector<16x32xf32>
    %262 = arith.addf %260, %261 : vector<16x32xf32>
    %cst_59 = arith.constant dense<0.000000e+00> : vector<16x42xf32>
    %263 = tpu.matmul %262, %3, %cst_59 {dimension_numbers = #tpu.dot_dimension_numbers<[1], [0], [0], [1], [0, 0, 1, 1], [], []>} : vector<16x32xf32>, vector<32x42xf32>, vector<16x42xf32> -> vector<16x42xf32>
    %cst_60 = arith.constant dense<0.000000e+00> : vector<16x42xf32>
    %264 = tpu.matmul %184, %4, %cst_60 {dimension_numbers = #tpu.dot_dimension_numbers<[1], [0], [0], [1], [0, 0, 1, 1], [], []>} : vector<16x32xf32>, vector<32x42xf32>, vector<16x42xf32> -> vector<16x42xf32>
    %265 = arith.addf %263, %264 : vector<16x42xf32>
    %266 = arith.addf %265, %10 : vector<16x42xf32>
    %267 = vector.extract_strided_slice %266 {offsets = [0, 0], sizes = [16, 32], strides = [1, 1]} : vector<16x42xf32> to vector<16x32xf32>
    %cst_61 = arith.constant dense<0xFF800000> : vector<16xf32>
    %268 = vector.multi_reduction <maximumf>, %267, %cst_61 [1] : vector<16x32xf32> to vector<16xf32>
    %269 = vector.shape_cast %268 : vector<16xf32> to vector<16x1xf32>
    %270 = vector.broadcast %269 : vector<16x1xf32> to vector<16x32xf32>
    %271 = arith.subf %267, %270 : vector<16x32xf32>
    %272 = math.exp %271 : vector<16x32xf32>
    %cst_62 = arith.constant dense<0.000000e+00> : vector<16xf32>
    %273 = vector.multi_reduction <add>, %272, %cst_62 [1] : vector<16x32xf32> to vector<16xf32>
    %274 = vector.shape_cast %273 : vector<16xf32> to vector<16x1xf32>
    %275 = vector.broadcast %274 : vector<16x1xf32> to vector<16x32xf32>
    %276 = arith.divf %272, %275 : vector<16x32xf32>
    %277 = vector.extract_strided_slice %266 {offsets = [0, 32], sizes = [16, 1], strides = [1, 1]} : vector<16x42xf32> to vector<16x1xf32>
    %cst_63 = arith.constant dense<0xFF800000> : vector<1xf32>
    %278 = vector.multi_reduction <maximumf>, %277, %cst_63 [0] : vector<16x1xf32> to vector<1xf32>
    %279 = vector.shape_cast %278 : vector<1xf32> to vector<1x1xf32>
    %280 = vector.broadcast %279 : vector<1x1xf32> to vector<16x1xf32>
    %281 = arith.subf %277, %280 : vector<16x1xf32>
    %282 = math.exp %281 : vector<16x1xf32>
    %cst_64 = arith.constant dense<0.000000e+00> : vector<1x42xf32>
    %283 = tpu.matmul %282, %266, %cst_64 {dimension_numbers = #tpu.dot_dimension_numbers<[0], [0], [1], [1], [0, 1, 1, 1], [], []>} : vector<16x1xf32>, vector<16x42xf32>, vector<1x42xf32> -> vector<1x42xf32>
    %284 = vector.extract_strided_slice %283 {offsets = [0, 41], sizes = [1, 1], strides = [1, 1]} : vector<1x42xf32> to vector<1x1xf32>
    %285 = vector.extract_strided_slice %283 {offsets = [0, 33], sizes = [1, 8], strides = [1, 1]} : vector<1x42xf32> to vector<1x8xf32>
    %286 = vector.broadcast %284 : vector<1x1xf32> to vector<1x8xf32>
    %287 = arith.divf %285, %286 : vector<1x8xf32>
    %288 = arith.addf %287, %11 : vector<1x8xf32>
    %cst_65 = arith.constant dense<0.000000e+00> : vector<16x192xf32>
    %289 = tpu.matmul %276, %1, %cst_65 {dimension_numbers = #tpu.dot_dimension_numbers<[1], [0], [0], [1], [0, 0, 1, 1], [], []>} : vector<16x32xf32>, vector<32x192xf32>, vector<16x192xf32> -> vector<16x192xf32>
    %290 = arith.addf %289, %7 : vector<16x192xf32>
    %291 = vector.extract_strided_slice %290 {offsets = [0, 128], sizes = [16, 64], strides = [1, 1]} : vector<16x192xf32> to vector<16x64xf32>
    %292 = vector.extract_strided_slice %0 {offsets = [0, 0, 0], sizes = [1, 16, 16], strides = [1, 1, 1]} : vector<2x16x16xf32> to vector<1x16x16xf32>
    %293 = vector.shape_cast %292 : vector<1x16x16xf32> to vector<16x16xf32>
    %294 = vector.extract_strided_slice %291 {offsets = [0, 0], sizes = [16, 32], strides = [1, 1]} : vector<16x64xf32> to vector<16x32xf32>
    %cst_66 = arith.constant dense<0.000000e+00> : vector<16x32xf32>
    %295 = tpu.matmul %293, %294, %cst_66 {dimension_numbers = #tpu.dot_dimension_numbers<[1], [0], [0], [1], [0, 0, 1, 1], [], []>} : vector<16x16xf32>, vector<16x32xf32>, vector<16x32xf32> -> vector<16x32xf32>
    %296 = vector.extract_strided_slice %0 {offsets = [1, 0, 0], sizes = [1, 16, 16], strides = [1, 1, 1]} : vector<2x16x16xf32> to vector<1x16x16xf32>
    %297 = vector.shape_cast %296 : vector<1x16x16xf32> to vector<16x16xf32>
    %298 = vector.extract_strided_slice %291 {offsets = [0, 32], sizes = [16, 32], strides = [1, 1]} : vector<16x64xf32> to vector<16x32xf32>
    %cst_67 = arith.constant dense<0.000000e+00> : vector<16x32xf32>
    %299 = tpu.matmul %297, %298, %cst_67 {dimension_numbers = #tpu.dot_dimension_numbers<[1], [0], [0], [1], [0, 0, 1, 1], [], []>} : vector<16x16xf32>, vector<16x32xf32>, vector<16x32xf32> -> vector<16x32xf32>
    %300 = arith.addf %295, %299 : vector<16x32xf32>
    %cst_68 = arith.constant dense<0.000000e+00> : vector<16x128xf32>
    %301 = tpu.matmul %300, %2, %cst_68 {dimension_numbers = #tpu.dot_dimension_numbers<[1], [0], [0], [1], [0, 0, 1, 1], [], []>} : vector<16x32xf32>, vector<32x128xf32>, vector<16x128xf32> -> vector<16x128xf32>
    %302 = vector.extract_strided_slice %290 {offsets = [0, 0], sizes = [16, 128], strides = [1, 1]} : vector<16x192xf32> to vector<16x128xf32>
    %303 = arith.addf %301, %302 : vector<16x128xf32>
    %304 = vector.extract_strided_slice %303 {offsets = [0, 0], sizes = [16, 64], strides = [1, 1]} : vector<16x128xf32> to vector<16x64xf32>
    %305 = arith.negf %304 : vector<16x64xf32>
    %306 = math.exp %305 : vector<16x64xf32>
    %cst_69 = arith.constant 1.000000e+00 : f32
    %307 = vector.broadcast %cst_69 : f32 to vector<16x64xf32>
    %308 = arith.addf %307, %306 : vector<16x64xf32>
    %309 = arith.divf %307, %308 : vector<16x64xf32>
    %310 = vector.extract_strided_slice %309 {offsets = [0, 0], sizes = [16, 32], strides = [1, 1]} : vector<16x64xf32> to vector<16x32xf32>
    %311 = vector.extract_strided_slice %309 {offsets = [0, 32], sizes = [16, 32], strides = [1, 1]} : vector<16x64xf32> to vector<16x32xf32>
    %312 = vector.extract_strided_slice %303 {offsets = [0, 64], sizes = [16, 32], strides = [1, 1]} : vector<16x128xf32> to vector<16x32xf32>
    %313 = vector.extract_strided_slice %303 {offsets = [0, 96], sizes = [16, 32], strides = [1, 1]} : vector<16x128xf32> to vector<16x32xf32>
    %314 = arith.mulf %310, %313 : vector<16x32xf32>
    %315 = arith.addf %312, %314 : vector<16x32xf32>
    %316 = math.tanh %315 : vector<16x32xf32>
    %cst_70 = arith.constant 1.000000e+00 : f32
    %317 = vector.broadcast %cst_70 : f32 to vector<16x32xf32>
    %318 = arith.subf %317, %311 : vector<16x32xf32>
    %319 = arith.mulf %318, %316 : vector<16x32xf32>
    %320 = arith.mulf %311, %276 : vector<16x32xf32>
    %321 = arith.addf %319, %320 : vector<16x32xf32>
    %cst_71 = arith.constant dense<0.000000e+00> : vector<16x192xf32>
    %322 = tpu.matmul %321, %1, %cst_71 {dimension_numbers = #tpu.dot_dimension_numbers<[1], [0], [0], [1], [0, 0, 1, 1], [], []>} : vector<16x32xf32>, vector<32x192xf32>, vector<16x192xf32> -> vector<16x192xf32>
    %323 = arith.addf %322, %7 : vector<16x192xf32>
    %324 = vector.extract_strided_slice %323 {offsets = [0, 128], sizes = [16, 64], strides = [1, 1]} : vector<16x192xf32> to vector<16x64xf32>
    %325 = vector.extract_strided_slice %0 {offsets = [0, 0, 0], sizes = [1, 16, 16], strides = [1, 1, 1]} : vector<2x16x16xf32> to vector<1x16x16xf32>
    %326 = vector.shape_cast %325 : vector<1x16x16xf32> to vector<16x16xf32>
    %327 = vector.extract_strided_slice %324 {offsets = [0, 0], sizes = [16, 32], strides = [1, 1]} : vector<16x64xf32> to vector<16x32xf32>
    %cst_72 = arith.constant dense<0.000000e+00> : vector<16x32xf32>
    %328 = tpu.matmul %326, %327, %cst_72 {dimension_numbers = #tpu.dot_dimension_numbers<[1], [0], [0], [1], [0, 0, 1, 1], [], []>} : vector<16x16xf32>, vector<16x32xf32>, vector<16x32xf32> -> vector<16x32xf32>
    %329 = vector.extract_strided_slice %0 {offsets = [1, 0, 0], sizes = [1, 16, 16], strides = [1, 1, 1]} : vector<2x16x16xf32> to vector<1x16x16xf32>
    %330 = vector.shape_cast %329 : vector<1x16x16xf32> to vector<16x16xf32>
    %331 = vector.extract_strided_slice %324 {offsets = [0, 32], sizes = [16, 32], strides = [1, 1]} : vector<16x64xf32> to vector<16x32xf32>
    %cst_73 = arith.constant dense<0.000000e+00> : vector<16x32xf32>
    %332 = tpu.matmul %330, %331, %cst_73 {dimension_numbers = #tpu.dot_dimension_numbers<[1], [0], [0], [1], [0, 0, 1, 1], [], []>} : vector<16x16xf32>, vector<16x32xf32>, vector<16x32xf32> -> vector<16x32xf32>
    %333 = arith.addf %328, %332 : vector<16x32xf32>
    %cst_74 = arith.constant dense<0.000000e+00> : vector<16x128xf32>
    %334 = tpu.matmul %333, %2, %cst_74 {dimension_numbers = #tpu.dot_dimension_numbers<[1], [0], [0], [1], [0, 0, 1, 1], [], []>} : vector<16x32xf32>, vector<32x128xf32>, vector<16x128xf32> -> vector<16x128xf32>
    %335 = vector.extract_strided_slice %323 {offsets = [0, 0], sizes = [16, 128], strides = [1, 1]} : vector<16x192xf32> to vector<16x128xf32>
    %336 = arith.addf %334, %335 : vector<16x128xf32>
    %337 = vector.extract_strided_slice %336 {offsets = [0, 0], sizes = [16, 64], strides = [1, 1]} : vector<16x128xf32> to vector<16x64xf32>
    %338 = arith.negf %337 : vector<16x64xf32>
    %339 = math.exp %338 : vector<16x64xf32>
    %cst_75 = arith.constant 1.000000e+00 : f32
    %340 = vector.broadcast %cst_75 : f32 to vector<16x64xf32>
    %341 = arith.addf %340, %339 : vector<16x64xf32>
    %342 = arith.divf %340, %341 : vector<16x64xf32>
    %343 = vector.extract_strided_slice %342 {offsets = [0, 0], sizes = [16, 32], strides = [1, 1]} : vector<16x64xf32> to vector<16x32xf32>
    %344 = vector.extract_strided_slice %342 {offsets = [0, 32], sizes = [16, 32], strides = [1, 1]} : vector<16x64xf32> to vector<16x32xf32>
    %345 = vector.extract_strided_slice %336 {offsets = [0, 64], sizes = [16, 32], strides = [1, 1]} : vector<16x128xf32> to vector<16x32xf32>
    %346 = vector.extract_strided_slice %336 {offsets = [0, 96], sizes = [16, 32], strides = [1, 1]} : vector<16x128xf32> to vector<16x32xf32>
    %347 = arith.mulf %343, %346 : vector<16x32xf32>
    %348 = arith.addf %345, %347 : vector<16x32xf32>
    %349 = math.tanh %348 : vector<16x32xf32>
    %cst_76 = arith.constant 1.000000e+00 : f32
    %350 = vector.broadcast %cst_76 : f32 to vector<16x32xf32>
    %351 = arith.subf %350, %344 : vector<16x32xf32>
    %352 = arith.mulf %351, %349 : vector<16x32xf32>
    %353 = arith.mulf %344, %321 : vector<16x32xf32>
    %354 = arith.addf %352, %353 : vector<16x32xf32>
    %cst_77 = arith.constant dense<0.000000e+00> : vector<16x42xf32>
    %355 = tpu.matmul %354, %3, %cst_77 {dimension_numbers = #tpu.dot_dimension_numbers<[1], [0], [0], [1], [0, 0, 1, 1], [], []>} : vector<16x32xf32>, vector<32x42xf32>, vector<16x42xf32> -> vector<16x42xf32>
    %cst_78 = arith.constant dense<0.000000e+00> : vector<16x42xf32>
    %356 = tpu.matmul %276, %4, %cst_78 {dimension_numbers = #tpu.dot_dimension_numbers<[1], [0], [0], [1], [0, 0, 1, 1], [], []>} : vector<16x32xf32>, vector<32x42xf32>, vector<16x42xf32> -> vector<16x42xf32>
    %357 = arith.addf %355, %356 : vector<16x42xf32>
    %358 = arith.addf %357, %10 : vector<16x42xf32>
    %359 = vector.extract_strided_slice %358 {offsets = [0, 32], sizes = [16, 1], strides = [1, 1]} : vector<16x42xf32> to vector<16x1xf32>
    %cst_79 = arith.constant dense<0xFF800000> : vector<1xf32>
    %360 = vector.multi_reduction <maximumf>, %359, %cst_79 [0] : vector<16x1xf32> to vector<1xf32>
    %361 = vector.shape_cast %360 : vector<1xf32> to vector<1x1xf32>
    %362 = vector.broadcast %361 : vector<1x1xf32> to vector<16x1xf32>
    %363 = arith.subf %359, %362 : vector<16x1xf32>
    %364 = math.exp %363 : vector<16x1xf32>
    %cst_80 = arith.constant dense<0.000000e+00> : vector<1x42xf32>
    %365 = tpu.matmul %364, %358, %cst_80 {dimension_numbers = #tpu.dot_dimension_numbers<[0], [0], [1], [1], [0, 1, 1, 1], [], []>} : vector<16x1xf32>, vector<16x42xf32>, vector<1x42xf32> -> vector<1x42xf32>
    %366 = vector.extract_strided_slice %365 {offsets = [0, 41], sizes = [1, 1], strides = [1, 1]} : vector<1x42xf32> to vector<1x1xf32>
    %367 = vector.extract_strided_slice %365 {offsets = [0, 33], sizes = [1, 8], strides = [1, 1]} : vector<1x42xf32> to vector<1x8xf32>
    %368 = vector.broadcast %366 : vector<1x1xf32> to vector<1x8xf32>
    %369 = arith.divf %367, %368 : vector<1x8xf32>
    %370 = arith.addf %369, %11 : vector<1x8xf32>
    %371 = tpu.concatenate %104, %196, %288, %370 in 0 : vector<1x8xf32>, vector<1x8xf32>, vector<1x8xf32>, vector<1x8xf32> -> vector<4x8xf32>
    %c0_81 = arith.constant 0 : index
    %c0_82 = arith.constant 0 : index
    %372 = vector.load %arg3[%c0_81, %c0_82] : memref<4x8xf32, #tpu.memory_space<vmem>>, vector<4x8xf32>
    tpu.vector_store %arg3[%c0_81, %c0_82], %371 {strides = array<i32>} : memref<4x8xf32, #tpu.memory_space<vmem>>, vector<4x8xf32>,
    return
  }
}

</mosaic_0001>

<llo_original>
// kernel: tpu_custom_call.1
$region0: #{tpu_custom_call.1}
  #allocation0 [shape = 'u32[]', space=smem, size = 0x4, offset = 0x4, fixed_abs, tag = 'smem constant byte address 0x4 - core index']
  #allocation1 [shape = 'u32[144,128]{1,0:T(1,128)}', space=vmem, size = 0x12000, scoped, tag = 'internal scratch']
  %s0 = inlined_call_operand.hbm [shape: f32[2,16,16], index: 0, kind: input, shape index: {}]
  %s1 = inlined_call_operand.hbm [shape: f32[16,32], index: 1, kind: input, shape index: {}]
  %s2 = inlined_call_operand.hbm [shape: f32[136,192], index: 2, kind: input, shape index: {}]
  %s3 = inlined_call_operand.hbm [shape: f32[4,8], index: 3, kind: output, shape index: {}]
  %s4 = sld [smem:[#allocation0]]
  $region34: #{tpu_custom_call.1} parent=0
    _
  %s6 = ssub.s32 1, %s4
  %s7 = scalar_select 0, %s6, %s4
  $region1: #{tpu_custom_call.1} parent=0
    #allocation2 [shape = 'u8[16384]{0}', space=vmem, size = 0x4000, scoped, tag = 'input window, operand 0, single buffered']
    #allocation3 [shape = 's32[1]{0}', space=sflag, size = 0x4, scoped, tag = 'scoped memory for tpu_custom_call.1']
    #allocation4 [shape = 's32[1]{0}', space=sflag, size = 0x4, scoped, tag = 'scoped memory for tpu_custom_call.1']
    #allocation5 [shape = 'u8[8192]{0}', space=vmem, size = 0x2000, scoped, tag = 'input window, operand 1, single buffered']
    #allocation6 [shape = 's32[1]{0}', space=sflag, size = 0x4, scoped, tag = 'scoped memory for tpu_custom_call.1']
    #allocation7 [shape = 'u8[139264]{0}', space=vmem, size = 0x22000, scoped, tag = 'input window, operand 2, single buffered']
    #allocation8 [shape = 'u8[2048]{0}', space=vmem, size = 0x800, scoped, tag = 'output window, operand 0, single buffered']
    %8 = vsyncpa [#allocation3], 0
    %9 = vsyncpa [#allocation6], 0
    %10 = vsyncpa [#allocation4], 0
    // Predicated region
    $region2: #{tpu_custom_call.1} parent=1 // pred_check
      _
    $region3: #{tpu_custom_call.1} parent=1 // pred_check_branch
      %12 = sbr.rel (0) target = $region5
    $region4: #{tpu_custom_call.1} parent=1 // pred_region
      %s14 = ssub.s32 512, 512
      %15 = vsyncadd [#allocation3], %s14
      %s16 = sshll.u32 [#allocation2], 4
      %s17 = int_to_ptr.vmem [resolvable:$true] %s16
      %22 = dma.hbm_to_vmem [thread:$0]  %s0, 512, %s17, [#allocation3], 128, 128, 8
    $region5: #{tpu_custom_call.1} parent=1 // pred_fallthru
      _
    // Predicated region
    $region6: #{tpu_custom_call.1} parent=1 // pred_check
      _
    $region7: #{tpu_custom_call.1} parent=1 // pred_check_branch
      %24 = sbr.rel (0) target = $region9
    $region8: #{tpu_custom_call.1} parent=1 // pred_region
      %s26 = ssub.s32 256, 256
      %27 = vsyncadd [#allocation6], %s26
      %s28 = sshll.u32 [#allocation5], 4
      %s29 = int_to_ptr.vmem [resolvable:$true] %s28
      %34 = dma.hbm_to_vmem [thread:$0]  %s1, 256, %s29, [#allocation6], 128, 128, 8
    $region9: #{tpu_custom_call.1} parent=1 // pred_fallthru
      _
    // Predicated region
    $region10: #{tpu_custom_call.1} parent=1 // pred_check
      _
    $region11: #{tpu_custom_call.1} parent=1 // pred_check_branch
      %36 = sbr.rel (0) target = $region13
    $region12: #{tpu_custom_call.1} parent=1 // pred_region
      %s38 = ssub.s32 4352, 4352
      %39 = vsyncadd [#allocation6], %s38
      %s40 = sshll.u32 [#allocation7], 4
      %s41 = int_to_ptr.vmem [resolvable:$true] %s40
      %46 = dma.hbm_to_vmem [thread:$0]  %s2, 4352, %s41, [#allocation6], 256, 256, 16
    $region13: #{tpu_custom_call.1} parent=1 // pred_fallthru
      _
    // Predicated region
    $region14: #{tpu_custom_call.1} parent=1 // pred_check
      _
    $region15: #{tpu_custom_call.1} parent=1 // pred_check_branch
      %48 = sbr.rel (0) target = $region17
    $region16: #{tpu_custom_call.1} parent=1 // pred_region
      %49 = dma.done [#allocation3], 512
    $region17: #{tpu_custom_call.1} parent=1 // pred_fallthru
      _
    // Predicated region
    $region18: #{tpu_custom_call.1} parent=1 // pred_check
      _
    $region19: #{tpu_custom_call.1} parent=1 // pred_check_branch
      %51 = sbr.rel (0) target = $region21
    $region20: #{tpu_custom_call.1} parent=1 // pred_region
      %52 = dma.done [#allocation6], 256
    $region21: #{tpu_custom_call.1} parent=1 // pred_fallthru
      _
    // Predicated region
    $region22: #{tpu_custom_call.1} parent=1 // pred_check
      _
    $region23: #{tpu_custom_call.1} parent=1 // pred_check_branch
      %54 = sbr.rel (0) target = $region25
    $region24: #{tpu_custom_call.1} parent=1 // pred_region
      %55 = dma.done [#allocation6], 4352
    $region25: #{tpu_custom_call.1} parent=1 // pred_fallthru
      _
    %v56 = vld [vmem:[#allocation2] sm:$0xff]
    %v57 = vld [vmem:[#allocation2 + $0x8] sm:$0xff]
    %v58 = vld [vmem:[#allocation2 + $0x10] sm:$0xff]
    %v59 = vld [vmem:[#allocation2 + $0x18] sm:$0xff]
    %v60 = vld [vmem:[#allocation7] sm:$0xff]
    %v61 = vld [vmem:[#allocation7 + $0x8] sm:$0xff]
    %v62 = vld [vmem:[#allocation7 + $0x10] sm:$0xff]
    %v63 = vld [vmem:[#allocation7 + $0x18] sm:$0xff]
    %v64 = vld [vmem:[#allocation7 + $0x20] sm:$0xff]
    %v65 = vld [vmem:[#allocation7 + $0x28] sm:$0xff]
    %v66 = vld [vmem:[#allocation7 + $0x30] sm:$0xff]
    %v67 = vld [vmem:[#allocation7 + $0x38] sm:$0xff]
    %v68 = vld [vmem:[#allocation7 + $0x40] sm:$0xff]
    %v69 = vld [vmem:[#allocation7 + $0x50] sm:$0xff]
    %v70 = vld [vmem:[#allocation7 + $0x60] sm:$0xff]
    %v71 = vld [vmem:[#allocation7 + $0x70] sm:$0xff]
    %v72 = vld [vmem:[#allocation7 + $0x80] sm:$0xff]
    %v73 = vld [vmem:[#allocation7 + $0x90] sm:$0xff]
    %v74 = vld [vmem:[#allocation7 + $0xa0] sm:$0xff]
    %v75 = vld [vmem:[#allocation7 + $0xb0] sm:$0xff]
    %v76 = vld [vmem:[#allocation7 + $0xc0] sm:$0xff]
    %v77 = vld [vmem:[#allocation7 + $0xd0] sm:$0xff]
    %v78 = vld [vmem:[#allocation7 + $0xe0] sm:$0xff]
    %v79 = vld [vmem:[#allocation7 + $0xf0] sm:$0xff]
    %s80 = scalar_lea.vmem [#allocation7], 256
    %v81 = vld [vmem:[%s80] ss:$8 sm:$0x3]
    %v83 = vlaneseq
    %v84 = vshrl.u32 %v83, 7
    %v85 = vsub.s32 0, %v84
    %v86 = vrot.slane %v81, %v85
    %v87 = vlaneseq
    %v88 = vshrl.u32 %v87, 7
    %v89 = vsub.s32 1, %v88
    %v90 = vrot.slane %v81, %v89
    %v93 = vld [vmem:[#allocation7 + $0x101] ss:$0 sm:$0xff]
    %v94 = vld [vmem:[#allocation7 + $0x102] ss:$0 sm:$0xff]
    %v95 = vld [vmem:[#allocation5] sm:$0xff]
    %v96 = vld [vmem:[#allocation5 + $0x8] sm:$0xff]
    %vm97 = vcmask 261120
    %v99 = vsel %vm97, %v95, 0
    %v102 = vsel %vm97, %v96, 0
    %104 = vmatprep.subr.mxu0 %v61
    %105 = vmatpush1.msra.mxu0 %v60
    %106 = vmatprep.subr.mxu0 %v63
    %107 = vmatpush1.msra.mxu0 %v62
    %108 = vmatprep.subr.mxu0 %v65
    %109 = vmatpush1.msra.mxu0 %v64
    %110 = vmatprep.subr.mxu0 %v67
    %111 = vmatpush1.msra.mxu0 %v66
    %112 = vmatprep.subr.mxu0 0.0
    %113 = vmatpush1.msra.mxu0 0.0
    %114 = vmatprep.subr.mxu0 0.0
    %115 = vmatpush1.msra.mxu0 0.0
    %116 = vmatprep.subr.mxu0 0.0
    %117 = vmatpush1.msra.mxu0 0.0
    %118 = vmatprep.subr.mxu0 0.0
    %119 = vmatpush1.msra.mxu0 0.0
    %120 = vmatprep.subr.mxu0 0.0
    %121 = vmatpush1.msra.mxu0 0.0
    %122 = vmatprep.subr.mxu0 0.0
    %123 = vmatpush1.msra.mxu0 0.0
    %124 = vmatprep.subr.mxu0 0.0
    %125 = vmatpush1.msra.mxu0 0.0
    %126 = vmatprep.subr.mxu0 0.0
    %127 = vmatpush1.msra.mxu0 0.0
    %128 = vmatprep.subr.mxu0 0.0
    %129 = vmatpush1.msra.mxu0 0.0
    %130 = vmatprep.subr.mxu0 0.0
    %131 = vmatpush1.msra.mxu0 0.0
    %132 = vmatprep.subr.mxu0 0.0
    %133 = vmatpush1.msra.mxu0 0.0
    %134 = vmatprep.subr.mxu0 0.0
    %135 = vmatpush1.msra.mxu0 0.0
    %136 = vmatprep.subr.mxu0 0.0
    %137 = vmatpush1.msra.mxu0 0.0
    %138 = vmatprep.subr.mxu0 0.0
    %139 = vmatpush1.msra.mxu0 0.0
    %140 = vmatprep.subr.mxu0 0.0
    %141 = vmatpush1.msra.mxu0 0.0
    %142 = vmatprep.subr.mxu0 0.0
    %143 = vmatpush1.msra.mxu0 0.0
    %144 = vmatprep.subr.mxu0 0.0
    %145 = vmatpush1.msra.mxu0 0.0
    %146 = vmatprep.subr.mxu0 0.0
    %147 = vmatpush1.msra.mxu0 0.0
    %148 = vmatprep.subr.mxu0 0.0
    %149 = vmatpush1.msra.mxu0 0.0
    %150 = vmatprep.subr.mxu0 0.0
    %151 = vmatpush1.msra.mxu0 0.0
    %152 = vmatprep.subr.mxu0 0.0
    %153 = vmatpush1.msra.mxu0 0.0
    %154 = vmatprep.subr.mxu0 0.0
    %155 = vmatpush1.msra.mxu0 0.0
    %156 = vmatprep.subr.mxu0 0.0
    %157 = vmatpush1.msra.mxu0 0.0
    %158 = vmatprep.subr.mxu0 0.0
    %159 = vmatpush1.msra.mxu0 0.0
    %160 = vmatprep.subr.mxu0 0.0
    %161 = vmatpush1.msra.mxu0 0.0
    %162 = vmatprep.subr.mxu0 0.0
    %163 = vmatpush1.msra.mxu0 0.0
    %164 = vmatprep.subr.mxu0 0.0
    %165 = vmatpush1.msra.mxu0 0.0
    %166 = vmatprep.subr.mxu0 0.0
    %167 = vmatpush1.msra.mxu0 0.0
    %168 = vmatprep.mubr.f32.mxu0 0.0
    %169 = vmatmul.mubr.f32.gmra.mrb[0].mxu0 %v99
    %v170 = vpop.f32.mrb[0].mxu0
    %v171 = vadd.f32 %v86, %v170
    %v172 = vpop.f32.mrb[0].mxu0
    %v173 = vadd.f32 %v90, %v172
    %174 = vmatprep.mubr.f32.mxu0 0.0
    %175 = vmatmul.mubr.f32.gmra.mrb[0].mxu0 %v102
    %v176 = vpop.f32.mrb[0].mxu0
    %v177 = vadd.f32 %v86, %v176
    %v178 = vpop.f32.mrb[0].mxu0
    %v179 = vadd.f32 %v90, %v178
    %180 = vdwg.mxu0
    %183 = vrot.lane.b32.xlu0 %v173, 96
    %v184 = vpop.permute.xlu0 %183
    %185 = vrot.lane.b32.xlu0 %v179, 96
    %v186 = vpop.permute.xlu0 %185
    %vm189 = vcmask 130048
    %v191 = vsel %vm189, %v58, 0
    %v194 = vsel %vm189, %v59, 0
    %196 = vmatprep.subr.mxu0 0.0
    %197 = vmatpush1.msra.mxu0 %v184
    %198 = vmatprep.subr.mxu0 0.0
    %199 = vmatpush1.msra.mxu0 %v186
    %200 = vmatprep.subr.mxu0 0.0
    %201 = vmatpush1.msra.mxu0 0.0
    %202 = vmatprep.subr.mxu0 0.0
    %203 = vmatpush1.msra.mxu0 0.0
    %204 = vmatprep.subr.mxu0 0.0
    %205 = vmatpush1.msra.mxu0 0.0
    %206 = vmatprep.subr.mxu0 0.0
    %207 = vmatpush1.msra.mxu0 0.0
    %208 = vmatprep.subr.mxu0 0.0
    %209 = vmatpush1.msra.mxu0 0.0
    %210 = vmatprep.subr.mxu0 0.0
    %211 = vmatpush1.msra.mxu0 0.0
    %212 = vmatprep.subr.mxu0 0.0
    %213 = vmatpush1.msra.mxu0 0.0
    %214 = vmatprep.subr.mxu0 0.0
    %215 = vmatpush1.msra.mxu0 0.0
    %216 = vmatprep.subr.mxu0 0.0
    %217 = vmatpush1.msra.mxu0 0.0
    %218 = vmatprep.subr.mxu0 0.0
    %219 = vmatpush1.msra.mxu0 0.0
    %220 = vmatprep.subr.mxu0 0.0
    %221 = vmatpush1.msra.mxu0 0.0
    %222 = vmatprep.subr.mxu0 0.0
    %223 = vmatpush1.msra.mxu0 0.0
    %224 = vmatprep.subr.mxu0 0.0
    %225 = vmatpush1.msra.mxu0 0.0
    %226 = vmatprep.subr.mxu0 0.0
    %227 = vmatpush1.msra.mxu0 0.0
    %228 = vmatprep.subr.mxu0 0.0
    %229 = vmatpush1.msra.mxu0 0.0
    %230 = vmatprep.subr.mxu0 0.0
    %231 = vmatpush1.msra.mxu0 0.0
    %232 = vmatprep.subr.mxu0 0.0
    %233 = vmatpush1.msra.mxu0 0.0
    %234 = vmatprep.subr.mxu0 0.0
    %235 = vmatpush1.msra.mxu0 0.0
    %236 = vmatprep.subr.mxu0 0.0
    %237 = vmatpush1.msra.mxu0 0.0
    %238 = vmatprep.subr.mxu0 0.0
    %239 = vmatpush1.msra.mxu0 0.0
    %240 = vmatprep.subr.mxu0 0.0
    %241 = vmatpush1.msra.mxu0 0.0
    %242 = vmatprep.subr.mxu0 0.0
    %243 = vmatpush1.msra.mxu0 0.0
    %244 = vmatprep.subr.mxu0 0.0
    %245 = vmatpush1.msra.mxu0 0.0
    %246 = vmatprep.subr.mxu0 0.0
    %247 = vmatpush1.msra.mxu0 0.0
    %248 = vmatprep.subr.mxu0 0.0
    %249 = vmatpush1.msra.mxu0 0.0
    %250 = vmatprep.subr.mxu0 0.0
    %251 = vmatpush1.msra.mxu0 0.0
    %252 = vmatprep.subr.mxu0 0.0
    %253 = vmatpush1.msra.mxu0 0.0
    %254 = vmatprep.subr.mxu0 0.0
    %255 = vmatpush1.msra.mxu0 0.0
    %256 = vmatprep.subr.mxu0 0.0
    %257 = vmatpush1.msra.mxu0 0.0
    %258 = vmatprep.subr.mxu0 0.0
    %259 = vmatpush1.msra.mxu0 0.0
    %260 = vmatprep.mubr.f32.mxu0 0.0
    %261 = vmatmul.mubr.f32.gmra.mrb[0].mxu0 %v191
    %v262 = vpop.f32.mrb[0].mxu0
    %v263 = vadd.f32 0.0, %v262
    %v264 = vpop.f32.mrb[0].mxu0
    %265 = vmatprep.mubr.f32.mxu0 0.0
    %266 = vmatmul.mubr.f32.gmra.mrb[0].mxu0 %v194
    %v267 = vpop.f32.mrb[0].mxu0
    %v268 = vadd.f32 0.0, %v267
    %v269 = vpop.f32.mrb[0].mxu0
    %270 = vdwg.mxu0
    %v272 = vsel %vm189, %v56, 0
    %v275 = vsel %vm189, %v57, 0
    %277 = vmatprep.subr.mxu0 0.0
    %278 = vmatpush1.msra.mxu0 %v173
    %279 = vmatprep.subr.mxu0 0.0
    %280 = vmatpush1.msra.mxu0 %v179
    %281 = vmatprep.subr.mxu0 0.0
    %282 = vmatpush1.msra.mxu0 0.0
    %283 = vmatprep.subr.mxu0 0.0
    %284 = vmatpush1.msra.mxu0 0.0
    %285 = vmatprep.subr.mxu0 0.0
    %286 = vmatpush1.msra.mxu0 0.0
    %287 = vmatprep.subr.mxu0 0.0
    %288 = vmatpush1.msra.mxu0 0.0
    %289 = vmatprep.subr.mxu0 0.0
    %290 = vmatpush1.msra.mxu0 0.0
    %291 = vmatprep.subr.mxu0 0.0
    %292 = vmatpush1.msra.mxu0 0.0
    %293 = vmatprep.subr.mxu0 0.0
    %294 = vmatpush1.msra.mxu0 0.0
    %295 = vmatprep.subr.mxu0 0.0
    %296 = vmatpush1.msra.mxu0 0.0
    %297 = vmatprep.subr.mxu0 0.0
    %298 = vmatpush1.msra.mxu0 0.0
    %299 = vmatprep.subr.mxu0 0.0
    %300 = vmatpush1.msra.mxu0 0.0
    %301 = vmatprep.subr.mxu0 0.0
    %302 = vmatpush1.msra.mxu0 0.0
    %303 = vmatprep.subr.mxu0 0.0
    %304 = vmatpush1.msra.mxu0 0.0
    %305 = vmatprep.subr.mxu0 0.0
    %306 = vmatpush1.msra.mxu0 0.0
    %307 = vmatprep.subr.mxu0 0.0
    %308 = vmatpush1.msra.mxu0 0.0
    %309 = vmatprep.subr.mxu0 0.0
    %310 = vmatpush1.msra.mxu0 0.0
    %311 = vmatprep.subr.mxu0 0.0
    %312 = vmatpush1.msra.mxu0 0.0
    %313 = vmatprep.subr.mxu0 0.0
    %314 = vmatpush1.msra.mxu0 0.0
    %315 = vmatprep.subr.mxu0 0.0
    %316 = vmatpush1.msra.mxu0 0.0
    %317 = vmatprep.subr.mxu0 0.0
    %318 = vmatpush1.msra.mxu0 0.0
    %319 = vmatprep.subr.mxu0 0.0
    %320 = vmatpush1.msra.mxu0 0.0
    %321 = vmatprep.subr.mxu0 0.0
    %322 = vmatpush1.msra.mxu0 0.0
    %323 = vmatprep.subr.mxu0 0.0
    %324 = vmatpush1.msra.mxu0 0.0
    %325 = vmatprep.subr.mxu0 0.0
    %326 = vmatpush1.msra.mxu0 0.0
    %327 = vmatprep.subr.mxu0 0.0
    %328 = vmatpush1.msra.mxu0 0.0
    %329 = vmatprep.subr.mxu0 0.0
    %330 = vmatpush1.msra.mxu0 0.0
    %331 = vmatprep.subr.mxu0 0.0
    %332 = vmatpush1.msra.mxu0 0.0
    %333 = vmatprep.subr.mxu0 0.0
    %334 = vmatpush1.msra.mxu0 0.0
    %335 = vmatprep.subr.mxu0 0.0
    %336 = vmatpush1.msra.mxu0 0.0
    %337 = vmatprep.subr.mxu0 0.0
    %338 = vmatpush1.msra.mxu0 0.0
    %339 = vmatprep.subr.mxu0 0.0
    %340 = vmatpush1.msra.mxu0 0.0
    %341 = vmatprep.mubr.f32.mxu0 0.0
    %342 = vmatmul.mubr.f32.gmra.mrb[0].mxu0 %v272
    %v343 = vpop.f32.mrb[0].mxu0
    %v344 = vadd.f32 %v263, %v343
    %v345 = vpop.f32.mrb[0].mxu0
    %346 = vmatprep.mubr.f32.mxu0 0.0
    %347 = vmatmul.mubr.f32.gmra.mrb[0].mxu0 %v275
    %v348 = vpop.f32.mrb[0].mxu0
    %v349 = vadd.f32 %v268, %v348
    %v350 = vpop.f32.mrb[0].mxu0
    %351 = vdwg.mxu0
    %v353 = vsel %vm97, %v344, 0
    %v356 = vsel %vm97, %v349, 0
    %358 = vmatprep.subr.mxu0 0.0
    %359 = vmatpush1.msra.mxu0 %v68
    %360 = vmatprep.subr.mxu0 0.0
    %361 = vmatpush1.msra.mxu0 %v69
    %362 = vmatprep.subr.mxu0 0.0
    %363 = vmatpush1.msra.mxu0 %v70
    %364 = vmatprep.subr.mxu0 0.0
    %365 = vmatpush1.msra.mxu0 %v71
    %366 = vmatprep.subr.mxu0 0.0
    %367 = vmatpush1.msra.mxu0 0.0
    %368 = vmatprep.subr.mxu0 0.0
    %369 = vmatpush1.msra.mxu0 0.0
    %370 = vmatprep.subr.mxu0 0.0
    %371 = vmatpush1.msra.mxu0 0.0
    %372 = vmatprep.subr.mxu0 0.0
    %373 = vmatpush1.msra.mxu0 0.0
    %374 = vmatprep.subr.mxu0 0.0
    %375 = vmatpush1.msra.mxu0 0.0
    %376 = vmatprep.subr.mxu0 0.0
    %377 = vmatpush1.msra.mxu0 0.0
    %378 = vmatprep.subr.mxu0 0.0
    %379 = vmatpush1.msra.mxu0 0.0
    %380 = vmatprep.subr.mxu0 0.0
    %381 = vmatpush1.msra.mxu0 0.0
    %382 = vmatprep.subr.mxu0 0.0
    %383 = vmatpush1.msra.mxu0 0.0
    %384 = vmatprep.subr.mxu0 0.0
    %385 = vmatpush1.msra.mxu0 0.0
    %386 = vmatprep.subr.mxu0 0.0
    %387 = vmatpush1.msra.mxu0 0.0
    %388 = vmatprep.subr.mxu0 0.0
    %389 = vmatpush1.msra.mxu0 0.0
    %390 = vmatprep.subr.mxu0 0.0
    %391 = vmatpush1.msra.mxu0 0.0
    %392 = vmatprep.subr.mxu0 0.0
    %393 = vmatpush1.msra.mxu0 0.0
    %394 = vmatprep.subr.mxu0 0.0
    %395 = vmatpush1.msra.mxu0 0.0
    %396 = vmatprep.subr.mxu0 0.0
    %397 = vmatpush1.msra.mxu0 0.0
    %398 = vmatprep.subr.mxu0 0.0
    %399 = vmatpush1.msra.mxu0 0.0
    %400 = vmatprep.subr.mxu0 0.0
    %401 = vmatpush1.msra.mxu0 0.0
    %402 = vmatprep.subr.mxu0 0.0
    %403 = vmatpush1.msra.mxu0 0.0
    %404 = vmatprep.subr.mxu0 0.0
    %405 = vmatpush1.msra.mxu0 0.0
    %406 = vmatprep.subr.mxu0 0.0
    %407 = vmatpush1.msra.mxu0 0.0
    %408 = vmatprep.subr.mxu0 0.0
    %409 = vmatpush1.msra.mxu0 0.0
    %410 = vmatprep.subr.mxu0 0.0
    %411 = vmatpush1.msra.mxu0 0.0
    %412 = vmatprep.subr.mxu0 0.0
    %413 = vmatpush1.msra.mxu0 0.0
    %414 = vmatprep.subr.mxu0 0.0
    %415 = vmatpush1.msra.mxu0 0.0
    %416 = vmatprep.subr.mxu0 0.0
    %417 = vmatpush1.msra.mxu0 0.0
    %418 = vmatprep.subr.mxu0 0.0
    %419 = vmatpush1.msra.mxu0 0.0
    %420 = vmatprep.subr.mxu0 0.0
    %421 = vmatpush1.msra.mxu0 0.0
    %422 = vmatprep.mubr.f32.mxu0 0.0
    %423 = vmatmul.mubr.f32.gmra.mrb[0].mxu0 %v353
    %v424 = vpop.f32.mrb[0].mxu0
    %v425 = vadd.f32 %v171, %v424
    %v426 = vpop.f32.mrb[0].mxu0
    %427 = vmatprep.mubr.f32.mxu0 0.0
    %428 = vmatmul.mubr.f32.gmra.mrb[0].mxu0 %v356
    %v429 = vpop.f32.mrb[0].mxu0
    %v430 = vadd.f32 %v177, %v429
    %v431 = vpop.f32.mrb[0].mxu0
    %432 = vdwg.mxu0
    %v433 = vxor.u32 %v425, 2147483648
    %v434 = vxor.u32 %v430, 2147483648
    %v435 = vmul.f32 %v433, 1.442695
    %v436 = vpow.pop %v435
    %v437 = vmul.f32 %v434, 1.442695
    %v438 = vpow.pop %v437
    %v439 = vadd.f32 %v436, 1.0
    %v440 = vadd.f32 %v438, 1.0
    %v441 = vrcp.pop %v439
    %v442 = vmul.f32 1.0, %v441
    %v443 = vrcp.pop %v440
    %v444 = vmul.f32 1.0, %v443
    %447 = vrot.lane.b32.xlu0 %v425, 32
    %v448 = vpop.permute.xlu0 %447
    %449 = vrot.lane.b32.xlu0 %v430, 32
    %v450 = vpop.permute.xlu0 %449
    %v453 = vmul.f32 %v442, %v448
    %v454 = vmul.f32 %v444, %v450
    %457 = vrot.lane.b32.xlu0 %v453, 64
    %v458 = vpop.permute.xlu0 %457
    %459 = vrot.lane.b32.xlu0 %v454, 64
    %v460 = vpop.permute.xlu0 %459
    %v463 = vadd.f32 %v425, %v458
    %v464 = vadd.f32 %v430, %v460
    %v465 = vtanh.pop %v463
    %v466 = vtanh.pop %v464
    %v467 = vsub.f32 1.0, %v442
    %v468 = vsub.f32 1.0, %v444
    %471 = vrot.lane.b32.xlu0 %v465, 96
    %v472 = vpop.permute.xlu0 %471
    %473 = vrot.lane.b32.xlu0 %v466, 96
    %v474 = vpop.permute.xlu0 %473
    %v477 = vmul.f32 %v467, %v472
    %v478 = vmul.f32 %v468, %v474
    %479 = vrot.lane.b32.xlu0 %v95, 32
    %v480 = vpop.permute.xlu0 %479
    %481 = vrot.lane.b32.xlu0 %v96, 32
    %v482 = vpop.permute.xlu0 %481
    %v485 = vmul.f32 %v442, %v480
    %v486 = vmul.f32 %v444, %v482
    %v487 = vadd.f32 %v477, %v485
    %v488 = vadd.f32 %v478, %v486
    %491 = vrot.lane.b32.xlu0 %v487, 96
    %v492 = vpop.permute.xlu0 %491
    %493 = vrot.lane.b32.xlu0 %v488, 96
    %v494 = vpop.permute.xlu0 %493
    %v495 = vsel %vm97, %v492, 0
    %v497 = vsel %vm97, %v494, 0
    %499 = vmatprep.subr.mxu0 %v61
    %500 = vmatpush1.msra.mxu0 %v60
    %501 = vmatprep.subr.mxu0 %v63
    %502 = vmatpush1.msra.mxu0 %v62
    %503 = vmatprep.subr.mxu0 %v65
    %504 = vmatpush1.msra.mxu0 %v64
    %505 = vmatprep.subr.mxu0 %v67
    %506 = vmatpush1.msra.mxu0 %v66
    %507 = vmatprep.subr.mxu0 0.0
    %508 = vmatpush1.msra.mxu0 0.0
    %509 = vmatprep.subr.mxu0 0.0
    %510 = vmatpush1.msra.mxu0 0.0
    %511 = vmatprep.subr.mxu0 0.0
    %512 = vmatpush1.msra.mxu0 0.0
    %513 = vmatprep.subr.mxu0 0.0
    %514 = vmatpush1.msra.mxu0 0.0
    %515 = vmatprep.subr.mxu0 0.0
    %516 = vmatpush1.msra.mxu0 0.0
    %517 = vmatprep.subr.mxu0 0.0
    %518 = vmatpush1.msra.mxu0 0.0
    %519 = vmatprep.subr.mxu0 0.0
    %520 = vmatpush1.msra.mxu0 0.0
    %521 = vmatprep.subr.mxu0 0.0
    %522 = vmatpush1.msra.mxu0 0.0
    %523 = vmatprep.subr.mxu0 0.0
    %524 = vmatpush1.msra.mxu0 0.0
    %525 = vmatprep.subr.mxu0 0.0
    %526 = vmatpush1.msra.mxu0 0.0
    %527 = vmatprep.subr.mxu0 0.0
    %528 = vmatpush1.msra.mxu0 0.0
    %529 = vmatprep.subr.mxu0 0.0
    %530 = vmatpush1.msra.mxu0 0.0
    %531 = vmatprep.subr.mxu0 0.0
    %532 = vmatpush1.msra.mxu0 0.0
    %533 = vmatprep.subr.mxu0 0.0
    %534 = vmatpush1.msra.mxu0 0.0
    %535 = vmatprep.subr.mxu0 0.0
    %536 = vmatpush1.msra.mxu0 0.0
    %537 = vmatprep.subr.mxu0 0.0
    %538 = vmatpush1.msra.mxu0 0.0
    %539 = vmatprep.subr.mxu0 0.0
    %540 = vmatpush1.msra.mxu0 0.0
    %541 = vmatprep.subr.mxu0 0.0
    %542 = vmatpush1.msra.mxu0 0.0
    %543 = vmatprep.subr.mxu0 0.0
    %544 = vmatpush1.msra.mxu0 0.0
    %545 = vmatprep.subr.mxu0 0.0
    %546 = vmatpush1.msra.mxu0 0.0
    %547 = vmatprep.subr.mxu0 0.0
    %548 = vmatpush1.msra.mxu0 0.0
    %549 = vmatprep.subr.mxu0 0.0
    %550 = vmatpush1.msra.mxu0 0.0
    %551 = vmatprep.subr.mxu0 0.0
    %552 = vmatpush1.msra.mxu0 0.0
    %553 = vmatprep.subr.mxu0 0.0
    %554 = vmatpush1.msra.mxu0 0.0
    %555 = vmatprep.subr.mxu0 0.0
    %556 = vmatpush1.msra.mxu0 0.0
    %557 = vmatprep.subr.mxu0 0.0
    %558 = vmatpush1.msra.mxu0 0.0
    %559 = vmatprep.subr.mxu0 0.0
    %560 = vmatpush1.msra.mxu0 0.0
    %561 = vmatprep.subr.mxu0 0.0
    %562 = vmatpush1.msra.mxu0 0.0
    %563 = vmatprep.mubr.f32.mxu0 0.0
    %564 = vmatmul.mubr.f32.gmra.mrb[0].mxu0 %v495
    %v565 = vpop.f32.mrb[0].mxu0
    %v566 = vadd.f32 %v86, %v565
    %v567 = vpop.f32.mrb[0].mxu0
    %v568 = vadd.f32 %v90, %v567
    %569 = vmatprep.mubr.f32.mxu0 0.0
    %570 = vmatmul.mubr.f32.gmra.mrb[0].mxu0 %v497
    %v571 = vpop.f32.mrb[0].mxu0
    %v572 = vadd.f32 %v86, %v571
    %v573 = vpop.f32.mrb[0].mxu0
    %v574 = vadd.f32 %v90, %v573
    %575 = vdwg.mxu0
    %578 = vrot.lane.b32.xlu0 %v568, 96
    %v579 = vpop.permute.xlu0 %578
    %580 = vrot.lane.b32.xlu0 %v574, 96
    %v581 = vpop.permute.xlu0 %580
    %584 = vmatprep.subr.mxu0 0.0
    %585 = vmatpush1.msra.mxu0 %v579
    %586 = vmatprep.subr.mxu0 0.0
    %587 = vmatpush1.msra.mxu0 %v581
    %588 = vmatprep.subr.mxu0 0.0
    %589 = vmatpush1.msra.mxu0 0.0
    %590 = vmatprep.subr.mxu0 0.0
    %591 = vmatpush1.msra.mxu0 0.0
    %592 = vmatprep.subr.mxu0 0.0
    %593 = vmatpush1.msra.mxu0 0.0
    %594 = vmatprep.subr.mxu0 0.0
    %595 = vmatpush1.msra.mxu0 0.0
    %596 = vmatprep.subr.mxu0 0.0
    %597 = vmatpush1.msra.mxu0 0.0
    %598 = vmatprep.subr.mxu0 0.0
    %599 = vmatpush1.msra.mxu0 0.0
    %600 = vmatprep.subr.mxu0 0.0
    %601 = vmatpush1.msra.mxu0 0.0
    %602 = vmatprep.subr.mxu0 0.0
    %603 = vmatpush1.msra.mxu0 0.0
    %604 = vmatprep.subr.mxu0 0.0
    %605 = vmatpush1.msra.mxu0 0.0
    %606 = vmatprep.subr.mxu0 0.0
    %607 = vmatpush1.msra.mxu0 0.0
    %608 = vmatprep.subr.mxu0 0.0
    %609 = vmatpush1.msra.mxu0 0.0
    %610 = vmatprep.subr.mxu0 0.0
    %611 = vmatpush1.msra.mxu0 0.0
    %612 = vmatprep.subr.mxu0 0.0
    %613 = vmatpush1.msra.mxu0 0.0
    %614 = vmatprep.subr.mxu0 0.0
    %615 = vmatpush1.msra.mxu0 0.0
    %616 = vmatprep.subr.mxu0 0.0
    %617 = vmatpush1.msra.mxu0 0.0
    %618 = vmatprep.subr.mxu0 0.0
    %619 = vmatpush1.msra.mxu0 0.0
    %620 = vmatprep.subr.mxu0 0.0
    %621 = vmatpush1.msra.mxu0 0.0
    %622 = vmatprep.subr.mxu0 0.0
    %623 = vmatpush1.msra.mxu0 0.0
    %624 = vmatprep.subr.mxu0 0.0
    %625 = vmatpush1.msra.mxu0 0.0
    %626 = vmatprep.subr.mxu0 0.0
    %627 = vmatpush1.msra.mxu0 0.0
    %628 = vmatprep.subr.mxu0 0.0
    %629 = vmatpush1.msra.mxu0 0.0
    %630 = vmatprep.subr.mxu0 0.0
    %631 = vmatpush1.msra.mxu0 0.0
    %632 = vmatprep.subr.mxu0 0.0
    %633 = vmatpush1.msra.mxu0 0.0
    %634 = vmatprep.subr.mxu0 0.0
    %635 = vmatpush1.msra.mxu0 0.0
    %636 = vmatprep.subr.mxu0 0.0
    %637 = vmatpush1.msra.mxu0 0.0
    %638 = vmatprep.subr.mxu0 0.0
    %639 = vmatpush1.msra.mxu0 0.0
    %640 = vmatprep.subr.mxu0 0.0
    %641 = vmatpush1.msra.mxu0 0.0
    %642 = vmatprep.subr.mxu0 0.0
    %643 = vmatpush1.msra.mxu0 0.0
    %644 = vmatprep.subr.mxu0 0.0
    %645 = vmatpush1.msra.mxu0 0.0
    %646 = vmatprep.subr.mxu0 0.0
    %647 = vmatpush1.msra.mxu0 0.0
    %648 = vmatprep.mubr.f32.mxu0 0.0
    %649 = vmatmul.mubr.f32.gmra.mrb[0].mxu0 %v191
    %v650 = vpop.f32.mrb[0].mxu0
    %v651 = vadd.f32 0.0, %v650
    %v652 = vpop.f32.mrb[0].mxu0
    %653 = vmatprep.mubr.f32.mxu0 0.0
    %654 = vmatmul.mubr.f32.gmra.mrb[0].mxu0 %v194
    %v655 = vpop.f32.mrb[0].mxu0
    %v656 = vadd.f32 0.0, %v655
    %v657 = vpop.f32.mrb[0].mxu0
    %658 = vdwg.mxu0
    %659 = vmatprep.subr.mxu0 0.0
    %660 = vmatpush1.msra.mxu0 %v568
    %661 = vmatprep.subr.mxu0 0.0
    %662 = vmatpush1.msra.mxu0 %v574
    %663 = vmatprep.subr.mxu0 0.0
    %664 = vmatpush1.msra.mxu0 0.0
    %665 = vmatprep.subr.mxu0 0.0
    %666 = vmatpush1.msra.mxu0 0.0
    %667 = vmatprep.subr.mxu0 0.0
    %668 = vmatpush1.msra.mxu0 0.0
    %669 = vmatprep.subr.mxu0 0.0
    %670 = vmatpush1.msra.mxu0 0.0
    %671 = vmatprep.subr.mxu0 0.0
    %672 = vmatpush1.msra.mxu0 0.0
    %673 = vmatprep.subr.mxu0 0.0
    %674 = vmatpush1.msra.mxu0 0.0
    %675 = vmatprep.subr.mxu0 0.0
    %676 = vmatpush1.msra.mxu0 0.0
    %677 = vmatprep.subr.mxu0 0.0
    %678 = vmatpush1.msra.mxu0 0.0
    %679 = vmatprep.subr.mxu0 0.0
    %680 = vmatpush1.msra.mxu0 0.0
    %681 = vmatprep.subr.mxu0 0.0
    %682 = vmatpush1.msra.mxu0 0.0
    %683 = vmatprep.subr.mxu0 0.0
    %684 = vmatpush1.msra.mxu0 0.0
    %685 = vmatprep.subr.mxu0 0.0
    %686 = vmatpush1.msra.mxu0 0.0
    %687 = vmatprep.subr.mxu0 0.0
    %688 = vmatpush1.msra.mxu0 0.0
    %689 = vmatprep.subr.mxu0 0.0
    %690 = vmatpush1.msra.mxu0 0.0
    %691 = vmatprep.subr.mxu0 0.0
    %692 = vmatpush1.msra.mxu0 0.0
    %693 = vmatprep.subr.mxu0 0.0
    %694 = vmatpush1.msra.mxu0 0.0
    %695 = vmatprep.subr.mxu0 0.0
    %696 = vmatpush1.msra.mxu0 0.0
    %697 = vmatprep.subr.mxu0 0.0
    %698 = vmatpush1.msra.mxu0 0.0
    %699 = vmatprep.subr.mxu0 0.0
    %700 = vmatpush1.msra.mxu0 0.0
    %701 = vmatprep.subr.mxu0 0.0
    %702 = vmatpush1.msra.mxu0 0.0
    %703 = vmatprep.subr.mxu0 0.0
    %704 = vmatpush1.msra.mxu0 0.0
    %705 = vmatprep.subr.mxu0 0.0
    %706 = vmatpush1.msra.mxu0 0.0
    %707 = vmatprep.subr.mxu0 0.0
    %708 = vmatpush1.msra.mxu0 0.0
    %709 = vmatprep.subr.mxu0 0.0
    %710 = vmatpush1.msra.mxu0 0.0
    %711 = vmatprep.subr.mxu0 0.0
    %712 = vmatpush1.msra.mxu0 0.0
    %713 = vmatprep.subr.mxu0 0.0
    %714 = vmatpush1.msra.mxu0 0.0
    %715 = vmatprep.subr.mxu0 0.0
    %716 = vmatpush1.msra.mxu0 0.0
    %717 = vmatprep.subr.mxu0 0.0
    %718 = vmatpush1.msra.mxu0 0.0
    %719 = vmatprep.subr.mxu0 0.0
    %720 = vmatpush1.msra.mxu0 0.0
    %721 = vmatprep.subr.mxu0 0.0
    %722 = vmatpush1.msra.mxu0 0.0
    %723 = vmatprep.mubr.f32.mxu0 0.0
    %724 = vmatmul.mubr.f32.gmra.mrb[0].mxu0 %v272
    %v725 = vpop.f32.mrb[0].mxu0
    %v726 = vadd.f32 %v651, %v725
    %v727 = vpop.f32.mrb[0].mxu0
    %728 = vmatprep.mubr.f32.mxu0 0.0
    %729 = vmatmul.mubr.f32.gmra.mrb[0].mxu0 %v275
    %v730 = vpop.f32.mrb[0].mxu0
    %v731 = vadd.f32 %v656, %v730
    %v732 = vpop.f32.mrb[0].mxu0
    %733 = vdwg.mxu0
    %v735 = vsel %vm97, %v726, 0
    %v738 = vsel %vm97, %v731, 0
    %740 = vmatprep.subr.mxu0 0.0
    %741 = vmatpush1.msra.mxu0 %v68
    %742 = vmatprep.subr.mxu0 0.0
    %743 = vmatpush1.msra.mxu0 %v69
    %744 = vmatprep.subr.mxu0 0.0
    %745 = vmatpush1.msra.mxu0 %v70
    %746 = vmatprep.subr.mxu0 0.0
    %747 = vmatpush1.msra.mxu0 %v71
    %748 = vmatprep.subr.mxu0 0.0
    %749 = vmatpush1.msra.mxu0 0.0
    %750 = vmatprep.subr.mxu0 0.0
    %751 = vmatpush1.msra.mxu0 0.0
    %752 = vmatprep.subr.mxu0 0.0
    %753 = vmatpush1.msra.mxu0 0.0
    %754 = vmatprep.subr.mxu0 0.0
    %755 = vmatpush1.msra.mxu0 0.0
    %756 = vmatprep.subr.mxu0 0.0
    %757 = vmatpush1.msra.mxu0 0.0
    %758 = vmatprep.subr.mxu0 0.0
    %759 = vmatpush1.msra.mxu0 0.0
    %760 = vmatprep.subr.mxu0 0.0
    %761 = vmatpush1.msra.mxu0 0.0
    %762 = vmatprep.subr.mxu0 0.0
    %763 = vmatpush1.msra.mxu0 0.0
    %764 = vmatprep.subr.mxu0 0.0
    %765 = vmatpush1.msra.mxu0 0.0
    %766 = vmatprep.subr.mxu0 0.0
    %767 = vmatpush1.msra.mxu0 0.0
    %768 = vmatprep.subr.mxu0 0.0
    %769 = vmatpush1.msra.mxu0 0.0
    %770 = vmatprep.subr.mxu0 0.0
    %771 = vmatpush1.msra.mxu0 0.0
    %772 = vmatprep.subr.mxu0 0.0
    %773 = vmatpush1.msra.mxu0 0.0
    %774 = vmatprep.subr.mxu0 0.0
    %775 = vmatpush1.msra.mxu0 0.0
    %776 = vmatprep.subr.mxu0 0.0
    %777 = vmatpush1.msra.mxu0 0.0
    %778 = vmatprep.subr.mxu0 0.0
    %779 = vmatpush1.msra.mxu0 0.0
    %780 = vmatprep.subr.mxu0 0.0
    %781 = vmatpush1.msra.mxu0 0.0
    %782 = vmatprep.subr.mxu0 0.0
    %783 = vmatpush1.msra.mxu0 0.0
    %784 = vmatprep.subr.mxu0 0.0
    %785 = vmatpush1.msra.mxu0 0.0
    %786 = vmatprep.subr.mxu0 0.0
    %787 = vmatpush1.msra.mxu0 0.0
    %788 = vmatprep.subr.mxu0 0.0
    %789 = vmatpush1.msra.mxu0 0.0
    %790 = vmatprep.subr.mxu0 0.0
    %791 = vmatpush1.msra.mxu0 0.0
    %792 = vmatprep.subr.mxu0 0.0
    %793 = vmatpush1.msra.mxu0 0.0
    %794 = vmatprep.subr.mxu0 0.0
    %795 = vmatpush1.msra.mxu0 0.0
    %796 = vmatprep.subr.mxu0 0.0
    %797 = vmatpush1.msra.mxu0 0.0
    %798 = vmatprep.subr.mxu0 0.0
    %799 = vmatpush1.msra.mxu0 0.0
    %800 = vmatprep.subr.mxu0 0.0
    %801 = vmatpush1.msra.mxu0 0.0
    %802 = vmatprep.subr.mxu0 0.0
    %803 = vmatpush1.msra.mxu0 0.0
    %804 = vmatprep.mubr.f32.mxu0 0.0
    %805 = vmatmul.mubr.f32.gmra.mrb[0].mxu0 %v735
    %v806 = vpop.f32.mrb[0].mxu0
    %v807 = vadd.f32 %v566, %v806
    %v808 = vpop.f32.mrb[0].mxu0
    %809 = vmatprep.mubr.f32.mxu0 0.0
    %810 = vmatmul.mubr.f32.gmra.mrb[0].mxu0 %v738
    %v811 = vpop.f32.mrb[0].mxu0
    %v812 = vadd.f32 %v572, %v811
    %v813 = vpop.f32.mrb[0].mxu0
    %814 = vdwg.mxu0
    %v815 = vxor.u32 %v807, 2147483648
    %v816 = vxor.u32 %v812, 2147483648
    %v817 = vmul.f32 %v815, 1.442695
    %v818 = vpow.pop %v817
    %v819 = vmul.f32 %v816, 1.442695
    %v820 = vpow.pop %v819
    %v821 = vadd.f32 %v818, 1.0
    %v822 = vadd.f32 %v820, 1.0
    %v823 = vrcp.pop %v821
    %v824 = vmul.f32 1.0, %v823
    %v825 = vrcp.pop %v822
    %v826 = vmul.f32 1.0, %v825
    %829 = vrot.lane.b32.xlu0 %v807, 32
    %v830 = vpop.permute.xlu0 %829
    %831 = vrot.lane.b32.xlu0 %v812, 32
    %v832 = vpop.permute.xlu0 %831
    %v835 = vmul.f32 %v824, %v830
    %v836 = vmul.f32 %v826, %v832
    %839 = vrot.lane.b32.xlu0 %v835, 64
    %v840 = vpop.permute.xlu0 %839
    %841 = vrot.lane.b32.xlu0 %v836, 64
    %v842 = vpop.permute.xlu0 %841
    %v845 = vadd.f32 %v807, %v840
    %v846 = vadd.f32 %v812, %v842
    %v847 = vtanh.pop %v845
    %v848 = vtanh.pop %v846
    %v849 = vsub.f32 1.0, %v824
    %v850 = vsub.f32 1.0, %v826
    %853 = vrot.lane.b32.xlu0 %v847, 96
    %v854 = vpop.permute.xlu0 %853
    %855 = vrot.lane.b32.xlu0 %v848, 96
    %v856 = vpop.permute.xlu0 %855
    %v859 = vmul.f32 %v849, %v854
    %v860 = vmul.f32 %v850, %v856
    %v861 = vmul.f32 %v824, %v487
    %v862 = vmul.f32 %v826, %v488
    %v863 = vadd.f32 %v859, %v861
    %v864 = vadd.f32 %v860, %v862
    %865 = vmatprep.subr.mxu0 0.0
    %866 = vmatpush1.msra.mxu0 %v76
    %867 = vmatprep.subr.mxu0 0.0
    %868 = vmatpush1.msra.mxu0 %v77
    %869 = vmatprep.subr.mxu0 0.0
    %870 = vmatpush1.msra.mxu0 %v78
    %871 = vmatprep.subr.mxu0 0.0
    %872 = vmatpush1.msra.mxu0 %v79
    %873 = vmatprep.subr.mxu0 0.0
    %874 = vmatpush1.msra.mxu0 0.0
    %875 = vmatprep.subr.mxu0 0.0
    %876 = vmatpush1.msra.mxu0 0.0
    %877 = vmatprep.subr.mxu0 0.0
    %878 = vmatpush1.msra.mxu0 0.0
    %879 = vmatprep.subr.mxu0 0.0
    %880 = vmatpush1.msra.mxu0 0.0
    %881 = vmatprep.subr.mxu0 0.0
    %882 = vmatpush1.msra.mxu0 0.0
    %883 = vmatprep.subr.mxu0 0.0
    %884 = vmatpush1.msra.mxu0 0.0
    %885 = vmatprep.subr.mxu0 0.0
    %886 = vmatpush1.msra.mxu0 0.0
    %887 = vmatprep.subr.mxu0 0.0
    %888 = vmatpush1.msra.mxu0 0.0
    %889 = vmatprep.subr.mxu0 0.0
    %890 = vmatpush1.msra.mxu0 0.0
    %891 = vmatprep.subr.mxu0 0.0
    %892 = vmatpush1.msra.mxu0 0.0
    %893 = vmatprep.subr.mxu0 0.0
    %894 = vmatpush1.msra.mxu0 0.0
    %895 = vmatprep.subr.mxu0 0.0
    %896 = vmatpush1.msra.mxu0 0.0
    %897 = vmatprep.subr.mxu0 0.0
    %898 = vmatpush1.msra.mxu0 0.0
    %899 = vmatprep.subr.mxu0 0.0
    %900 = vmatpush1.msra.mxu0 0.0
    %901 = vmatprep.subr.mxu0 0.0
    %902 = vmatpush1.msra.mxu0 0.0
    %903 = vmatprep.subr.mxu0 0.0
    %904 = vmatpush1.msra.mxu0 0.0
    %905 = vmatprep.subr.mxu0 0.0
    %906 = vmatpush1.msra.mxu0 0.0
    %907 = vmatprep.subr.mxu0 0.0
    %908 = vmatpush1.msra.mxu0 0.0
    %909 = vmatprep.subr.mxu0 0.0
    %910 = vmatpush1.msra.mxu0 0.0
    %911 = vmatprep.subr.mxu0 0.0
    %912 = vmatpush1.msra.mxu0 0.0
    %913 = vmatprep.subr.mxu0 0.0
    %914 = vmatpush1.msra.mxu0 0.0
    %915 = vmatprep.subr.mxu0 0.0
    %916 = vmatpush1.msra.mxu0 0.0
    %917 = vmatprep.subr.mxu0 0.0
    %918 = vmatpush1.msra.mxu0 0.0
    %919 = vmatprep.subr.mxu0 0.0
    %920 = vmatpush1.msra.mxu0 0.0
    %921 = vmatprep.subr.mxu0 0.0
    %922 = vmatpush1.msra.mxu0 0.0
    %923 = vmatprep.subr.mxu0 0.0
    %924 = vmatpush1.msra.mxu0 0.0
    %925 = vmatprep.subr.mxu0 0.0
    %926 = vmatpush1.msra.mxu0 0.0
    %927 = vmatprep.subr.mxu0 0.0
    %928 = vmatpush1.msra.mxu0 0.0
    %929 = vmatprep.mubr.f32.mxu0 0.0
    %930 = vmatmul.mubr.f32.gmra.mrb[0].mxu0 %v99
    %v931 = vpop.f32.mrb[0].mxu0
    %v932 = vadd.f32 0.0, %v931
    %v933 = vpop.f32.mrb[0].mxu0
    %934 = vmatprep.mubr.f32.mxu0 0.0
    %935 = vmatmul.mubr.f32.gmra.mrb[0].mxu0 %v102
    %v936 = vpop.f32.mrb[0].mxu0
    %v937 = vadd.f32 0.0, %v936
    %v938 = vpop.f32.mrb[0].mxu0
    %939 = vdwg.mxu0
    %942 = vrot.lane.b32.xlu0 %v863, 96
    %v943 = vpop.permute.xlu0 %942
    %944 = vrot.lane.b32.xlu0 %v864, 96
    %v945 = vpop.permute.xlu0 %944
    %v946 = vsel %vm97, %v943, 0
    %v948 = vsel %vm97, %v945, 0
    %950 = vmatprep.subr.mxu0 0.0
    %951 = vmatpush1.msra.mxu0 %v72
    %952 = vmatprep.subr.mxu0 0.0
    %953 = vmatpush1.msra.mxu0 %v73
    %954 = vmatprep.subr.mxu0 0.0
    %955 = vmatpush1.msra.mxu0 %v74
    %956 = vmatprep.subr.mxu0 0.0
    %957 = vmatpush1.msra.mxu0 %v75
    %958 = vmatprep.subr.mxu0 0.0
    %959 = vmatpush1.msra.mxu0 0.0
    %960 = vmatprep.subr.mxu0 0.0
    %961 = vmatpush1.msra.mxu0 0.0
    %962 = vmatprep.subr.mxu0 0.0
    %963 = vmatpush1.msra.mxu0 0.0
    %964 = vmatprep.subr.mxu0 0.0
    %965 = vmatpush1.msra.mxu0 0.0
    %966 = vmatprep.subr.mxu0 0.0
    %967 = vmatpush1.msra.mxu0 0.0
    %968 = vmatprep.subr.mxu0 0.0
    %969 = vmatpush1.msra.mxu0 0.0
    %970 = vmatprep.subr.mxu0 0.0
    %971 = vmatpush1.msra.mxu0 0.0
    %972 = vmatprep.subr.mxu0 0.0
    %973 = vmatpush1.msra.mxu0 0.0
    %974 = vmatprep.subr.mxu0 0.0
    %975 = vmatpush1.msra.mxu0 0.0
    %976 = vmatprep.subr.mxu0 0.0
    %977 = vmatpush1.msra.mxu0 0.0
    %978 = vmatprep.subr.mxu0 0.0
    %979 = vmatpush1.msra.mxu0 0.0
    %980 = vmatprep.subr.mxu0 0.0
    %981 = vmatpush1.msra.mxu0 0.0
    %982 = vmatprep.subr.mxu0 0.0
    %983 = vmatpush1.msra.mxu0 0.0
    %984 = vmatprep.subr.mxu0 0.0
    %985 = vmatpush1.msra.mxu0 0.0
    %986 = vmatprep.subr.mxu0 0.0
    %987 = vmatpush1.msra.mxu0 0.0
    %988 = vmatprep.subr.mxu0 0.0
    %989 = vmatpush1.msra.mxu0 0.0
    %990 = vmatprep.subr.mxu0 0.0
    %991 = vmatpush1.msra.mxu0 0.0
    %992 = vmatprep.subr.mxu0 0.0
    %993 = vmatpush1.msra.mxu0 0.0
    %994 = vmatprep.subr.mxu0 0.0
    %995 = vmatpush1.msra.mxu0 0.0
    %996 = vmatprep.subr.mxu0 0.0
    %997 = vmatpush1.msra.mxu0 0.0
    %998 = vmatprep.subr.mxu0 0.0
    %999 = vmatpush1.msra.mxu0 0.0
    %1000 = vmatprep.subr.mxu0 0.0
    %1001 = vmatpush1.msra.mxu0 0.0
    %1002 = vmatprep.subr.mxu0 0.0
    %1003 = vmatpush1.msra.mxu0 0.0
    %1004 = vmatprep.subr.mxu0 0.0
    %1005 = vmatpush1.msra.mxu0 0.0
    %1006 = vmatprep.subr.mxu0 0.0
    %1007 = vmatpush1.msra.mxu0 0.0
    %1008 = vmatprep.subr.mxu0 0.0
    %1009 = vmatpush1.msra.mxu0 0.0
    %1010 = vmatprep.subr.mxu0 0.0
    %1011 = vmatpush1.msra.mxu0 0.0
    %1012 = vmatprep.subr.mxu0 0.0
    %1013 = vmatpush1.msra.mxu0 0.0
    %1014 = vmatprep.mubr.f32.mxu0 0.0
    %1015 = vmatmul.mubr.f32.gmra.mrb[0].mxu0 %v946
    %v1016 = vpop.f32.mrb[0].mxu0
    %v1017 = vadd.f32 %v932, %v1016
    %v1018 = vpop.f32.mrb[0].mxu0
    %1019 = vmatprep.mubr.f32.mxu0 0.0
    %1020 = vmatmul.mubr.f32.gmra.mrb[0].mxu0 %v948
    %v1021 = vpop.f32.mrb[0].mxu0
    %v1022 = vadd.f32 %v937, %v1021
    %v1023 = vpop.f32.mrb[0].mxu0
    %1024 = vdwg.mxu0
    %v1025 = vadd.f32 %v1017, %v93
    %v1026 = vadd.f32 %v1022, %v93
    %v1027 = vsel %vm97, %v1025, -inf
    %1028 = vmax.xlane.f32.xlu0 %v1027
    %v1029 = vpop.xlane.xlu0 %1028
    %v1030 = vsel %vm97, %v1026, -inf
    %1031 = vmax.xlane.f32.xlu0 %v1030
    %v1032 = vpop.xlane.xlu0 %1031
    %v1033 = vsub.f32 %v1025, %v1029
    %v1034 = vsub.f32 %v1026, %v1032
    %v1035 = vmul.f32 %v1033, 1.442695
    %v1036 = vpow.pop %v1035
    %v1037 = vmul.f32 %v1034, 1.442695
    %v1038 = vpow.pop %v1037
    %v1039 = vsel %vm97, %v1036, 0.0
    %1040 = vadd.xlane.f32.xlu0 %v1039
    %v1041 = vpop.xlane.xlu0 %1040
    %v1042 = vsel %vm97, %v1038, 0.0
    %1043 = vadd.xlane.f32.xlu0 %v1042
    %v1044 = vpop.xlane.xlu0 %1043
    %v1045 = vrcp.pop %v1041
    %v1046 = vmul.f32 %v1036, %v1045
    %v1047 = vrcp.pop %v1044
    %v1048 = vmul.f32 %v1038, %v1047
    %vm1049 = vcmask 269568
    %v1050 = vsel %vm1049, %v1025, -inf
    %v1051 = vsel %vm1049, %v1026, -inf
    %v1052 = vmax.f32 %v1050, %v1051
    %v1053 = vrot.slane %v1052, 4
    %v1054 = vmax.f32 %v1052, %v1053
    %v1055 = vrot.slane %v1054, 2
    %v1056 = vmax.f32 %v1054, %v1055
    %v1057 = vrot.slane %v1056, 1
    %v1058 = vmax.f32 %v1056, %v1057
    %v1059 = vsub.f32 %v1025, %v1058
    %v1060 = vsub.f32 %v1026, %v1058
    %v1061 = vmul.f32 %v1059, 1.442695
    %v1062 = vpow.pop %v1061
    %v1063 = vmul.f32 %v1060, 1.442695
    %v1064 = vpow.pop %v1063
    %1067 = vrot.lane.b32.xlu0 %v1062, 96
    %v1068 = vpop.permute.xlu0 %1067
    %1069 = vrot.lane.b32.xlu0 %v1064, 96
    %v1070 = vpop.permute.xlu0 %1069
    %1073 = vxpose.xlu0.b32.start [1/16] %v1068, 128
    %1074 = vxpose.xlu0.b32.cont [2/16] %v1070, 128
    %1075 = vxpose.xlu0.b32.cont [3/16] 0.0, 128
    %1076 = vxpose.xlu0.b32.cont [4/16] 0.0, 128
    %1077 = vxpose.xlu0.b32.cont [5/16] 0.0, 128
    %1078 = vxpose.xlu0.b32.cont [6/16] 0.0, 128
    %1079 = vxpose.xlu0.b32.cont [7/16] 0.0, 128
    %1080 = vxpose.xlu0.b32.cont [8/16] 0.0, 128
    %1081 = vxpose.xlu0.b32.cont [9/16] 0.0, 128
    %1082 = vxpose.xlu0.b32.cont [10/16] 0.0, 128
    %1083 = vxpose.xlu0.b32.cont [11/16] 0.0, 128
    %1084 = vxpose.xlu0.b32.cont [12/16] 0.0, 128
    %1085 = vxpose.xlu0.b32.cont [13/16] 0.0, 128
    %1086 = vxpose.xlu0.b32.cont [14/16] 0.0, 128
    %1087 = vxpose.xlu0.b32.cont [15/16] 0.0, 128
    %1088 = vxpose.xlu0.b32.end [16/16] 0.0, 128
    %v1089 = vpop.trf.xlu0
    %v1090 = vpop.trf.xlu0
    %v1091 = vpop.trf.xlu0
    %v1092 = vpop.trf.xlu0
    %v1093 = vpop.trf.xlu0
    %v1094 = vpop.trf.xlu0
    %v1095 = vpop.trf.xlu0
    %v1096 = vpop.trf.xlu0
    %v1097 = vpop.trf.xlu0
    %v1098 = vpop.trf.xlu0
    %v1099 = vpop.trf.xlu0
    %v1100 = vpop.trf.xlu0
    %v1101 = vpop.trf.xlu0
    %v1102 = vpop.trf.xlu0
    %v1103 = vpop.trf.xlu0
    %v1104 = vpop.trf.xlu0
    %v1106 = vsel %vm189, %v1089, 0
    %1108 = vmatprep.subr.mxu0 0.0
    %1109 = vmatpush1.msra.mxu0 %v1025
    %1110 = vmatprep.subr.mxu0 0.0
    %1111 = vmatpush1.msra.mxu0 %v1026
    %1112 = vmatprep.subr.mxu0 0.0
    %1113 = vmatpush1.msra.mxu0 0.0
    %1114 = vmatprep.subr.mxu0 0.0
    %1115 = vmatpush1.msra.mxu0 0.0
    %1116 = vmatprep.subr.mxu0 0.0
    %1117 = vmatpush1.msra.mxu0 0.0
    %1118 = vmatprep.subr.mxu0 0.0
    %1119 = vmatpush1.msra.mxu0 0.0
    %1120 = vmatprep.subr.mxu0 0.0
    %1121 = vmatpush1.msra.mxu0 0.0
    %1122 = vmatprep.subr.mxu0 0.0
    %1123 = vmatpush1.msra.mxu0 0.0
    %1124 = vmatprep.subr.mxu0 0.0
    %1125 = vmatpush1.msra.mxu0 0.0
    %1126 = vmatprep.subr.mxu0 0.0
    %1127 = vmatpush1.msra.mxu0 0.0
    %1128 = vmatprep.subr.mxu0 0.0
    %1129 = vmatpush1.msra.mxu0 0.0
    %1130 = vmatprep.subr.mxu0 0.0
    %1131 = vmatpush1.msra.mxu0 0.0
    %1132 = vmatprep.subr.mxu0 0.0
    %1133 = vmatpush1.msra.mxu0 0.0
    %1134 = vmatprep.subr.mxu0 0.0
    %1135 = vmatpush1.msra.mxu0 0.0
    %1136 = vmatprep.subr.mxu0 0.0
    %1137 = vmatpush1.msra.mxu0 0.0
    %1138 = vmatprep.subr.mxu0 0.0
    %1139 = vmatpush1.msra.mxu0 0.0
    %1140 = vmatprep.subr.mxu0 0.0
    %1141 = vmatpush1.msra.mxu0 0.0
    %1142 = vmatprep.subr.mxu0 0.0
    %1143 = vmatpush1.msra.mxu0 0.0
    %1144 = vmatprep.subr.mxu0 0.0
    %1145 = vmatpush1.msra.mxu0 0.0
    %1146 = vmatprep.subr.mxu0 0.0
    %1147 = vmatpush1.msra.mxu0 0.0
    %1148 = vmatprep.subr.mxu0 0.0
    %1149 = vmatpush1.msra.mxu0 0.0
    %1150 = vmatprep.subr.mxu0 0.0
    %1151 = vmatpush1.msra.mxu0 0.0
    %1152 = vmatprep.subr.mxu0 0.0
    %1153 = vmatpush1.msra.mxu0 0.0
    %1154 = vmatprep.subr.mxu0 0.0
    %1155 = vmatpush1.msra.mxu0 0.0
    %1156 = vmatprep.subr.mxu0 0.0
    %1157 = vmatpush1.msra.mxu0 0.0
    %1158 = vmatprep.subr.mxu0 0.0
    %1159 = vmatpush1.msra.mxu0 0.0
    %1160 = vmatprep.subr.mxu0 0.0
    %1161 = vmatpush1.msra.mxu0 0.0
    %1162 = vmatprep.subr.mxu0 0.0
    %1163 = vmatpush1.msra.mxu0 0.0
    %1164 = vmatprep.subr.mxu0 0.0
    %1165 = vmatpush1.msra.mxu0 0.0
    %1166 = vmatprep.subr.mxu0 0.0
    %1167 = vmatpush1.msra.mxu0 0.0
    %1168 = vmatprep.subr.mxu0 0.0
    %1169 = vmatpush1.msra.mxu0 0.0
    %1170 = vmatprep.subr.mxu0 0.0
    %1171 = vmatpush1.msra.mxu0 0.0
    %1172 = vmatprep.mubr.f32.mxu0 0.0
    %1173 = vmatmul.mubr.f32.gmra.mrb[0].mxu0 %v1106
    %v1174 = vpop.f32.mrb[0].mxu0
    %v1175 = vadd.f32 0.0, %v1174
    %v1176 = vpop.f32.mrb[0].mxu0
    %1177 = vdwg.mxu0
    %1179 = vset.pattern.permute.xlu0 41
    %1180 = vperm.xlu0 %1179, %v1175
    %v1181 = vpop.permute.xlu0 %1180
    %v1183 = vrcp.pop %v1181
    %v1184 = vmul.f32 %v1175, %v1183
    %1186 = vrot.lane.b32.xlu0 %v94, 33
    %v1187 = vpop.permute.xlu0 %1186
    %v1189 = vadd.f32 %v1184, %v1187
    %v1191 = vsel %vm97, %v1046, 0
    %v1194 = vsel %vm97, %v1048, 0
    %1196 = vmatprep.subr.mxu0 %v61
    %1197 = vmatpush1.msra.mxu0 %v60
    %1198 = vmatprep.subr.mxu0 %v63
    %1199 = vmatpush1.msra.mxu0 %v62
    %1200 = vmatprep.subr.mxu0 %v65
    %1201 = vmatpush1.msra.mxu0 %v64
    %1202 = vmatprep.subr.mxu0 %v67
    %1203 = vmatpush1.msra.mxu0 %v66
    %1204 = vmatprep.subr.mxu0 0.0
    %1205 = vmatpush1.msra.mxu0 0.0
    %1206 = vmatprep.subr.mxu0 0.0
    %1207 = vmatpush1.msra.mxu0 0.0
    %1208 = vmatprep.subr.mxu0 0.0
    %1209 = vmatpush1.msra.mxu0 0.0
    %1210 = vmatprep.subr.mxu0 0.0
    %1211 = vmatpush1.msra.mxu0 0.0
    %1212 = vmatprep.subr.mxu0 0.0
    %1213 = vmatpush1.msra.mxu0 0.0
    %1214 = vmatprep.subr.mxu0 0.0
    %1215 = vmatpush1.msra.mxu0 0.0
    %1216 = vmatprep.subr.mxu0 0.0
    %1217 = vmatpush1.msra.mxu0 0.0
    %1218 = vmatprep.subr.mxu0 0.0
    %1219 = vmatpush1.msra.mxu0 0.0
    %1220 = vmatprep.subr.mxu0 0.0
    %1221 = vmatpush1.msra.mxu0 0.0
    %1222 = vmatprep.subr.mxu0 0.0
    %1223 = vmatpush1.msra.mxu0 0.0
    %1224 = vmatprep.subr.mxu0 0.0
    %1225 = vmatpush1.msra.mxu0 0.0
    %1226 = vmatprep.subr.mxu0 0.0
    %1227 = vmatpush1.msra.mxu0 0.0
    %1228 = vmatprep.subr.mxu0 0.0
    %1229 = vmatpush1.msra.mxu0 0.0
    %1230 = vmatprep.subr.mxu0 0.0
    %1231 = vmatpush1.msra.mxu0 0.0
    %1232 = vmatprep.subr.mxu0 0.0
    %1233 = vmatpush1.msra.mxu0 0.0
    %1234 = vmatprep.subr.mxu0 0.0
    %1235 = vmatpush1.msra.mxu0 0.0
    %1236 = vmatprep.subr.mxu0 0.0
    %1237 = vmatpush1.msra.mxu0 0.0
    %1238 = vmatprep.subr.mxu0 0.0
    %1239 = vmatpush1.msra.mxu0 0.0
    %1240 = vmatprep.subr.mxu0 0.0
    %1241 = vmatpush1.msra.mxu0 0.0
    %1242 = vmatprep.subr.mxu0 0.0
    %1243 = vmatpush1.msra.mxu0 0.0
    %1244 = vmatprep.subr.mxu0 0.0
    %1245 = vmatpush1.msra.mxu0 0.0
    %1246 = vmatprep.subr.mxu0 0.0
    %1247 = vmatpush1.msra.mxu0 0.0
    %1248 = vmatprep.subr.mxu0 0.0
    %1249 = vmatpush1.msra.mxu0 0.0
    %1250 = vmatprep.subr.mxu0 0.0
    %1251 = vmatpush1.msra.mxu0 0.0
    %1252 = vmatprep.subr.mxu0 0.0
    %1253 = vmatpush1.msra.mxu0 0.0
    %1254 = vmatprep.subr.mxu0 0.0
    %1255 = vmatpush1.msra.mxu0 0.0
    %1256 = vmatprep.subr.mxu0 0.0
    %1257 = vmatpush1.msra.mxu0 0.0
    %1258 = vmatprep.subr.mxu0 0.0
    %1259 = vmatpush1.msra.mxu0 0.0
    %1260 = vmatprep.mubr.f32.mxu0 0.0
    %1261 = vmatmul.mubr.f32.gmra.mrb[0].mxu0 %v1191
    %v1262 = vpop.f32.mrb[0].mxu0
    %v1263 = vadd.f32 %v86, %v1262
    %v1264 = vpop.f32.mrb[0].mxu0
    %v1265 = vadd.f32 %v90, %v1264
    %1266 = vmatprep.mubr.f32.mxu0 0.0
    %1267 = vmatmul.mubr.f32.gmra.mrb[0].mxu0 %v1194
    %v1268 = vpop.f32.mrb[0].mxu0
    %v1269 = vadd.f32 %v86, %v1268
    %v1270 = vpop.f32.mrb[0].mxu0
    %v1271 = vadd.f32 %v90, %v1270
    %1272 = vdwg.mxu0
    %1275 = vrot.lane.b32.xlu0 %v1265, 96
    %v1276 = vpop.permute.xlu0 %1275
    %1277 = vrot.lane.b32.xlu0 %v1271, 96
    %v1278 = vpop.permute.xlu0 %1277
    %1281 = vmatprep.subr.mxu0 0.0
    %1282 = vmatpush1.msra.mxu0 %v1276
    %1283 = vmatprep.subr.mxu0 0.0
    %1284 = vmatpush1.msra.mxu0 %v1278
    %1285 = vmatprep.subr.mxu0 0.0
    %1286 = vmatpush1.msra.mxu0 0.0
    %1287 = vmatprep.subr.mxu0 0.0
    %1288 = vmatpush1.msra.mxu0 0.0
    %1289 = vmatprep.subr.mxu0 0.0
    %1290 = vmatpush1.msra.mxu0 0.0
    %1291 = vmatprep.subr.mxu0 0.0
    %1292 = vmatpush1.msra.mxu0 0.0
    %1293 = vmatprep.subr.mxu0 0.0
    %1294 = vmatpush1.msra.mxu0 0.0
    %1295 = vmatprep.subr.mxu0 0.0
    %1296 = vmatpush1.msra.mxu0 0.0
    %1297 = vmatprep.subr.mxu0 0.0
    %1298 = vmatpush1.msra.mxu0 0.0
    %1299 = vmatprep.subr.mxu0 0.0
    %1300 = vmatpush1.msra.mxu0 0.0
    %1301 = vmatprep.subr.mxu0 0.0
    %1302 = vmatpush1.msra.mxu0 0.0
    %1303 = vmatprep.subr.mxu0 0.0
    %1304 = vmatpush1.msra.mxu0 0.0
    %1305 = vmatprep.subr.mxu0 0.0
    %1306 = vmatpush1.msra.mxu0 0.0
    %1307 = vmatprep.subr.mxu0 0.0
    %1308 = vmatpush1.msra.mxu0 0.0
    %1309 = vmatprep.subr.mxu0 0.0
    %1310 = vmatpush1.msra.mxu0 0.0
    %1311 = vmatprep.subr.mxu0 0.0
    %1312 = vmatpush1.msra.mxu0 0.0
    %1313 = vmatprep.subr.mxu0 0.0
    %1314 = vmatpush1.msra.mxu0 0.0
    %1315 = vmatprep.subr.mxu0 0.0
    %1316 = vmatpush1.msra.mxu0 0.0
    %1317 = vmatprep.subr.mxu0 0.0
    %1318 = vmatpush1.msra.mxu0 0.0
    %1319 = vmatprep.subr.mxu0 0.0
    %1320 = vmatpush1.msra.mxu0 0.0
    %1321 = vmatprep.subr.mxu0 0.0
    %1322 = vmatpush1.msra.mxu0 0.0
    %1323 = vmatprep.subr.mxu0 0.0
    %1324 = vmatpush1.msra.mxu0 0.0
    %1325 = vmatprep.subr.mxu0 0.0
    %1326 = vmatpush1.msra.mxu0 0.0
    %1327 = vmatprep.subr.mxu0 0.0
    %1328 = vmatpush1.msra.mxu0 0.0
    %1329 = vmatprep.subr.mxu0 0.0
    %1330 = vmatpush1.msra.mxu0 0.0
    %1331 = vmatprep.subr.mxu0 0.0
    %1332 = vmatpush1.msra.mxu0 0.0
    %1333 = vmatprep.subr.mxu0 0.0
    %1334 = vmatpush1.msra.mxu0 0.0
    %1335 = vmatprep.subr.mxu0 0.0
    %1336 = vmatpush1.msra.mxu0 0.0
    %1337 = vmatprep.subr.mxu0 0.0
    %1338 = vmatpush1.msra.mxu0 0.0
    %1339 = vmatprep.subr.mxu0 0.0
    %1340 = vmatpush1.msra.mxu0 0.0
    %1341 = vmatprep.subr.mxu0 0.0
    %1342 = vmatpush1.msra.mxu0 0.0
    %1343 = vmatprep.subr.mxu0 0.0
    %1344 = vmatpush1.msra.mxu0 0.0
    %1345 = vmatprep.mubr.f32.mxu0 0.0
    %1346 = vmatmul.mubr.f32.gmra.mrb[0].mxu0 %v191
    %v1347 = vpop.f32.mrb[0].mxu0
    %v1348 = vadd.f32 0.0, %v1347
    %v1349 = vpop.f32.mrb[0].mxu0
    %1350 = vmatprep.mubr.f32.mxu0 0.0
    %1351 = vmatmul.mubr.f32.gmra.mrb[0].mxu0 %v194
    %v1352 = vpop.f32.mrb[0].mxu0
    %v1353 = vadd.f32 0.0, %v1352
    %v1354 = vpop.f32.mrb[0].mxu0
    %1355 = vdwg.mxu0
    %1356 = vmatprep.subr.mxu0 0.0
    %1357 = vmatpush1.msra.mxu0 %v1265
    %1358 = vmatprep.subr.mxu0 0.0
    %1359 = vmatpush1.msra.mxu0 %v1271
    %1360 = vmatprep.subr.mxu0 0.0
    %1361 = vmatpush1.msra.mxu0 0.0
    %1362 = vmatprep.subr.mxu0 0.0
    %1363 = vmatpush1.msra.mxu0 0.0
    %1364 = vmatprep.subr.mxu0 0.0
    %1365 = vmatpush1.msra.mxu0 0.0
    %1366 = vmatprep.subr.mxu0 0.0
    %1367 = vmatpush1.msra.mxu0 0.0
    %1368 = vmatprep.subr.mxu0 0.0
    %1369 = vmatpush1.msra.mxu0 0.0
    %1370 = vmatprep.subr.mxu0 0.0
    %1371 = vmatpush1.msra.mxu0 0.0
    %1372 = vmatprep.subr.mxu0 0.0
    %1373 = vmatpush1.msra.mxu0 0.0
    %1374 = vmatprep.subr.mxu0 0.0
    %1375 = vmatpush1.msra.mxu0 0.0
    %1376 = vmatprep.subr.mxu0 0.0
    %1377 = vmatpush1.msra.mxu0 0.0
    %1378 = vmatprep.subr.mxu0 0.0
    %1379 = vmatpush1.msra.mxu0 0.0
    %1380 = vmatprep.subr.mxu0 0.0
    %1381 = vmatpush1.msra.mxu0 0.0
    %1382 = vmatprep.subr.mxu0 0.0
    %1383 = vmatpush1.msra.mxu0 0.0
    %1384 = vmatprep.subr.mxu0 0.0
    %1385 = vmatpush1.msra.mxu0 0.0
    %1386 = vmatprep.subr.mxu0 0.0
    %1387 = vmatpush1.msra.mxu0 0.0
    %1388 = vmatprep.subr.mxu0 0.0
    %1389 = vmatpush1.msra.mxu0 0.0
    %1390 = vmatprep.subr.mxu0 0.0
    %1391 = vmatpush1.msra.mxu0 0.0
    %1392 = vmatprep.subr.mxu0 0.0
    %1393 = vmatpush1.msra.mxu0 0.0
    %1394 = vmatprep.subr.mxu0 0.0
    %1395 = vmatpush1.msra.mxu0 0.0
    %1396 = vmatprep.subr.mxu0 0.0
    %1397 = vmatpush1.msra.mxu0 0.0
    %1398 = vmatprep.subr.mxu0 0.0
    %1399 = vmatpush1.msra.mxu0 0.0
    %1400 = vmatprep.subr.mxu0 0.0
    %1401 = vmatpush1.msra.mxu0 0.0
    %1402 = vmatprep.subr.mxu0 0.0
    %1403 = vmatpush1.msra.mxu0 0.0
    %1404 = vmatprep.subr.mxu0 0.0
    %1405 = vmatpush1.msra.mxu0 0.0
    %1406 = vmatprep.subr.mxu0 0.0
    %1407 = vmatpush1.msra.mxu0 0.0
    %1408 = vmatprep.subr.mxu0 0.0
    %1409 = vmatpush1.msra.mxu0 0.0
    %1410 = vmatprep.subr.mxu0 0.0
    %1411 = vmatpush1.msra.mxu0 0.0
    %1412 = vmatprep.subr.mxu0 0.0
    %1413 = vmatpush1.msra.mxu0 0.0
    %1414 = vmatprep.subr.mxu0 0.0
    %1415 = vmatpush1.msra.mxu0 0.0
    %1416 = vmatprep.subr.mxu0 0.0
    %1417 = vmatpush1.msra.mxu0 0.0
    %1418 = vmatprep.subr.mxu0 0.0
    %1419 = vmatpush1.msra.mxu0 0.0
    %1420 = vmatprep.mubr.f32.mxu0 0.0
    %1421 = vmatmul.mubr.f32.gmra.mrb[0].mxu0 %v272
    %v1422 = vpop.f32.mrb[0].mxu0
    %v1423 = vadd.f32 %v1348, %v1422
    %v1424 = vpop.f32.mrb[0].mxu0
    %1425 = vmatprep.mubr.f32.mxu0 0.0
    %1426 = vmatmul.mubr.f32.gmra.mrb[0].mxu0 %v275
    %v1427 = vpop.f32.mrb[0].mxu0
    %v1428 = vadd.f32 %v1353, %v1427
    %v1429 = vpop.f32.mrb[0].mxu0
    %1430 = vdwg.mxu0
    %v1432 = vsel %vm97, %v1423, 0
    %v1435 = vsel %vm97, %v1428, 0
    %1437 = vmatprep.subr.mxu0 0.0
    %1438 = vmatpush1.msra.mxu0 %v68
    %1439 = vmatprep.subr.mxu0 0.0
    %1440 = vmatpush1.msra.mxu0 %v69
    %1441 = vmatprep.subr.mxu0 0.0
    %1442 = vmatpush1.msra.mxu0 %v70
    %1443 = vmatprep.subr.mxu0 0.0
    %1444 = vmatpush1.msra.mxu0 %v71
    %1445 = vmatprep.subr.mxu0 0.0
    %1446 = vmatpush1.msra.mxu0 0.0
    %1447 = vmatprep.subr.mxu0 0.0
    %1448 = vmatpush1.msra.mxu0 0.0
    %1449 = vmatprep.subr.mxu0 0.0
    %1450 = vmatpush1.msra.mxu0 0.0
    %1451 = vmatprep.subr.mxu0 0.0
    %1452 = vmatpush1.msra.mxu0 0.0
    %1453 = vmatprep.subr.mxu0 0.0
    %1454 = vmatpush1.msra.mxu0 0.0
    %1455 = vmatprep.subr.mxu0 0.0
    %1456 = vmatpush1.msra.mxu0 0.0
    %1457 = vmatprep.subr.mxu0 0.0
    %1458 = vmatpush1.msra.mxu0 0.0
    %1459 = vmatprep.subr.mxu0 0.0
    %1460 = vmatpush1.msra.mxu0 0.0
    %1461 = vmatprep.subr.mxu0 0.0
    %1462 = vmatpush1.msra.mxu0 0.0
    %1463 = vmatprep.subr.mxu0 0.0
    %1464 = vmatpush1.msra.mxu0 0.0
    %1465 = vmatprep.subr.mxu0 0.0
    %1466 = vmatpush1.msra.mxu0 0.0
    %1467 = vmatprep.subr.mxu0 0.0
    %1468 = vmatpush1.msra.mxu0 0.0
    %1469 = vmatprep.subr.mxu0 0.0
    %1470 = vmatpush1.msra.mxu0 0.0
    %1471 = vmatprep.subr.mxu0 0.0
    %1472 = vmatpush1.msra.mxu0 0.0
    %1473 = vmatprep.subr.mxu0 0.0
    %1474 = vmatpush1.msra.mxu0 0.0
    %1475 = vmatprep.subr.mxu0 0.0
    %1476 = vmatpush1.msra.mxu0 0.0
    %1477 = vmatprep.subr.mxu0 0.0
    %1478 = vmatpush1.msra.mxu0 0.0
    %1479 = vmatprep.subr.mxu0 0.0
    %1480 = vmatpush1.msra.mxu0 0.0
    %1481 = vmatprep.subr.mxu0 0.0
    %1482 = vmatpush1.msra.mxu0 0.0
    %1483 = vmatprep.subr.mxu0 0.0
    %1484 = vmatpush1.msra.mxu0 0.0
    %1485 = vmatprep.subr.mxu0 0.0
    %1486 = vmatpush1.msra.mxu0 0.0
    %1487 = vmatprep.subr.mxu0 0.0
    %1488 = vmatpush1.msra.mxu0 0.0
    %1489 = vmatprep.subr.mxu0 0.0
    %1490 = vmatpush1.msra.mxu0 0.0
    %1491 = vmatprep.subr.mxu0 0.0
    %1492 = vmatpush1.msra.mxu0 0.0
    %1493 = vmatprep.subr.mxu0 0.0
    %1494 = vmatpush1.msra.mxu0 0.0
    %1495 = vmatprep.subr.mxu0 0.0
    %1496 = vmatpush1.msra.mxu0 0.0
    %1497 = vmatprep.subr.mxu0 0.0
    %1498 = vmatpush1.msra.mxu0 0.0
    %1499 = vmatprep.subr.mxu0 0.0
    %1500 = vmatpush1.msra.mxu0 0.0
    %1501 = vmatprep.mubr.f32.mxu0 0.0
    %1502 = vmatmul.mubr.f32.gmra.mrb[0].mxu0 %v1432
    %v1503 = vpop.f32.mrb[0].mxu0
    %v1504 = vadd.f32 %v1263, %v1503
    %v1505 = vpop.f32.mrb[0].mxu0
    %1506 = vmatprep.mubr.f32.mxu0 0.0
    %1507 = vmatmul.mubr.f32.gmra.mrb[0].mxu0 %v1435
    %v1508 = vpop.f32.mrb[0].mxu0
    %v1509 = vadd.f32 %v1269, %v1508
    %v1510 = vpop.f32.mrb[0].mxu0
    %1511 = vdwg.mxu0
    %v1512 = vxor.u32 %v1504, 2147483648
    %v1513 = vxor.u32 %v1509, 2147483648
    %v1514 = vmul.f32 %v1512, 1.442695
    %v1515 = vpow.pop %v1514
    %v1516 = vmul.f32 %v1513, 1.442695
    %v1517 = vpow.pop %v1516
    %v1518 = vadd.f32 %v1515, 1.0
    %v1519 = vadd.f32 %v1517, 1.0
    %v1520 = vrcp.pop %v1518
    %v1521 = vmul.f32 1.0, %v1520
    %v1522 = vrcp.pop %v1519
    %v1523 = vmul.f32 1.0, %v1522
    %1526 = vrot.lane.b32.xlu0 %v1504, 32
    %v1527 = vpop.permute.xlu0 %1526
    %1528 = vrot.lane.b32.xlu0 %v1509, 32
    %v1529 = vpop.permute.xlu0 %1528
    %v1532 = vmul.f32 %v1521, %v1527
    %v1533 = vmul.f32 %v1523, %v1529
    %1536 = vrot.lane.b32.xlu0 %v1532, 64
    %v1537 = vpop.permute.xlu0 %1536
    %1538 = vrot.lane.b32.xlu0 %v1533, 64
    %v1539 = vpop.permute.xlu0 %1538
    %v1542 = vadd.f32 %v1504, %v1537
    %v1543 = vadd.f32 %v1509, %v1539
    %v1544 = vtanh.pop %v1542
    %v1545 = vtanh.pop %v1543
    %v1546 = vsub.f32 1.0, %v1521
    %v1547 = vsub.f32 1.0, %v1523
    %1550 = vrot.lane.b32.xlu0 %v1544, 96
    %v1551 = vpop.permute.xlu0 %1550
    %1552 = vrot.lane.b32.xlu0 %v1545, 96
    %v1553 = vpop.permute.xlu0 %1552
    %v1556 = vmul.f32 %v1546, %v1551
    %v1557 = vmul.f32 %v1547, %v1553
    %1558 = vrot.lane.b32.xlu0 %v1046, 32
    %v1559 = vpop.permute.xlu0 %1558
    %1560 = vrot.lane.b32.xlu0 %v1048, 32
    %v1561 = vpop.permute.xlu0 %1560
    %v1564 = vmul.f32 %v1521, %v1559
    %v1565 = vmul.f32 %v1523, %v1561
    %v1566 = vadd.f32 %v1556, %v1564
    %v1567 = vadd.f32 %v1557, %v1565
    %1570 = vrot.lane.b32.xlu0 %v1566, 96
    %v1571 = vpop.permute.xlu0 %1570
    %1572 = vrot.lane.b32.xlu0 %v1567, 96
    %v1573 = vpop.permute.xlu0 %1572
    %v1574 = vsel %vm97, %v1571, 0
    %v1576 = vsel %vm97, %v1573, 0
    %1578 = vmatprep.subr.mxu0 %v61
    %1579 = vmatpush1.msra.mxu0 %v60
    %1580 = vmatprep.subr.mxu0 %v63
    %1581 = vmatpush1.msra.mxu0 %v62
    %1582 = vmatprep.subr.mxu0 %v65
    %1583 = vmatpush1.msra.mxu0 %v64
    %1584 = vmatprep.subr.mxu0 %v67
    %1585 = vmatpush1.msra.mxu0 %v66
    %1586 = vmatprep.subr.mxu0 0.0
    %1587 = vmatpush1.msra.mxu0 0.0
    %1588 = vmatprep.subr.mxu0 0.0
    %1589 = vmatpush1.msra.mxu0 0.0
    %1590 = vmatprep.subr.mxu0 0.0
    %1591 = vmatpush1.msra.mxu0 0.0
    %1592 = vmatprep.subr.mxu0 0.0
    %1593 = vmatpush1.msra.mxu0 0.0
    %1594 = vmatprep.subr.mxu0 0.0
    %1595 = vmatpush1.msra.mxu0 0.0
    %1596 = vmatprep.subr.mxu0 0.0
    %1597 = vmatpush1.msra.mxu0 0.0
    %1598 = vmatprep.subr.mxu0 0.0
    %1599 = vmatpush1.msra.mxu0 0.0
    %1600 = vmatprep.subr.mxu0 0.0
    %1601 = vmatpush1.msra.mxu0 0.0
    %1602 = vmatprep.subr.mxu0 0.0
    %1603 = vmatpush1.msra.mxu0 0.0
    %1604 = vmatprep.subr.mxu0 0.0
    %1605 = vmatpush1.msra.mxu0 0.0
    %1606 = vmatprep.subr.mxu0 0.0
    %1607 = vmatpush1.msra.mxu0 0.0
    %1608 = vmatprep.subr.mxu0 0.0
    %1609 = vmatpush1.msra.mxu0 0.0
    %1610 = vmatprep.subr.mxu0 0.0
    %1611 = vmatpush1.msra.mxu0 0.0
    %1612 = vmatprep.subr.mxu0 0.0
    %1613 = vmatpush1.msra.mxu0 0.0
    %1614 = vmatprep.subr.mxu0 0.0
    %1615 = vmatpush1.msra.mxu0 0.0
    %1616 = vmatprep.subr.mxu0 0.0
    %1617 = vmatpush1.msra.mxu0 0.0
    %1618 = vmatprep.subr.mxu0 0.0
    %1619 = vmatpush1.msra.mxu0 0.0
    %1620 = vmatprep.subr.mxu0 0.0
    %1621 = vmatpush1.msra.mxu0 0.0
    %1622 = vmatprep.subr.mxu0 0.0
    %1623 = vmatpush1.msra.mxu0 0.0
    %1624 = vmatprep.subr.mxu0 0.0
    %1625 = vmatpush1.msra.mxu0 0.0
    %1626 = vmatprep.subr.mxu0 0.0
    %1627 = vmatpush1.msra.mxu0 0.0
    %1628 = vmatprep.subr.mxu0 0.0
    %1629 = vmatpush1.msra.mxu0 0.0
    %1630 = vmatprep.subr.mxu0 0.0
    %1631 = vmatpush1.msra.mxu0 0.0
    %1632 = vmatprep.subr.mxu0 0.0
    %1633 = vmatpush1.msra.mxu0 0.0
    %1634 = vmatprep.subr.mxu0 0.0
    %1635 = vmatpush1.msra.mxu0 0.0
    %1636 = vmatprep.subr.mxu0 0.0
    %1637 = vmatpush1.msra.mxu0 0.0
    %1638 = vmatprep.subr.mxu0 0.0
    %1639 = vmatpush1.msra.mxu0 0.0
    %1640 = vmatprep.subr.mxu0 0.0
    %1641 = vmatpush1.msra.mxu0 0.0
    %1642 = vmatprep.mubr.f32.mxu0 0.0
    %1643 = vmatmul.mubr.f32.gmra.mrb[0].mxu0 %v1574
    %v1644 = vpop.f32.mrb[0].mxu0
    %v1645 = vadd.f32 %v86, %v1644
    %v1646 = vpop.f32.mrb[0].mxu0
    %v1647 = vadd.f32 %v90, %v1646
    %1648 = vmatprep.mubr.f32.mxu0 0.0
    %1649 = vmatmul.mubr.f32.gmra.mrb[0].mxu0 %v1576
    %v1650 = vpop.f32.mrb[0].mxu0
    %v1651 = vadd.f32 %v86, %v1650
    %v1652 = vpop.f32.mrb[0].mxu0
    %v1653 = vadd.f32 %v90, %v1652
    %1654 = vdwg.mxu0
    %1657 = vrot.lane.b32.xlu0 %v1647, 96
    %v1658 = vpop.permute.xlu0 %1657
    %1659 = vrot.lane.b32.xlu0 %v1653, 96
    %v1660 = vpop.permute.xlu0 %1659
    %1663 = vmatprep.subr.mxu0 0.0
    %1664 = vmatpush1.msra.mxu0 %v1658
    %1665 = vmatprep.subr.mxu0 0.0
    %1666 = vmatpush1.msra.mxu0 %v1660
    %1667 = vmatprep.subr.mxu0 0.0
    %1668 = vmatpush1.msra.mxu0 0.0
    %1669 = vmatprep.subr.mxu0 0.0
    %1670 = vmatpush1.msra.mxu0 0.0
    %1671 = vmatprep.subr.mxu0 0.0
    %1672 = vmatpush1.msra.mxu0 0.0
    %1673 = vmatprep.subr.mxu0 0.0
    %1674 = vmatpush1.msra.mxu0 0.0
    %1675 = vmatprep.subr.mxu0 0.0
    %1676 = vmatpush1.msra.mxu0 0.0
    %1677 = vmatprep.subr.mxu0 0.0
    %1678 = vmatpush1.msra.mxu0 0.0
    %1679 = vmatprep.subr.mxu0 0.0
    %1680 = vmatpush1.msra.mxu0 0.0
    %1681 = vmatprep.subr.mxu0 0.0
    %1682 = vmatpush1.msra.mxu0 0.0
    %1683 = vmatprep.subr.mxu0 0.0
    %1684 = vmatpush1.msra.mxu0 0.0
    %1685 = vmatprep.subr.mxu0 0.0
    %1686 = vmatpush1.msra.mxu0 0.0
    %1687 = vmatprep.subr.mxu0 0.0
    %1688 = vmatpush1.msra.mxu0 0.0
    %1689 = vmatprep.subr.mxu0 0.0
    %1690 = vmatpush1.msra.mxu0 0.0
    %1691 = vmatprep.subr.mxu0 0.0
    %1692 = vmatpush1.msra.mxu0 0.0
    %1693 = vmatprep.subr.mxu0 0.0
    %1694 = vmatpush1.msra.mxu0 0.0
    %1695 = vmatprep.subr.mxu0 0.0
    %1696 = vmatpush1.msra.mxu0 0.0
    %1697 = vmatprep.subr.mxu0 0.0
    %1698 = vmatpush1.msra.mxu0 0.0
    %1699 = vmatprep.subr.mxu0 0.0
    %1700 = vmatpush1.msra.mxu0 0.0
    %1701 = vmatprep.subr.mxu0 0.0
    %1702 = vmatpush1.msra.mxu0 0.0
    %1703 = vmatprep.subr.mxu0 0.0
    %1704 = vmatpush1.msra.mxu0 0.0
    %1705 = vmatprep.subr.mxu0 0.0
    %1706 = vmatpush1.msra.mxu0 0.0
    %1707 = vmatprep.subr.mxu0 0.0
    %1708 = vmatpush1.msra.mxu0 0.0
    %1709 = vmatprep.subr.mxu0 0.0
    %1710 = vmatpush1.msra.mxu0 0.0
    %1711 = vmatprep.subr.mxu0 0.0
    %1712 = vmatpush1.msra.mxu0 0.0
    %1713 = vmatprep.subr.mxu0 0.0
    %1714 = vmatpush1.msra.mxu0 0.0
    %1715 = vmatprep.subr.mxu0 0.0
    %1716 = vmatpush1.msra.mxu0 0.0
    %1717 = vmatprep.subr.mxu0 0.0
    %1718 = vmatpush1.msra.mxu0 0.0
    %1719 = vmatprep.subr.mxu0 0.0
    %1720 = vmatpush1.msra.mxu0 0.0
    %1721 = vmatprep.subr.mxu0 0.0
    %1722 = vmatpush1.msra.mxu0 0.0
    %1723 = vmatprep.subr.mxu0 0.0
    %1724 = vmatpush1.msra.mxu0 0.0
    %1725 = vmatprep.subr.mxu0 0.0
    %1726 = vmatpush1.msra.mxu0 0.0
    %1727 = vmatprep.mubr.f32.mxu0 0.0
    %1728 = vmatmul.mubr.f32.gmra.mrb[0].mxu0 %v191
    %v1729 = vpop.f32.mrb[0].mxu0
    %v1730 = vadd.f32 0.0, %v1729
    %v1731 = vpop.f32.mrb[0].mxu0
    %1732 = vmatprep.mubr.f32.mxu0 0.0
    %1733 = vmatmul.mubr.f32.gmra.mrb[0].mxu0 %v194
    %v1734 = vpop.f32.mrb[0].mxu0
    %v1735 = vadd.f32 0.0, %v1734
    %v1736 = vpop.f32.mrb[0].mxu0
    %1737 = vdwg.mxu0
    %1738 = vmatprep.subr.mxu0 0.0
    %1739 = vmatpush1.msra.mxu0 %v1647
    %1740 = vmatprep.subr.mxu0 0.0
    %1741 = vmatpush1.msra.mxu0 %v1653
    %1742 = vmatprep.subr.mxu0 0.0
    %1743 = vmatpush1.msra.mxu0 0.0
    %1744 = vmatprep.subr.mxu0 0.0
    %1745 = vmatpush1.msra.mxu0 0.0
    %1746 = vmatprep.subr.mxu0 0.0
    %1747 = vmatpush1.msra.mxu0 0.0
    %1748 = vmatprep.subr.mxu0 0.0
    %1749 = vmatpush1.msra.mxu0 0.0
    %1750 = vmatprep.subr.mxu0 0.0
    %1751 = vmatpush1.msra.mxu0 0.0
    %1752 = vmatprep.subr.mxu0 0.0
    %1753 = vmatpush1.msra.mxu0 0.0
    %1754 = vmatprep.subr.mxu0 0.0
    %1755 = vmatpush1.msra.mxu0 0.0
    %1756 = vmatprep.subr.mxu0 0.0
    %1757 = vmatpush1.msra.mxu0 0.0
    %1758 = vmatprep.subr.mxu0 0.0
    %1759 = vmatpush1.msra.mxu0 0.0
    %1760 = vmatprep.subr.mxu0 0.0
    %1761 = vmatpush1.msra.mxu0 0.0
    %1762 = vmatprep.subr.mxu0 0.0
    %1763 = vmatpush1.msra.mxu0 0.0
    %1764 = vmatprep.subr.mxu0 0.0
    %1765 = vmatpush1.msra.mxu0 0.0
    %1766 = vmatprep.subr.mxu0 0.0
    %1767 = vmatpush1.msra.mxu0 0.0
    %1768 = vmatprep.subr.mxu0 0.0
    %1769 = vmatpush1.msra.mxu0 0.0
    %1770 = vmatprep.subr.mxu0 0.0
    %1771 = vmatpush1.msra.mxu0 0.0
    %1772 = vmatprep.subr.mxu0 0.0
    %1773 = vmatpush1.msra.mxu0 0.0
    %1774 = vmatprep.subr.mxu0 0.0
    %1775 = vmatpush1.msra.mxu0 0.0
    %1776 = vmatprep.subr.mxu0 0.0
    %1777 = vmatpush1.msra.mxu0 0.0
    %1778 = vmatprep.subr.mxu0 0.0
    %1779 = vmatpush1.msra.mxu0 0.0
    %1780 = vmatprep.subr.mxu0 0.0
    %1781 = vmatpush1.msra.mxu0 0.0
    %1782 = vmatprep.subr.mxu0 0.0
    %1783 = vmatpush1.msra.mxu0 0.0
    %1784 = vmatprep.subr.mxu0 0.0
    %1785 = vmatpush1.msra.mxu0 0.0
    %1786 = vmatprep.subr.mxu0 0.0
    %1787 = vmatpush1.msra.mxu0 0.0
    %1788 = vmatprep.subr.mxu0 0.0
    %1789 = vmatpush1.msra.mxu0 0.0
    %1790 = vmatprep.subr.mxu0 0.0
    %1791 = vmatpush1.msra.mxu0 0.0
    %1792 = vmatprep.subr.mxu0 0.0
    %1793 = vmatpush1.msra.mxu0 0.0
    %1794 = vmatprep.subr.mxu0 0.0
    %1795 = vmatpush1.msra.mxu0 0.0
    %1796 = vmatprep.subr.mxu0 0.0
    %1797 = vmatpush1.msra.mxu0 0.0
    %1798 = vmatprep.subr.mxu0 0.0
    %1799 = vmatpush1.msra.mxu0 0.0
    %1800 = vmatprep.subr.mxu0 0.0
    %1801 = vmatpush1.msra.mxu0 0.0
    %1802 = vmatprep.mubr.f32.mxu0 0.0
    %1803 = vmatmul.mubr.f32.gmra.mrb[0].mxu0 %v272
    %v1804 = vpop.f32.mrb[0].mxu0
    %v1805 = vadd.f32 %v1730, %v1804
    %v1806 = vpop.f32.mrb[0].mxu0
    %1807 = vmatprep.mubr.f32.mxu0 0.0
    %1808 = vmatmul.mubr.f32.gmra.mrb[0].mxu0 %v275
    %v1809 = vpop.f32.mrb[0].mxu0
    %v1810 = vadd.f32 %v1735, %v1809
    %v1811 = vpop.f32.mrb[0].mxu0
    %1812 = vdwg.mxu0
    %v1814 = vsel %vm97, %v1805, 0
    %v1817 = vsel %vm97, %v1810, 0
    %1819 = vmatprep.subr.mxu0 0.0
    %1820 = vmatpush1.msra.mxu0 %v68
    %1821 = vmatprep.subr.mxu0 0.0
    %1822 = vmatpush1.msra.mxu0 %v69
    %1823 = vmatprep.subr.mxu0 0.0
    %1824 = vmatpush1.msra.mxu0 %v70
    %1825 = vmatprep.subr.mxu0 0.0
    %1826 = vmatpush1.msra.mxu0 %v71
    %1827 = vmatprep.subr.mxu0 0.0
    %1828 = vmatpush1.msra.mxu0 0.0
    %1829 = vmatprep.subr.mxu0 0.0
    %1830 = vmatpush1.msra.mxu0 0.0
    %1831 = vmatprep.subr.mxu0 0.0
    %1832 = vmatpush1.msra.mxu0 0.0
    %1833 = vmatprep.subr.mxu0 0.0
    %1834 = vmatpush1.msra.mxu0 0.0
    %1835 = vmatprep.subr.mxu0 0.0
    %1836 = vmatpush1.msra.mxu0 0.0
    %1837 = vmatprep.subr.mxu0 0.0
    %1838 = vmatpush1.msra.mxu0 0.0
    %1839 = vmatprep.subr.mxu0 0.0
    %1840 = vmatpush1.msra.mxu0 0.0
    %1841 = vmatprep.subr.mxu0 0.0
    %1842 = vmatpush1.msra.mxu0 0.0
    %1843 = vmatprep.subr.mxu0 0.0
    %1844 = vmatpush1.msra.mxu0 0.0
    %1845 = vmatprep.subr.mxu0 0.0
    %1846 = vmatpush1.msra.mxu0 0.0
    %1847 = vmatprep.subr.mxu0 0.0
    %1848 = vmatpush1.msra.mxu0 0.0
    %1849 = vmatprep.subr.mxu0 0.0
    %1850 = vmatpush1.msra.mxu0 0.0
    %1851 = vmatprep.subr.mxu0 0.0
    %1852 = vmatpush1.msra.mxu0 0.0
    %1853 = vmatprep.subr.mxu0 0.0
    %1854 = vmatpush1.msra.mxu0 0.0
    %1855 = vmatprep.subr.mxu0 0.0
    %1856 = vmatpush1.msra.mxu0 0.0
    %1857 = vmatprep.subr.mxu0 0.0
    %1858 = vmatpush1.msra.mxu0 0.0
    %1859 = vmatprep.subr.mxu0 0.0
    %1860 = vmatpush1.msra.mxu0 0.0
    %1861 = vmatprep.subr.mxu0 0.0
    %1862 = vmatpush1.msra.mxu0 0.0
    %1863 = vmatprep.subr.mxu0 0.0
    %1864 = vmatpush1.msra.mxu0 0.0
    %1865 = vmatprep.subr.mxu0 0.0
    %1866 = vmatpush1.msra.mxu0 0.0
    %1867 = vmatprep.subr.mxu0 0.0
    %1868 = vmatpush1.msra.mxu0 0.0
    %1869 = vmatprep.subr.mxu0 0.0
    %1870 = vmatpush1.msra.mxu0 0.0
    %1871 = vmatprep.subr.mxu0 0.0
    %1872 = vmatpush1.msra.mxu0 0.0
    %1873 = vmatprep.subr.mxu0 0.0
    %1874 = vmatpush1.msra.mxu0 0.0
    %1875 = vmatprep.subr.mxu0 0.0
    %1876 = vmatpush1.msra.mxu0 0.0
    %1877 = vmatprep.subr.mxu0 0.0
    %1878 = vmatpush1.msra.mxu0 0.0
    %1879 = vmatprep.subr.mxu0 0.0
    %1880 = vmatpush1.msra.mxu0 0.0
    %1881 = vmatprep.subr.mxu0 0.0
    %1882 = vmatpush1.msra.mxu0 0.0
    %1883 = vmatprep.mubr.f32.mxu0 0.0
    %1884 = vmatmul.mubr.f32.gmra.mrb[0].mxu0 %v1814
    %v1885 = vpop.f32.mrb[0].mxu0
    %v1886 = vadd.f32 %v1645, %v1885
    %v1887 = vpop.f32.mrb[0].mxu0
    %1888 = vmatprep.mubr.f32.mxu0 0.0
    %1889 = vmatmul.mubr.f32.gmra.mrb[0].mxu0 %v1817
    %v1890 = vpop.f32.mrb[0].mxu0
    %v1891 = vadd.f32 %v1651, %v1890
    %v1892 = vpop.f32.mrb[0].mxu0
    %1893 = vdwg.mxu0
    %v1894 = vxor.u32 %v1886, 2147483648
    %v1895 = vxor.u32 %v1891, 2147483648
    %v1896 = vmul.f32 %v1894, 1.442695
    %v1897 = vpow.pop %v1896
    %v1898 = vmul.f32 %v1895, 1.442695
    %v1899 = vpow.pop %v1898
    %v1900 = vadd.f32 %v1897, 1.0
    %v1901 = vadd.f32 %v1899, 1.0
    %v1902 = vrcp.pop %v1900
    %v1903 = vmul.f32 1.0, %v1902
    %v1904 = vrcp.pop %v1901
    %v1905 = vmul.f32 1.0, %v1904
    %1908 = vrot.lane.b32.xlu0 %v1886, 32
    %v1909 = vpop.permute.xlu0 %1908
    %1910 = vrot.lane.b32.xlu0 %v1891, 32
    %v1911 = vpop.permute.xlu0 %1910
    %v1914 = vmul.f32 %v1903, %v1909
    %v1915 = vmul.f32 %v1905, %v1911
    %1918 = vrot.lane.b32.xlu0 %v1914, 64
    %v1919 = vpop.permute.xlu0 %1918
    %1920 = vrot.lane.b32.xlu0 %v1915, 64
    %v1921 = vpop.permute.xlu0 %1920
    %v1924 = vadd.f32 %v1886, %v1919
    %v1925 = vadd.f32 %v1891, %v1921
    %v1926 = vtanh.pop %v1924
    %v1927 = vtanh.pop %v1925
    %v1928 = vsub.f32 1.0, %v1903
    %v1929 = vsub.f32 1.0, %v1905
    %1932 = vrot.lane.b32.xlu0 %v1926, 96
    %v1933 = vpop.permute.xlu0 %1932
    %1934 = vrot.lane.b32.xlu0 %v1927, 96
    %v1935 = vpop.permute.xlu0 %1934
    %v1938 = vmul.f32 %v1928, %v1933
    %v1939 = vmul.f32 %v1929, %v1935
    %v1940 = vmul.f32 %v1903, %v1566
    %v1941 = vmul.f32 %v1905, %v1567
    %v1942 = vadd.f32 %v1938, %v1940
    %v1943 = vadd.f32 %v1939, %v1941
    %1944 = vmatprep.subr.mxu0 0.0
    %1945 = vmatpush1.msra.mxu0 %v76
    %1946 = vmatprep.subr.mxu0 0.0
    %1947 = vmatpush1.msra.mxu0 %v77
    %1948 = vmatprep.subr.mxu0 0.0
    %1949 = vmatpush1.msra.mxu0 %v78
    %1950 = vmatprep.subr.mxu0 0.0
    %1951 = vmatpush1.msra.mxu0 %v79
    %1952 = vmatprep.subr.mxu0 0.0
    %1953 = vmatpush1.msra.mxu0 0.0
    %1954 = vmatprep.subr.mxu0 0.0
    %1955 = vmatpush1.msra.mxu0 0.0
    %1956 = vmatprep.subr.mxu0 0.0
    %1957 = vmatpush1.msra.mxu0 0.0
    %1958 = vmatprep.subr.mxu0 0.0
    %1959 = vmatpush1.msra.mxu0 0.0
    %1960 = vmatprep.subr.mxu0 0.0
    %1961 = vmatpush1.msra.mxu0 0.0
    %1962 = vmatprep.subr.mxu0 0.0
    %1963 = vmatpush1.msra.mxu0 0.0
    %1964 = vmatprep.subr.mxu0 0.0
    %1965 = vmatpush1.msra.mxu0 0.0
    %1966 = vmatprep.subr.mxu0 0.0
    %1967 = vmatpush1.msra.mxu0 0.0
    %1968 = vmatprep.subr.mxu0 0.0
    %1969 = vmatpush1.msra.mxu0 0.0
    %1970 = vmatprep.subr.mxu0 0.0
    %1971 = vmatpush1.msra.mxu0 0.0
    %1972 = vmatprep.subr.mxu0 0.0
    %1973 = vmatpush1.msra.mxu0 0.0
    %1974 = vmatprep.subr.mxu0 0.0
    %1975 = vmatpush1.msra.mxu0 0.0
    %1976 = vmatprep.subr.mxu0 0.0
    %1977 = vmatpush1.msra.mxu0 0.0
    %1978 = vmatprep.subr.mxu0 0.0
    %1979 = vmatpush1.msra.mxu0 0.0
    %1980 = vmatprep.subr.mxu0 0.0
    %1981 = vmatpush1.msra.mxu0 0.0
    %1982 = vmatprep.subr.mxu0 0.0
    %1983 = vmatpush1.msra.mxu0 0.0
    %1984 = vmatprep.subr.mxu0 0.0
    %1985 = vmatpush1.msra.mxu0 0.0
    %1986 = vmatprep.subr.mxu0 0.0
    %1987 = vmatpush1.msra.mxu0 0.0
    %1988 = vmatprep.subr.mxu0 0.0
    %1989 = vmatpush1.msra.mxu0 0.0
    %1990 = vmatprep.subr.mxu0 0.0
    %1991 = vmatpush1.msra.mxu0 0.0
    %1992 = vmatprep.subr.mxu0 0.0
    %1993 = vmatpush1.msra.mxu0 0.0
    %1994 = vmatprep.subr.mxu0 0.0
    %1995 = vmatpush1.msra.mxu0 0.0
    %1996 = vmatprep.subr.mxu0 0.0
    %1997 = vmatpush1.msra.mxu0 0.0
    %1998 = vmatprep.subr.mxu0 0.0
    %1999 = vmatpush1.msra.mxu0 0.0
    %2000 = vmatprep.subr.mxu0 0.0
    %2001 = vmatpush1.msra.mxu0 0.0
    %2002 = vmatprep.subr.mxu0 0.0
    %2003 = vmatpush1.msra.mxu0 0.0
    %2004 = vmatprep.subr.mxu0 0.0
    %2005 = vmatpush1.msra.mxu0 0.0
    %2006 = vmatprep.subr.mxu0 0.0
    %2007 = vmatpush1.msra.mxu0 0.0
    %2008 = vmatprep.mubr.f32.mxu0 0.0
    %2009 = vmatmul.mubr.f32.gmra.mrb[0].mxu0 %v1191
    %v2010 = vpop.f32.mrb[0].mxu0
    %v2011 = vadd.f32 0.0, %v2010
    %v2012 = vpop.f32.mrb[0].mxu0
    %2013 = vmatprep.mubr.f32.mxu0 0.0
    %2014 = vmatmul.mubr.f32.gmra.mrb[0].mxu0 %v1194
    %v2015 = vpop.f32.mrb[0].mxu0
    %v2016 = vadd.f32 0.0, %v2015
    %v2017 = vpop.f32.mrb[0].mxu0
    %2018 = vdwg.mxu0
    %2021 = vrot.lane.b32.xlu0 %v1942, 96
    %v2022 = vpop.permute.xlu0 %2021
    %2023 = vrot.lane.b32.xlu0 %v1943, 96
    %v2024 = vpop.permute.xlu0 %2023
    %v2025 = vsel %vm97, %v2022, 0
    %v2027 = vsel %vm97, %v2024, 0
    %2029 = vmatprep.subr.mxu0 0.0
    %2030 = vmatpush1.msra.mxu0 %v72
    %2031 = vmatprep.subr.mxu0 0.0
    %2032 = vmatpush1.msra.mxu0 %v73
    %2033 = vmatprep.subr.mxu0 0.0
    %2034 = vmatpush1.msra.mxu0 %v74
    %2035 = vmatprep.subr.mxu0 0.0
    %2036 = vmatpush1.msra.mxu0 %v75
    %2037 = vmatprep.subr.mxu0 0.0
    %2038 = vmatpush1.msra.mxu0 0.0
    %2039 = vmatprep.subr.mxu0 0.0
    %2040 = vmatpush1.msra.mxu0 0.0
    %2041 = vmatprep.subr.mxu0 0.0
    %2042 = vmatpush1.msra.mxu0 0.0
    %2043 = vmatprep.subr.mxu0 0.0
    %2044 = vmatpush1.msra.mxu0 0.0
    %2045 = vmatprep.subr.mxu0 0.0
    %2046 = vmatpush1.msra.mxu0 0.0
    %2047 = vmatprep.subr.mxu0 0.0
    %2048 = vmatpush1.msra.mxu0 0.0
    %2049 = vmatprep.subr.mxu0 0.0
    %2050 = vmatpush1.msra.mxu0 0.0
    %2051 = vmatprep.subr.mxu0 0.0
    %2052 = vmatpush1.msra.mxu0 0.0
    %2053 = vmatprep.subr.mxu0 0.0
    %2054 = vmatpush1.msra.mxu0 0.0
    %2055 = vmatprep.subr.mxu0 0.0
    %2056 = vmatpush1.msra.mxu0 0.0
    %2057 = vmatprep.subr.mxu0 0.0
    %2058 = vmatpush1.msra.mxu0 0.0
    %2059 = vmatprep.subr.mxu0 0.0
    %2060 = vmatpush1.msra.mxu0 0.0
    %2061 = vmatprep.subr.mxu0 0.0
    %2062 = vmatpush1.msra.mxu0 0.0
    %2063 = vmatprep.subr.mxu0 0.0
    %2064 = vmatpush1.msra.mxu0 0.0
    %2065 = vmatprep.subr.mxu0 0.0
    %2066 = vmatpush1.msra.mxu0 0.0
    %2067 = vmatprep.subr.mxu0 0.0
    %2068 = vmatpush1.msra.mxu0 0.0
    %2069 = vmatprep.subr.mxu0 0.0
    %2070 = vmatpush1.msra.mxu0 0.0
    %2071 = vmatprep.subr.mxu0 0.0
    %2072 = vmatpush1.msra.mxu0 0.0
    %2073 = vmatprep.subr.mxu0 0.0
    %2074 = vmatpush1.msra.mxu0 0.0
    %2075 = vmatprep.subr.mxu0 0.0
    %2076 = vmatpush1.msra.mxu0 0.0
    %2077 = vmatprep.subr.mxu0 0.0
    %2078 = vmatpush1.msra.mxu0 0.0
    %2079 = vmatprep.subr.mxu0 0.0
    %2080 = vmatpush1.msra.mxu0 0.0
    %2081 = vmatprep.subr.mxu0 0.0
    %2082 = vmatpush1.msra.mxu0 0.0
    %2083 = vmatprep.subr.mxu0 0.0
    %2084 = vmatpush1.msra.mxu0 0.0
    %2085 = vmatprep.subr.mxu0 0.0
    %2086 = vmatpush1.msra.mxu0 0.0
    %2087 = vmatprep.subr.mxu0 0.0
    %2088 = vmatpush1.msra.mxu0 0.0
    %2089 = vmatprep.subr.mxu0 0.0
    %2090 = vmatpush1.msra.mxu0 0.0
    %2091 = vmatprep.subr.mxu0 0.0
    %2092 = vmatpush1.msra.mxu0 0.0
    %2093 = vmatprep.mubr.f32.mxu0 0.0
    %2094 = vmatmul.mubr.f32.gmra.mrb[0].mxu0 %v2025
    %v2095 = vpop.f32.mrb[0].mxu0
    %v2096 = vadd.f32 %v2011, %v2095
    %v2097 = vpop.f32.mrb[0].mxu0
    %2098 = vmatprep.mubr.f32.mxu0 0.0
    %2099 = vmatmul.mubr.f32.gmra.mrb[0].mxu0 %v2027
    %v2100 = vpop.f32.mrb[0].mxu0
    %v2101 = vadd.f32 %v2016, %v2100
    %v2102 = vpop.f32.mrb[0].mxu0
    %2103 = vdwg.mxu0
    %v2104 = vadd.f32 %v2096, %v93
    %v2105 = vadd.f32 %v2101, %v93
    %v2106 = vsel %vm97, %v2104, -inf
    %2107 = vmax.xlane.f32.xlu0 %v2106
    %v2108 = vpop.xlane.xlu0 %2107
    %v2109 = vsel %vm97, %v2105, -inf
    %2110 = vmax.xlane.f32.xlu0 %v2109
    %v2111 = vpop.xlane.xlu0 %2110
    %v2112 = vsub.f32 %v2104, %v2108
    %v2113 = vsub.f32 %v2105, %v2111
    %v2114 = vmul.f32 %v2112, 1.442695
    %v2115 = vpow.pop %v2114
    %v2116 = vmul.f32 %v2113, 1.442695
    %v2117 = vpow.pop %v2116
    %v2118 = vsel %vm97, %v2115, 0.0
    %2119 = vadd.xlane.f32.xlu0 %v2118
    %v2120 = vpop.xlane.xlu0 %2119
    %v2121 = vsel %vm97, %v2117, 0.0
    %2122 = vadd.xlane.f32.xlu0 %v2121
    %v2123 = vpop.xlane.xlu0 %2122
    %v2124 = vrcp.pop %v2120
    %v2125 = vmul.f32 %v2115, %v2124
    %v2126 = vrcp.pop %v2123
    %v2127 = vmul.f32 %v2117, %v2126
    %v2128 = vsel %vm1049, %v2104, -inf
    %v2129 = vsel %vm1049, %v2105, -inf
    %v2130 = vmax.f32 %v2128, %v2129
    %v2131 = vrot.slane %v2130, 4
    %v2132 = vmax.f32 %v2130, %v2131
    %v2133 = vrot.slane %v2132, 2
    %v2134 = vmax.f32 %v2132, %v2133
    %v2135 = vrot.slane %v2134, 1
    %v2136 = vmax.f32 %v2134, %v2135
    %v2137 = vsub.f32 %v2104, %v2136
    %v2138 = vsub.f32 %v2105, %v2136
    %v2139 = vmul.f32 %v2137, 1.442695
    %v2140 = vpow.pop %v2139
    %v2141 = vmul.f32 %v2138, 1.442695
    %v2142 = vpow.pop %v2141
    %2145 = vrot.lane.b32.xlu0 %v2140, 96
    %v2146 = vpop.permute.xlu0 %2145
    %2147 = vrot.lane.b32.xlu0 %v2142, 96
    %v2148 = vpop.permute.xlu0 %2147
    %2151 = vxpose.xlu0.b32.start [1/16] %v2146, 128
    %2152 = vxpose.xlu0.b32.cont [2/16] %v2148, 128
    %2153 = vxpose.xlu0.b32.cont [3/16] 0.0, 128
    %2154 = vxpose.xlu0.b32.cont [4/16] 0.0, 128
    %2155 = vxpose.xlu0.b32.cont [5/16] 0.0, 128
    %2156 = vxpose.xlu0.b32.cont [6/16] 0.0, 128
    %2157 = vxpose.xlu0.b32.cont [7/16] 0.0, 128
    %2158 = vxpose.xlu0.b32.cont [8/16] 0.0, 128
    %2159 = vxpose.xlu0.b32.cont [9/16] 0.0, 128
    %2160 = vxpose.xlu0.b32.cont [10/16] 0.0, 128
    %2161 = vxpose.xlu0.b32.cont [11/16] 0.0, 128
    %2162 = vxpose.xlu0.b32.cont [12/16] 0.0, 128
    %2163 = vxpose.xlu0.b32.cont [13/16] 0.0, 128
    %2164 = vxpose.xlu0.b32.cont [14/16] 0.0, 128
    %2165 = vxpose.xlu0.b32.cont [15/16] 0.0, 128
    %2166 = vxpose.xlu0.b32.end [16/16] 0.0, 128
    %v2167 = vpop.trf.xlu0
    %v2168 = vpop.trf.xlu0
    %v2169 = vpop.trf.xlu0
    %v2170 = vpop.trf.xlu0
    %v2171 = vpop.trf.xlu0
    %v2172 = vpop.trf.xlu0
    %v2173 = vpop.trf.xlu0
    %v2174 = vpop.trf.xlu0
    %v2175 = vpop.trf.xlu0
    %v2176 = vpop.trf.xlu0
    %v2177 = vpop.trf.xlu0
    %v2178 = vpop.trf.xlu0
    %v2179 = vpop.trf.xlu0
    %v2180 = vpop.trf.xlu0
    %v2181 = vpop.trf.xlu0
    %v2182 = vpop.trf.xlu0
    %v2184 = vsel %vm189, %v2167, 0
    %2186 = vmatprep.subr.mxu0 0.0
    %2187 = vmatpush1.msra.mxu0 %v2104
    %2188 = vmatprep.subr.mxu0 0.0
    %2189 = vmatpush1.msra.mxu0 %v2105
    %2190 = vmatprep.subr.mxu0 0.0
    %2191 = vmatpush1.msra.mxu0 0.0
    %2192 = vmatprep.subr.mxu0 0.0
    %2193 = vmatpush1.msra.mxu0 0.0
    %2194 = vmatprep.subr.mxu0 0.0
    %2195 = vmatpush1.msra.mxu0 0.0
    %2196 = vmatprep.subr.mxu0 0.0
    %2197 = vmatpush1.msra.mxu0 0.0
    %2198 = vmatprep.subr.mxu0 0.0
    %2199 = vmatpush1.msra.mxu0 0.0
    %2200 = vmatprep.subr.mxu0 0.0
    %2201 = vmatpush1.msra.mxu0 0.0
    %2202 = vmatprep.subr.mxu0 0.0
    %2203 = vmatpush1.msra.mxu0 0.0
    %2204 = vmatprep.subr.mxu0 0.0
    %2205 = vmatpush1.msra.mxu0 0.0
    %2206 = vmatprep.subr.mxu0 0.0
    %2207 = vmatpush1.msra.mxu0 0.0
    %2208 = vmatprep.subr.mxu0 0.0
    %2209 = vmatpush1.msra.mxu0 0.0
    %2210 = vmatprep.subr.mxu0 0.0
    %2211 = vmatpush1.msra.mxu0 0.0
    %2212 = vmatprep.subr.mxu0 0.0
    %2213 = vmatpush1.msra.mxu0 0.0
    %2214 = vmatprep.subr.mxu0 0.0
    %2215 = vmatpush1.msra.mxu0 0.0
    %2216 = vmatprep.subr.mxu0 0.0
    %2217 = vmatpush1.msra.mxu0 0.0
    %2218 = vmatprep.subr.mxu0 0.0
    %2219 = vmatpush1.msra.mxu0 0.0
    %2220 = vmatprep.subr.mxu0 0.0
    %2221 = vmatpush1.msra.mxu0 0.0
    %2222 = vmatprep.subr.mxu0 0.0
    %2223 = vmatpush1.msra.mxu0 0.0
    %2224 = vmatprep.subr.mxu0 0.0
    %2225 = vmatpush1.msra.mxu0 0.0
    %2226 = vmatprep.subr.mxu0 0.0
    %2227 = vmatpush1.msra.mxu0 0.0
    %2228 = vmatprep.subr.mxu0 0.0
    %2229 = vmatpush1.msra.mxu0 0.0
    %2230 = vmatprep.subr.mxu0 0.0
    %2231 = vmatpush1.msra.mxu0 0.0
    %2232 = vmatprep.subr.mxu0 0.0
    %2233 = vmatpush1.msra.mxu0 0.0
    %2234 = vmatprep.subr.mxu0 0.0
    %2235 = vmatpush1.msra.mxu0 0.0
    %2236 = vmatprep.subr.mxu0 0.0
    %2237 = vmatpush1.msra.mxu0 0.0
    %2238 = vmatprep.subr.mxu0 0.0
    %2239 = vmatpush1.msra.mxu0 0.0
    %2240 = vmatprep.subr.mxu0 0.0
    %2241 = vmatpush1.msra.mxu0 0.0
    %2242 = vmatprep.subr.mxu0 0.0
    %2243 = vmatpush1.msra.mxu0 0.0
    %2244 = vmatprep.subr.mxu0 0.0
    %2245 = vmatpush1.msra.mxu0 0.0
    %2246 = vmatprep.subr.mxu0 0.0
    %2247 = vmatpush1.msra.mxu0 0.0
    %2248 = vmatprep.subr.mxu0 0.0
    %2249 = vmatpush1.msra.mxu0 0.0
    %2250 = vmatprep.mubr.f32.mxu0 0.0
    %2251 = vmatmul.mubr.f32.gmra.mrb[0].mxu0 %v2184
    %v2252 = vpop.f32.mrb[0].mxu0
    %v2253 = vadd.f32 0.0, %v2252
    %v2254 = vpop.f32.mrb[0].mxu0
    %2255 = vdwg.mxu0
    %2257 = vset.pattern.permute.xlu0 41
    %2258 = vperm.xlu0 %2257, %v2253
    %v2259 = vpop.permute.xlu0 %2258
    %v2261 = vrcp.pop %v2259
    %v2262 = vmul.f32 %v2253, %v2261
    %v2263 = vadd.f32 %v2262, %v1187
    %v2265 = vsel %vm97, %v2125, 0
    %v2268 = vsel %vm97, %v2127, 0
    %2270 = vmatprep.subr.mxu0 %v61
    %2271 = vmatpush1.msra.mxu0 %v60
    %2272 = vmatprep.subr.mxu0 %v63
    %2273 = vmatpush1.msra.mxu0 %v62
    %2274 = vmatprep.subr.mxu0 %v65
    %2275 = vmatpush1.msra.mxu0 %v64
    %2276 = vmatprep.subr.mxu0 %v67
    %2277 = vmatpush1.msra.mxu0 %v66
    %2278 = vmatprep.subr.mxu0 0.0
    %2279 = vmatpush1.msra.mxu0 0.0
    %2280 = vmatprep.subr.mxu0 0.0
    %2281 = vmatpush1.msra.mxu0 0.0
    %2282 = vmatprep.subr.mxu0 0.0
    %2283 = vmatpush1.msra.mxu0 0.0
    %2284 = vmatprep.subr.mxu0 0.0
    %2285 = vmatpush1.msra.mxu0 0.0
    %2286 = vmatprep.subr.mxu0 0.0
    %2287 = vmatpush1.msra.mxu0 0.0
    %2288 = vmatprep.subr.mxu0 0.0
    %2289 = vmatpush1.msra.mxu0 0.0
    %2290 = vmatprep.subr.mxu0 0.0
    %2291 = vmatpush1.msra.mxu0 0.0
    %2292 = vmatprep.subr.mxu0 0.0
    %2293 = vmatpush1.msra.mxu0 0.0
    %2294 = vmatprep.subr.mxu0 0.0
    %2295 = vmatpush1.msra.mxu0 0.0
    %2296 = vmatprep.subr.mxu0 0.0
    %2297 = vmatpush1.msra.mxu0 0.0
    %2298 = vmatprep.subr.mxu0 0.0
    %2299 = vmatpush1.msra.mxu0 0.0
    %2300 = vmatprep.subr.mxu0 0.0
    %2301 = vmatpush1.msra.mxu0 0.0
    %2302 = vmatprep.subr.mxu0 0.0
    %2303 = vmatpush1.msra.mxu0 0.0
    %2304 = vmatprep.subr.mxu0 0.0
    %2305 = vmatpush1.msra.mxu0 0.0
    %2306 = vmatprep.subr.mxu0 0.0
    %2307 = vmatpush1.msra.mxu0 0.0
    %2308 = vmatprep.subr.mxu0 0.0
    %2309 = vmatpush1.msra.mxu0 0.0
    %2310 = vmatprep.subr.mxu0 0.0
    %2311 = vmatpush1.msra.mxu0 0.0
    %2312 = vmatprep.subr.mxu0 0.0
    %2313 = vmatpush1.msra.mxu0 0.0
    %2314 = vmatprep.subr.mxu0 0.0
    %2315 = vmatpush1.msra.mxu0 0.0
    %2316 = vmatprep.subr.mxu0 0.0
    %2317 = vmatpush1.msra.mxu0 0.0
    %2318 = vmatprep.subr.mxu0 0.0
    %2319 = vmatpush1.msra.mxu0 0.0
    %2320 = vmatprep.subr.mxu0 0.0
    %2321 = vmatpush1.msra.mxu0 0.0
    %2322 = vmatprep.subr.mxu0 0.0
    %2323 = vmatpush1.msra.mxu0 0.0
    %2324 = vmatprep.subr.mxu0 0.0
    %2325 = vmatpush1.msra.mxu0 0.0
    %2326 = vmatprep.subr.mxu0 0.0
    %2327 = vmatpush1.msra.mxu0 0.0
    %2328 = vmatprep.subr.mxu0 0.0
    %2329 = vmatpush1.msra.mxu0 0.0
    %2330 = vmatprep.subr.mxu0 0.0
    %2331 = vmatpush1.msra.mxu0 0.0
    %2332 = vmatprep.subr.mxu0 0.0
    %2333 = vmatpush1.msra.mxu0 0.0
    %2334 = vmatprep.mubr.f32.mxu0 0.0
    %2335 = vmatmul.mubr.f32.gmra.mrb[0].mxu0 %v2265
    %v2336 = vpop.f32.mrb[0].mxu0
    %v2337 = vadd.f32 %v86, %v2336
    %v2338 = vpop.f32.mrb[0].mxu0
    %v2339 = vadd.f32 %v90, %v2338
    %2340 = vmatprep.mubr.f32.mxu0 0.0
    %2341 = vmatmul.mubr.f32.gmra.mrb[0].mxu0 %v2268
    %v2342 = vpop.f32.mrb[0].mxu0
    %v2343 = vadd.f32 %v86, %v2342
    %v2344 = vpop.f32.mrb[0].mxu0
    %v2345 = vadd.f32 %v90, %v2344
    %2346 = vdwg.mxu0
    %2349 = vrot.lane.b32.xlu0 %v2339, 96
    %v2350 = vpop.permute.xlu0 %2349
    %2351 = vrot.lane.b32.xlu0 %v2345, 96
    %v2352 = vpop.permute.xlu0 %2351
    %2355 = vmatprep.subr.mxu0 0.0
    %2356 = vmatpush1.msra.mxu0 %v2350
    %2357 = vmatprep.subr.mxu0 0.0
    %2358 = vmatpush1.msra.mxu0 %v2352
    %2359 = vmatprep.subr.mxu0 0.0
    %2360 = vmatpush1.msra.mxu0 0.0
    %2361 = vmatprep.subr.mxu0 0.0
    %2362 = vmatpush1.msra.mxu0 0.0
    %2363 = vmatprep.subr.mxu0 0.0
    %2364 = vmatpush1.msra.mxu0 0.0
    %2365 = vmatprep.subr.mxu0 0.0
    %2366 = vmatpush1.msra.mxu0 0.0
    %2367 = vmatprep.subr.mxu0 0.0
    %2368 = vmatpush1.msra.mxu0 0.0
    %2369 = vmatprep.subr.mxu0 0.0
    %2370 = vmatpush1.msra.mxu0 0.0
    %2371 = vmatprep.subr.mxu0 0.0
    %2372 = vmatpush1.msra.mxu0 0.0
    %2373 = vmatprep.subr.mxu0 0.0
    %2374 = vmatpush1.msra.mxu0 0.0
    %2375 = vmatprep.subr.mxu0 0.0
    %2376 = vmatpush1.msra.mxu0 0.0
    %2377 = vmatprep.subr.mxu0 0.0
    %2378 = vmatpush1.msra.mxu0 0.0
    %2379 = vmatprep.subr.mxu0 0.0
    %2380 = vmatpush1.msra.mxu0 0.0
    %2381 = vmatprep.subr.mxu0 0.0
    %2382 = vmatpush1.msra.mxu0 0.0
    %2383 = vmatprep.subr.mxu0 0.0
    %2384 = vmatpush1.msra.mxu0 0.0
    %2385 = vmatprep.subr.mxu0 0.0
    %2386 = vmatpush1.msra.mxu0 0.0
    %2387 = vmatprep.subr.mxu0 0.0
    %2388 = vmatpush1.msra.mxu0 0.0
    %2389 = vmatprep.subr.mxu0 0.0
    %2390 = vmatpush1.msra.mxu0 0.0
    %2391 = vmatprep.subr.mxu0 0.0
    %2392 = vmatpush1.msra.mxu0 0.0
    %2393 = vmatprep.subr.mxu0 0.0
    %2394 = vmatpush1.msra.mxu0 0.0
    %2395 = vmatprep.subr.mxu0 0.0
    %2396 = vmatpush1.msra.mxu0 0.0
    %2397 = vmatprep.subr.mxu0 0.0
    %2398 = vmatpush1.msra.mxu0 0.0
    %2399 = vmatprep.subr.mxu0 0.0
    %2400 = vmatpush1.msra.mxu0 0.0
    %2401 = vmatprep.subr.mxu0 0.0
    %2402 = vmatpush1.msra.mxu0 0.0
    %2403 = vmatprep.subr.mxu0 0.0
    %2404 = vmatpush1.msra.mxu0 0.0
    %2405 = vmatprep.subr.mxu0 0.0
    %2406 = vmatpush1.msra.mxu0 0.0
    %2407 = vmatprep.subr.mxu0 0.0
    %2408 = vmatpush1.msra.mxu0 0.0
    %2409 = vmatprep.subr.mxu0 0.0
    %2410 = vmatpush1.msra.mxu0 0.0
    %2411 = vmatprep.subr.mxu0 0.0
    %2412 = vmatpush1.msra.mxu0 0.0
    %2413 = vmatprep.subr.mxu0 0.0
    %2414 = vmatpush1.msra.mxu0 0.0
    %2415 = vmatprep.subr.mxu0 0.0
    %2416 = vmatpush1.msra.mxu0 0.0
    %2417 = vmatprep.subr.mxu0 0.0
    %2418 = vmatpush1.msra.mxu0 0.0
    %2419 = vmatprep.mubr.f32.mxu0 0.0
    %2420 = vmatmul.mubr.f32.gmra.mrb[0].mxu0 %v191
    %v2421 = vpop.f32.mrb[0].mxu0
    %v2422 = vadd.f32 0.0, %v2421
    %v2423 = vpop.f32.mrb[0].mxu0
    %2424 = vmatprep.mubr.f32.mxu0 0.0
    %2425 = vmatmul.mubr.f32.gmra.mrb[0].mxu0 %v194
    %v2426 = vpop.f32.mrb[0].mxu0
    %v2427 = vadd.f32 0.0, %v2426
    %v2428 = vpop.f32.mrb[0].mxu0
    %2429 = vdwg.mxu0
    %2430 = vmatprep.subr.mxu0 0.0
    %2431 = vmatpush1.msra.mxu0 %v2339
    %2432 = vmatprep.subr.mxu0 0.0
    %2433 = vmatpush1.msra.mxu0 %v2345
    %2434 = vmatprep.subr.mxu0 0.0
    %2435 = vmatpush1.msra.mxu0 0.0
    %2436 = vmatprep.subr.mxu0 0.0
    %2437 = vmatpush1.msra.mxu0 0.0
    %2438 = vmatprep.subr.mxu0 0.0
    %2439 = vmatpush1.msra.mxu0 0.0
    %2440 = vmatprep.subr.mxu0 0.0
    %2441 = vmatpush1.msra.mxu0 0.0
    %2442 = vmatprep.subr.mxu0 0.0
    %2443 = vmatpush1.msra.mxu0 0.0
    %2444 = vmatprep.subr.mxu0 0.0
    %2445 = vmatpush1.msra.mxu0 0.0
    %2446 = vmatprep.subr.mxu0 0.0
    %2447 = vmatpush1.msra.mxu0 0.0
    %2448 = vmatprep.subr.mxu0 0.0
    %2449 = vmatpush1.msra.mxu0 0.0
    %2450 = vmatprep.subr.mxu0 0.0
    %2451 = vmatpush1.msra.mxu0 0.0
    %2452 = vmatprep.subr.mxu0 0.0
    %2453 = vmatpush1.msra.mxu0 0.0
    %2454 = vmatprep.subr.mxu0 0.0
    %2455 = vmatpush1.msra.mxu0 0.0
    %2456 = vmatprep.subr.mxu0 0.0
    %2457 = vmatpush1.msra.mxu0 0.0
    %2458 = vmatprep.subr.mxu0 0.0
    %2459 = vmatpush1.msra.mxu0 0.0
    %2460 = vmatprep.subr.mxu0 0.0
    %2461 = vmatpush1.msra.mxu0 0.0
    %2462 = vmatprep.subr.mxu0 0.0
    %2463 = vmatpush1.msra.mxu0 0.0
    %2464 = vmatprep.subr.mxu0 0.0
    %2465 = vmatpush1.msra.mxu0 0.0
    %2466 = vmatprep.subr.mxu0 0.0
    %2467 = vmatpush1.msra.mxu0 0.0
    %2468 = vmatprep.subr.mxu0 0.0
    %2469 = vmatpush1.msra.mxu0 0.0
    %2470 = vmatprep.subr.mxu0 0.0
    %2471 = vmatpush1.msra.mxu0 0.0
    %2472 = vmatprep.subr.mxu0 0.0
    %2473 = vmatpush1.msra.mxu0 0.0
    %2474 = vmatprep.subr.mxu0 0.0
    %2475 = vmatpush1.msra.mxu0 0.0
    %2476 = vmatprep.subr.mxu0 0.0
    %2477 = vmatpush1.msra.mxu0 0.0
    %2478 = vmatprep.subr.mxu0 0.0
    %2479 = vmatpush1.msra.mxu0 0.0
    %2480 = vmatprep.subr.mxu0 0.0
    %2481 = vmatpush1.msra.mxu0 0.0
    %2482 = vmatprep.subr.mxu0 0.0
    %2483 = vmatpush1.msra.mxu0 0.0
    %2484 = vmatprep.subr.mxu0 0.0
    %2485 = vmatpush1.msra.mxu0 0.0
    %2486 = vmatprep.subr.mxu0 0.0
    %2487 = vmatpush1.msra.mxu0 0.0
    %2488 = vmatprep.subr.mxu0 0.0
    %2489 = vmatpush1.msra.mxu0 0.0
    %2490 = vmatprep.subr.mxu0 0.0
    %2491 = vmatpush1.msra.mxu0 0.0
    %2492 = vmatprep.subr.mxu0 0.0
    %2493 = vmatpush1.msra.mxu0 0.0
    %2494 = vmatprep.mubr.f32.mxu0 0.0
    %2495 = vmatmul.mubr.f32.gmra.mrb[0].mxu0 %v272
    %v2496 = vpop.f32.mrb[0].mxu0
    %v2497 = vadd.f32 %v2422, %v2496
    %v2498 = vpop.f32.mrb[0].mxu0
    %2499 = vmatprep.mubr.f32.mxu0 0.0
    %2500 = vmatmul.mubr.f32.gmra.mrb[0].mxu0 %v275
    %v2501 = vpop.f32.mrb[0].mxu0
    %v2502 = vadd.f32 %v2427, %v2501
    %v2503 = vpop.f32.mrb[0].mxu0
    %2504 = vdwg.mxu0
    %v2506 = vsel %vm97, %v2497, 0
    %v2509 = vsel %vm97, %v2502, 0
    %2511 = vmatprep.subr.mxu0 0.0
    %2512 = vmatpush1.msra.mxu0 %v68
    %2513 = vmatprep.subr.mxu0 0.0
    %2514 = vmatpush1.msra.mxu0 %v69
    %2515 = vmatprep.subr.mxu0 0.0
    %2516 = vmatpush1.msra.mxu0 %v70
    %2517 = vmatprep.subr.mxu0 0.0
    %2518 = vmatpush1.msra.mxu0 %v71
    %2519 = vmatprep.subr.mxu0 0.0
    %2520 = vmatpush1.msra.mxu0 0.0
    %2521 = vmatprep.subr.mxu0 0.0
    %2522 = vmatpush1.msra.mxu0 0.0
    %2523 = vmatprep.subr.mxu0 0.0
    %2524 = vmatpush1.msra.mxu0 0.0
    %2525 = vmatprep.subr.mxu0 0.0
    %2526 = vmatpush1.msra.mxu0 0.0
    %2527 = vmatprep.subr.mxu0 0.0
    %2528 = vmatpush1.msra.mxu0 0.0
    %2529 = vmatprep.subr.mxu0 0.0
    %2530 = vmatpush1.msra.mxu0 0.0
    %2531 = vmatprep.subr.mxu0 0.0
    %2532 = vmatpush1.msra.mxu0 0.0
    %2533 = vmatprep.subr.mxu0 0.0
    %2534 = vmatpush1.msra.mxu0 0.0
    %2535 = vmatprep.subr.mxu0 0.0
    %2536 = vmatpush1.msra.mxu0 0.0
    %2537 = vmatprep.subr.mxu0 0.0
    %2538 = vmatpush1.msra.mxu0 0.0
    %2539 = vmatprep.subr.mxu0 0.0
    %2540 = vmatpush1.msra.mxu0 0.0
    %2541 = vmatprep.subr.mxu0 0.0
    %2542 = vmatpush1.msra.mxu0 0.0
    %2543 = vmatprep.subr.mxu0 0.0
    %2544 = vmatpush1.msra.mxu0 0.0
    %2545 = vmatprep.subr.mxu0 0.0
    %2546 = vmatpush1.msra.mxu0 0.0
    %2547 = vmatprep.subr.mxu0 0.0
    %2548 = vmatpush1.msra.mxu0 0.0
    %2549 = vmatprep.subr.mxu0 0.0
    %2550 = vmatpush1.msra.mxu0 0.0
    %2551 = vmatprep.subr.mxu0 0.0
    %2552 = vmatpush1.msra.mxu0 0.0
    %2553 = vmatprep.subr.mxu0 0.0
    %2554 = vmatpush1.msra.mxu0 0.0
    %2555 = vmatprep.subr.mxu0 0.0
    %2556 = vmatpush1.msra.mxu0 0.0
    %2557 = vmatprep.subr.mxu0 0.0
    %2558 = vmatpush1.msra.mxu0 0.0
    %2559 = vmatprep.subr.mxu0 0.0
    %2560 = vmatpush1.msra.mxu0 0.0
    %2561 = vmatprep.subr.mxu0 0.0
    %2562 = vmatpush1.msra.mxu0 0.0
    %2563 = vmatprep.subr.mxu0 0.0
    %2564 = vmatpush1.msra.mxu0 0.0
    %2565 = vmatprep.subr.mxu0 0.0
    %2566 = vmatpush1.msra.mxu0 0.0
    %2567 = vmatprep.subr.mxu0 0.0
    %2568 = vmatpush1.msra.mxu0 0.0
    %2569 = vmatprep.subr.mxu0 0.0
    %2570 = vmatpush1.msra.mxu0 0.0
    %2571 = vmatprep.subr.mxu0 0.0
    %2572 = vmatpush1.msra.mxu0 0.0
    %2573 = vmatprep.subr.mxu0 0.0
    %2574 = vmatpush1.msra.mxu0 0.0
    %2575 = vmatprep.mubr.f32.mxu0 0.0
    %2576 = vmatmul.mubr.f32.gmra.mrb[0].mxu0 %v2506
    %v2577 = vpop.f32.mrb[0].mxu0
    %v2578 = vadd.f32 %v2337, %v2577
    %v2579 = vpop.f32.mrb[0].mxu0
    %2580 = vmatprep.mubr.f32.mxu0 0.0
    %2581 = vmatmul.mubr.f32.gmra.mrb[0].mxu0 %v2509
    %v2582 = vpop.f32.mrb[0].mxu0
    %v2583 = vadd.f32 %v2343, %v2582
    %v2584 = vpop.f32.mrb[0].mxu0
    %2585 = vdwg.mxu0
    %v2586 = vxor.u32 %v2578, 2147483648
    %v2587 = vxor.u32 %v2583, 2147483648
    %v2588 = vmul.f32 %v2586, 1.442695
    %v2589 = vpow.pop %v2588
    %v2590 = vmul.f32 %v2587, 1.442695
    %v2591 = vpow.pop %v2590
    %v2592 = vadd.f32 %v2589, 1.0
    %v2593 = vadd.f32 %v2591, 1.0
    %v2594 = vrcp.pop %v2592
    %v2595 = vmul.f32 1.0, %v2594
    %v2596 = vrcp.pop %v2593
    %v2597 = vmul.f32 1.0, %v2596
    %2600 = vrot.lane.b32.xlu0 %v2578, 32
    %v2601 = vpop.permute.xlu0 %2600
    %2602 = vrot.lane.b32.xlu0 %v2583, 32
    %v2603 = vpop.permute.xlu0 %2602
    %v2606 = vmul.f32 %v2595, %v2601
    %v2607 = vmul.f32 %v2597, %v2603
    %2610 = vrot.lane.b32.xlu0 %v2606, 64
    %v2611 = vpop.permute.xlu0 %2610
    %2612 = vrot.lane.b32.xlu0 %v2607, 64
    %v2613 = vpop.permute.xlu0 %2612
    %v2616 = vadd.f32 %v2578, %v2611
    %v2617 = vadd.f32 %v2583, %v2613
    %v2618 = vtanh.pop %v2616
    %v2619 = vtanh.pop %v2617
    %v2620 = vsub.f32 1.0, %v2595
    %v2621 = vsub.f32 1.0, %v2597
    %2624 = vrot.lane.b32.xlu0 %v2618, 96
    %v2625 = vpop.permute.xlu0 %2624
    %2626 = vrot.lane.b32.xlu0 %v2619, 96
    %v2627 = vpop.permute.xlu0 %2626
    %v2630 = vmul.f32 %v2620, %v2625
    %v2631 = vmul.f32 %v2621, %v2627
    %2632 = vrot.lane.b32.xlu0 %v2125, 32
    %v2633 = vpop.permute.xlu0 %2632
    %2634 = vrot.lane.b32.xlu0 %v2127, 32
    %v2635 = vpop.permute.xlu0 %2634
    %v2638 = vmul.f32 %v2595, %v2633
    %v2639 = vmul.f32 %v2597, %v2635
    %v2640 = vadd.f32 %v2630, %v2638
    %v2641 = vadd.f32 %v2631, %v2639
    %2644 = vrot.lane.b32.xlu0 %v2640, 96
    %v2645 = vpop.permute.xlu0 %2644
    %2646 = vrot.lane.b32.xlu0 %v2641, 96
    %v2647 = vpop.permute.xlu0 %2646
    %v2648 = vsel %vm97, %v2645, 0
    %v2650 = vsel %vm97, %v2647, 0
    %2652 = vmatprep.subr.mxu0 %v61
    %2653 = vmatpush1.msra.mxu0 %v60
    %2654 = vmatprep.subr.mxu0 %v63
    %2655 = vmatpush1.msra.mxu0 %v62
    %2656 = vmatprep.subr.mxu0 %v65
    %2657 = vmatpush1.msra.mxu0 %v64
    %2658 = vmatprep.subr.mxu0 %v67
    %2659 = vmatpush1.msra.mxu0 %v66
    %2660 = vmatprep.subr.mxu0 0.0
    %2661 = vmatpush1.msra.mxu0 0.0
    %2662 = vmatprep.subr.mxu0 0.0
    %2663 = vmatpush1.msra.mxu0 0.0
    %2664 = vmatprep.subr.mxu0 0.0
    %2665 = vmatpush1.msra.mxu0 0.0
    %2666 = vmatprep.subr.mxu0 0.0
    %2667 = vmatpush1.msra.mxu0 0.0
    %2668 = vmatprep.subr.mxu0 0.0
    %2669 = vmatpush1.msra.mxu0 0.0
    %2670 = vmatprep.subr.mxu0 0.0
    %2671 = vmatpush1.msra.mxu0 0.0
    %2672 = vmatprep.subr.mxu0 0.0
    %2673 = vmatpush1.msra.mxu0 0.0
    %2674 = vmatprep.subr.mxu0 0.0
    %2675 = vmatpush1.msra.mxu0 0.0
    %2676 = vmatprep.subr.mxu0 0.0
    %2677 = vmatpush1.msra.mxu0 0.0
    %2678 = vmatprep.subr.mxu0 0.0
    %2679 = vmatpush1.msra.mxu0 0.0
    %2680 = vmatprep.subr.mxu0 0.0
    %2681 = vmatpush1.msra.mxu0 0.0
    %2682 = vmatprep.subr.mxu0 0.0
    %2683 = vmatpush1.msra.mxu0 0.0
    %2684 = vmatprep.subr.mxu0 0.0
    %2685 = vmatpush1.msra.mxu0 0.0
    %2686 = vmatprep.subr.mxu0 0.0
    %2687 = vmatpush1.msra.mxu0 0.0
    %2688 = vmatprep.subr.mxu0 0.0
    %2689 = vmatpush1.msra.mxu0 0.0
    %2690 = vmatprep.subr.mxu0 0.0
    %2691 = vmatpush1.msra.mxu0 0.0
    %2692 = vmatprep.subr.mxu0 0.0
    %2693 = vmatpush1.msra.mxu0 0.0
    %2694 = vmatprep.subr.mxu0 0.0
    %2695 = vmatpush1.msra.mxu0 0.0
    %2696 = vmatprep.subr.mxu0 0.0
    %2697 = vmatpush1.msra.mxu0 0.0
    %2698 = vmatprep.subr.mxu0 0.0
    %2699 = vmatpush1.msra.mxu0 0.0
    %2700 = vmatprep.subr.mxu0 0.0
    %2701 = vmatpush1.msra.mxu0 0.0
    %2702 = vmatprep.subr.mxu0 0.0
    %2703 = vmatpush1.msra.mxu0 0.0
    %2704 = vmatprep.subr.mxu0 0.0
    %2705 = vmatpush1.msra.mxu0 0.0
    %2706 = vmatprep.subr.mxu0 0.0
    %2707 = vmatpush1.msra.mxu0 0.0
    %2708 = vmatprep.subr.mxu0 0.0
    %2709 = vmatpush1.msra.mxu0 0.0
    %2710 = vmatprep.subr.mxu0 0.0
    %2711 = vmatpush1.msra.mxu0 0.0
    %2712 = vmatprep.subr.mxu0 0.0
    %2713 = vmatpush1.msra.mxu0 0.0
    %2714 = vmatprep.subr.mxu0 0.0
    %2715 = vmatpush1.msra.mxu0 0.0
    %2716 = vmatprep.mubr.f32.mxu0 0.0
    %2717 = vmatmul.mubr.f32.gmra.mrb[0].mxu0 %v2648
    %v2718 = vpop.f32.mrb[0].mxu0
    %v2719 = vadd.f32 %v86, %v2718
    %v2720 = vpop.f32.mrb[0].mxu0
    %v2721 = vadd.f32 %v90, %v2720
    %2722 = vmatprep.mubr.f32.mxu0 0.0
    %2723 = vmatmul.mubr.f32.gmra.mrb[0].mxu0 %v2650
    %v2724 = vpop.f32.mrb[0].mxu0
    %v2725 = vadd.f32 %v86, %v2724
    %v2726 = vpop.f32.mrb[0].mxu0
    %v2727 = vadd.f32 %v90, %v2726
    %2728 = vdwg.mxu0
    %2731 = vrot.lane.b32.xlu0 %v2721, 96
    %v2732 = vpop.permute.xlu0 %2731
    %2733 = vrot.lane.b32.xlu0 %v2727, 96
    %v2734 = vpop.permute.xlu0 %2733
    %2737 = vmatprep.subr.mxu0 0.0
    %2738 = vmatpush1.msra.mxu0 %v2732
    %2739 = vmatprep.subr.mxu0 0.0
    %2740 = vmatpush1.msra.mxu0 %v2734
    %2741 = vmatprep.subr.mxu0 0.0
    %2742 = vmatpush1.msra.mxu0 0.0
    %2743 = vmatprep.subr.mxu0 0.0
    %2744 = vmatpush1.msra.mxu0 0.0
    %2745 = vmatprep.subr.mxu0 0.0
    %2746 = vmatpush1.msra.mxu0 0.0
    %2747 = vmatprep.subr.mxu0 0.0
    %2748 = vmatpush1.msra.mxu0 0.0
    %2749 = vmatprep.subr.mxu0 0.0
    %2750 = vmatpush1.msra.mxu0 0.0
    %2751 = vmatprep.subr.mxu0 0.0
    %2752 = vmatpush1.msra.mxu0 0.0
    %2753 = vmatprep.subr.mxu0 0.0
    %2754 = vmatpush1.msra.mxu0 0.0
    %2755 = vmatprep.subr.mxu0 0.0
    %2756 = vmatpush1.msra.mxu0 0.0
    %2757 = vmatprep.subr.mxu0 0.0
    %2758 = vmatpush1.msra.mxu0 0.0
    %2759 = vmatprep.subr.mxu0 0.0
    %2760 = vmatpush1.msra.mxu0 0.0
    %2761 = vmatprep.subr.mxu0 0.0
    %2762 = vmatpush1.msra.mxu0 0.0
    %2763 = vmatprep.subr.mxu0 0.0
    %2764 = vmatpush1.msra.mxu0 0.0
    %2765 = vmatprep.subr.mxu0 0.0
    %2766 = vmatpush1.msra.mxu0 0.0
    %2767 = vmatprep.subr.mxu0 0.0
    %2768 = vmatpush1.msra.mxu0 0.0
    %2769 = vmatprep.subr.mxu0 0.0
    %2770 = vmatpush1.msra.mxu0 0.0
    %2771 = vmatprep.subr.mxu0 0.0
    %2772 = vmatpush1.msra.mxu0 0.0
    %2773 = vmatprep.subr.mxu0 0.0
    %2774 = vmatpush1.msra.mxu0 0.0
    %2775 = vmatprep.subr.mxu0 0.0
    %2776 = vmatpush1.msra.mxu0 0.0
    %2777 = vmatprep.subr.mxu0 0.0
    %2778 = vmatpush1.msra.mxu0 0.0
    %2779 = vmatprep.subr.mxu0 0.0
    %2780 = vmatpush1.msra.mxu0 0.0
    %2781 = vmatprep.subr.mxu0 0.0
    %2782 = vmatpush1.msra.mxu0 0.0
    %2783 = vmatprep.subr.mxu0 0.0
    %2784 = vmatpush1.msra.mxu0 0.0
    %2785 = vmatprep.subr.mxu0 0.0
    %2786 = vmatpush1.msra.mxu0 0.0
    %2787 = vmatprep.subr.mxu0 0.0
    %2788 = vmatpush1.msra.mxu0 0.0
    %2789 = vmatprep.subr.mxu0 0.0
    %2790 = vmatpush1.msra.mxu0 0.0
    %2791 = vmatprep.subr.mxu0 0.0
    %2792 = vmatpush1.msra.mxu0 0.0
    %2793 = vmatprep.subr.mxu0 0.0
    %2794 = vmatpush1.msra.mxu0 0.0
    %2795 = vmatprep.subr.mxu0 0.0
    %2796 = vmatpush1.msra.mxu0 0.0
    %2797 = vmatprep.subr.mxu0 0.0
    %2798 = vmatpush1.msra.mxu0 0.0
    %2799 = vmatprep.subr.mxu0 0.0
    %2800 = vmatpush1.msra.mxu0 0.0
    %2801 = vmatprep.mubr.f32.mxu0 0.0
    %2802 = vmatmul.mubr.f32.gmra.mrb[0].mxu0 %v191
    %v2803 = vpop.f32.mrb[0].mxu0
    %v2804 = vadd.f32 0.0, %v2803
    %v2805 = vpop.f32.mrb[0].mxu0
    %2806 = vmatprep.mubr.f32.mxu0 0.0
    %2807 = vmatmul.mubr.f32.gmra.mrb[0].mxu0 %v194
    %v2808 = vpop.f32.mrb[0].mxu0
    %v2809 = vadd.f32 0.0, %v2808
    %v2810 = vpop.f32.mrb[0].mxu0
    %2811 = vdwg.mxu0
    %2812 = vmatprep.subr.mxu0 0.0
    %2813 = vmatpush1.msra.mxu0 %v2721
    %2814 = vmatprep.subr.mxu0 0.0
    %2815 = vmatpush1.msra.mxu0 %v2727
    %2816 = vmatprep.subr.mxu0 0.0
    %2817 = vmatpush1.msra.mxu0 0.0
    %2818 = vmatprep.subr.mxu0 0.0
    %2819 = vmatpush1.msra.mxu0 0.0
    %2820 = vmatprep.subr.mxu0 0.0
    %2821 = vmatpush1.msra.mxu0 0.0
    %2822 = vmatprep.subr.mxu0 0.0
    %2823 = vmatpush1.msra.mxu0 0.0
    %2824 = vmatprep.subr.mxu0 0.0
    %2825 = vmatpush1.msra.mxu0 0.0
    %2826 = vmatprep.subr.mxu0 0.0
    %2827 = vmatpush1.msra.mxu0 0.0
    %2828 = vmatprep.subr.mxu0 0.0
    %2829 = vmatpush1.msra.mxu0 0.0
    %2830 = vmatprep.subr.mxu0 0.0
    %2831 = vmatpush1.msra.mxu0 0.0
    %2832 = vmatprep.subr.mxu0 0.0
    %2833 = vmatpush1.msra.mxu0 0.0
    %2834 = vmatprep.subr.mxu0 0.0
    %2835 = vmatpush1.msra.mxu0 0.0
    %2836 = vmatprep.subr.mxu0 0.0
    %2837 = vmatpush1.msra.mxu0 0.0
    %2838 = vmatprep.subr.mxu0 0.0
    %2839 = vmatpush1.msra.mxu0 0.0
    %2840 = vmatprep.subr.mxu0 0.0
    %2841 = vmatpush1.msra.mxu0 0.0
    %2842 = vmatprep.subr.mxu0 0.0
    %2843 = vmatpush1.msra.mxu0 0.0
    %2844 = vmatprep.subr.mxu0 0.0
    %2845 = vmatpush1.msra.mxu0 0.0
    %2846 = vmatprep.subr.mxu0 0.0
    %2847 = vmatpush1.msra.mxu0 0.0
    %2848 = vmatprep.subr.mxu0 0.0
    %2849 = vmatpush1.msra.mxu0 0.0
    %2850 = vmatprep.subr.mxu0 0.0
    %2851 = vmatpush1.msra.mxu0 0.0
    %2852 = vmatprep.subr.mxu0 0.0
    %2853 = vmatpush1.msra.mxu0 0.0
    %2854 = vmatprep.subr.mxu0 0.0
    %2855 = vmatpush1.msra.mxu0 0.0
    %2856 = vmatprep.subr.mxu0 0.0
    %2857 = vmatpush1.msra.mxu0 0.0
    %2858 = vmatprep.subr.mxu0 0.0
    %2859 = vmatpush1.msra.mxu0 0.0
    %2860 = vmatprep.subr.mxu0 0.0
    %2861 = vmatpush1.msra.mxu0 0.0
    %2862 = vmatprep.subr.mxu0 0.0
    %2863 = vmatpush1.msra.mxu0 0.0
    %2864 = vmatprep.subr.mxu0 0.0
    %2865 = vmatpush1.msra.mxu0 0.0
    %2866 = vmatprep.subr.mxu0 0.0
    %2867 = vmatpush1.msra.mxu0 0.0
    %2868 = vmatprep.subr.mxu0 0.0
    %2869 = vmatpush1.msra.mxu0 0.0
    %2870 = vmatprep.subr.mxu0 0.0
    %2871 = vmatpush1.msra.mxu0 0.0
    %2872 = vmatprep.subr.mxu0 0.0
    %2873 = vmatpush1.msra.mxu0 0.0
    %2874 = vmatprep.subr.mxu0 0.0
    %2875 = vmatpush1.msra.mxu0 0.0
    %2876 = vmatprep.mubr.f32.mxu0 0.0
    %2877 = vmatmul.mubr.f32.gmra.mrb[0].mxu0 %v272
    %v2878 = vpop.f32.mrb[0].mxu0
    %v2879 = vadd.f32 %v2804, %v2878
    %v2880 = vpop.f32.mrb[0].mxu0
    %2881 = vmatprep.mubr.f32.mxu0 0.0
    %2882 = vmatmul.mubr.f32.gmra.mrb[0].mxu0 %v275
    %v2883 = vpop.f32.mrb[0].mxu0
    %v2884 = vadd.f32 %v2809, %v2883
    %v2885 = vpop.f32.mrb[0].mxu0
    %2886 = vdwg.mxu0
    %v2888 = vsel %vm97, %v2879, 0
    %v2891 = vsel %vm97, %v2884, 0
    %2893 = vmatprep.subr.mxu0 0.0
    %2894 = vmatpush1.msra.mxu0 %v68
    %2895 = vmatprep.subr.mxu0 0.0
    %2896 = vmatpush1.msra.mxu0 %v69
    %2897 = vmatprep.subr.mxu0 0.0
    %2898 = vmatpush1.msra.mxu0 %v70
    %2899 = vmatprep.subr.mxu0 0.0
    %2900 = vmatpush1.msra.mxu0 %v71
    %2901 = vmatprep.subr.mxu0 0.0
    %2902 = vmatpush1.msra.mxu0 0.0
    %2903 = vmatprep.subr.mxu0 0.0
    %2904 = vmatpush1.msra.mxu0 0.0
    %2905 = vmatprep.subr.mxu0 0.0
    %2906 = vmatpush1.msra.mxu0 0.0
    %2907 = vmatprep.subr.mxu0 0.0
    %2908 = vmatpush1.msra.mxu0 0.0
    %2909 = vmatprep.subr.mxu0 0.0
    %2910 = vmatpush1.msra.mxu0 0.0
    %2911 = vmatprep.subr.mxu0 0.0
    %2912 = vmatpush1.msra.mxu0 0.0
    %2913 = vmatprep.subr.mxu0 0.0
    %2914 = vmatpush1.msra.mxu0 0.0
    %2915 = vmatprep.subr.mxu0 0.0
    %2916 = vmatpush1.msra.mxu0 0.0
    %2917 = vmatprep.subr.mxu0 0.0
    %2918 = vmatpush1.msra.mxu0 0.0
    %2919 = vmatprep.subr.mxu0 0.0
    %2920 = vmatpush1.msra.mxu0 0.0
    %2921 = vmatprep.subr.mxu0 0.0
    %2922 = vmatpush1.msra.mxu0 0.0
    %2923 = vmatprep.subr.mxu0 0.0
    %2924 = vmatpush1.msra.mxu0 0.0
    %2925 = vmatprep.subr.mxu0 0.0
    %2926 = vmatpush1.msra.mxu0 0.0
    %2927 = vmatprep.subr.mxu0 0.0
    %2928 = vmatpush1.msra.mxu0 0.0
    %2929 = vmatprep.subr.mxu0 0.0
    %2930 = vmatpush1.msra.mxu0 0.0
    %2931 = vmatprep.subr.mxu0 0.0
    %2932 = vmatpush1.msra.mxu0 0.0
    %2933 = vmatprep.subr.mxu0 0.0
    %2934 = vmatpush1.msra.mxu0 0.0
    %2935 = vmatprep.subr.mxu0 0.0
    %2936 = vmatpush1.msra.mxu0 0.0
    %2937 = vmatprep.subr.mxu0 0.0
    %2938 = vmatpush1.msra.mxu0 0.0
    %2939 = vmatprep.subr.mxu0 0.0
    %2940 = vmatpush1.msra.mxu0 0.0
    %2941 = vmatprep.subr.mxu0 0.0
    %2942 = vmatpush1.msra.mxu0 0.0
    %2943 = vmatprep.subr.mxu0 0.0
    %2944 = vmatpush1.msra.mxu0 0.0
    %2945 = vmatprep.subr.mxu0 0.0
    %2946 = vmatpush1.msra.mxu0 0.0
    %2947 = vmatprep.subr.mxu0 0.0
    %2948 = vmatpush1.msra.mxu0 0.0
    %2949 = vmatprep.subr.mxu0 0.0
    %2950 = vmatpush1.msra.mxu0 0.0
    %2951 = vmatprep.subr.mxu0 0.0
    %2952 = vmatpush1.msra.mxu0 0.0
    %2953 = vmatprep.subr.mxu0 0.0
    %2954 = vmatpush1.msra.mxu0 0.0
    %2955 = vmatprep.subr.mxu0 0.0
    %2956 = vmatpush1.msra.mxu0 0.0
    %2957 = vmatprep.mubr.f32.mxu0 0.0
    %2958 = vmatmul.mubr.f32.gmra.mrb[0].mxu0 %v2888
    %v2959 = vpop.f32.mrb[0].mxu0
    %v2960 = vadd.f32 %v2719, %v2959
    %v2961 = vpop.f32.mrb[0].mxu0
    %2962 = vmatprep.mubr.f32.mxu0 0.0
    %2963 = vmatmul.mubr.f32.gmra.mrb[0].mxu0 %v2891
    %v2964 = vpop.f32.mrb[0].mxu0
    %v2965 = vadd.f32 %v2725, %v2964
    %v2966 = vpop.f32.mrb[0].mxu0
    %2967 = vdwg.mxu0
    %v2968 = vxor.u32 %v2960, 2147483648
    %v2969 = vxor.u32 %v2965, 2147483648
    %v2970 = vmul.f32 %v2968, 1.442695
    %v2971 = vpow.pop %v2970
    %v2972 = vmul.f32 %v2969, 1.442695
    %v2973 = vpow.pop %v2972
    %v2974 = vadd.f32 %v2971, 1.0
    %v2975 = vadd.f32 %v2973, 1.0
    %v2976 = vrcp.pop %v2974
    %v2977 = vmul.f32 1.0, %v2976
    %v2978 = vrcp.pop %v2975
    %v2979 = vmul.f32 1.0, %v2978
    %2982 = vrot.lane.b32.xlu0 %v2960, 32
    %v2983 = vpop.permute.xlu0 %2982
    %2984 = vrot.lane.b32.xlu0 %v2965, 32
    %v2985 = vpop.permute.xlu0 %2984
    %v2988 = vmul.f32 %v2977, %v2983
    %v2989 = vmul.f32 %v2979, %v2985
    %2992 = vrot.lane.b32.xlu0 %v2988, 64
    %v2993 = vpop.permute.xlu0 %2992
    %2994 = vrot.lane.b32.xlu0 %v2989, 64
    %v2995 = vpop.permute.xlu0 %2994
    %v2998 = vadd.f32 %v2960, %v2993
    %v2999 = vadd.f32 %v2965, %v2995
    %v3000 = vtanh.pop %v2998
    %v3001 = vtanh.pop %v2999
    %v3002 = vsub.f32 1.0, %v2977
    %v3003 = vsub.f32 1.0, %v2979
    %3006 = vrot.lane.b32.xlu0 %v3000, 96
    %v3007 = vpop.permute.xlu0 %3006
    %3008 = vrot.lane.b32.xlu0 %v3001, 96
    %v3009 = vpop.permute.xlu0 %3008
    %v3012 = vmul.f32 %v3002, %v3007
    %v3013 = vmul.f32 %v3003, %v3009
    %v3014 = vmul.f32 %v2977, %v2640
    %v3015 = vmul.f32 %v2979, %v2641
    %v3016 = vadd.f32 %v3012, %v3014
    %v3017 = vadd.f32 %v3013, %v3015
    %3018 = vmatprep.subr.mxu0 0.0
    %3019 = vmatpush1.msra.mxu0 %v76
    %3020 = vmatprep.subr.mxu0 0.0
    %3021 = vmatpush1.msra.mxu0 %v77
    %3022 = vmatprep.subr.mxu0 0.0
    %3023 = vmatpush1.msra.mxu0 %v78
    %3024 = vmatprep.subr.mxu0 0.0
    %3025 = vmatpush1.msra.mxu0 %v79
    %3026 = vmatprep.subr.mxu0 0.0
    %3027 = vmatpush1.msra.mxu0 0.0
    %3028 = vmatprep.subr.mxu0 0.0
    %3029 = vmatpush1.msra.mxu0 0.0
    %3030 = vmatprep.subr.mxu0 0.0
    %3031 = vmatpush1.msra.mxu0 0.0
    %3032 = vmatprep.subr.mxu0 0.0
    %3033 = vmatpush1.msra.mxu0 0.0
    %3034 = vmatprep.subr.mxu0 0.0
    %3035 = vmatpush1.msra.mxu0 0.0
    %3036 = vmatprep.subr.mxu0 0.0
    %3037 = vmatpush1.msra.mxu0 0.0
    %3038 = vmatprep.subr.mxu0 0.0
    %3039 = vmatpush1.msra.mxu0 0.0
    %3040 = vmatprep.subr.mxu0 0.0
    %3041 = vmatpush1.msra.mxu0 0.0
    %3042 = vmatprep.subr.mxu0 0.0
    %3043 = vmatpush1.msra.mxu0 0.0
    %3044 = vmatprep.subr.mxu0 0.0
    %3045 = vmatpush1.msra.mxu0 0.0
    %3046 = vmatprep.subr.mxu0 0.0
    %3047 = vmatpush1.msra.mxu0 0.0
    %3048 = vmatprep.subr.mxu0 0.0
    %3049 = vmatpush1.msra.mxu0 0.0
    %3050 = vmatprep.subr.mxu0 0.0
    %3051 = vmatpush1.msra.mxu0 0.0
    %3052 = vmatprep.subr.mxu0 0.0
    %3053 = vmatpush1.msra.mxu0 0.0
    %3054 = vmatprep.subr.mxu0 0.0
    %3055 = vmatpush1.msra.mxu0 0.0
    %3056 = vmatprep.subr.mxu0 0.0
    %3057 = vmatpush1.msra.mxu0 0.0
    %3058 = vmatprep.subr.mxu0 0.0
    %3059 = vmatpush1.msra.mxu0 0.0
    %3060 = vmatprep.subr.mxu0 0.0
    %3061 = vmatpush1.msra.mxu0 0.0
    %3062 = vmatprep.subr.mxu0 0.0
    %3063 = vmatpush1.msra.mxu0 0.0
    %3064 = vmatprep.subr.mxu0 0.0
    %3065 = vmatpush1.msra.mxu0 0.0
    %3066 = vmatprep.subr.mxu0 0.0
    %3067 = vmatpush1.msra.mxu0 0.0
    %3068 = vmatprep.subr.mxu0 0.0
    %3069 = vmatpush1.msra.mxu0 0.0
    %3070 = vmatprep.subr.mxu0 0.0
    %3071 = vmatpush1.msra.mxu0 0.0
    %3072 = vmatprep.subr.mxu0 0.0
    %3073 = vmatpush1.msra.mxu0 0.0
    %3074 = vmatprep.subr.mxu0 0.0
    %3075 = vmatpush1.msra.mxu0 0.0
    %3076 = vmatprep.subr.mxu0 0.0
    %3077 = vmatpush1.msra.mxu0 0.0
    %3078 = vmatprep.subr.mxu0 0.0
    %3079 = vmatpush1.msra.mxu0 0.0
    %3080 = vmatprep.subr.mxu0 0.0
    %3081 = vmatpush1.msra.mxu0 0.0
    %3082 = vmatprep.mubr.f32.mxu0 0.0
    %3083 = vmatmul.mubr.f32.gmra.mrb[0].mxu0 %v2265
    %v3084 = vpop.f32.mrb[0].mxu0
    %v3085 = vadd.f32 0.0, %v3084
    %v3086 = vpop.f32.mrb[0].mxu0
    %3087 = vmatprep.mubr.f32.mxu0 0.0
    %3088 = vmatmul.mubr.f32.gmra.mrb[0].mxu0 %v2268
    %v3089 = vpop.f32.mrb[0].mxu0
    %v3090 = vadd.f32 0.0, %v3089
    %v3091 = vpop.f32.mrb[0].mxu0
    %3092 = vdwg.mxu0
    %3095 = vrot.lane.b32.xlu0 %v3016, 96
    %v3096 = vpop.permute.xlu0 %3095
    %3097 = vrot.lane.b32.xlu0 %v3017, 96
    %v3098 = vpop.permute.xlu0 %3097
    %v3099 = vsel %vm97, %v3096, 0
    %v3101 = vsel %vm97, %v3098, 0
    %3103 = vmatprep.subr.mxu0 0.0
    %3104 = vmatpush1.msra.mxu0 %v72
    %3105 = vmatprep.subr.mxu0 0.0
    %3106 = vmatpush1.msra.mxu0 %v73
    %3107 = vmatprep.subr.mxu0 0.0
    %3108 = vmatpush1.msra.mxu0 %v74
    %3109 = vmatprep.subr.mxu0 0.0
    %3110 = vmatpush1.msra.mxu0 %v75
    %3111 = vmatprep.subr.mxu0 0.0
    %3112 = vmatpush1.msra.mxu0 0.0
    %3113 = vmatprep.subr.mxu0 0.0
    %3114 = vmatpush1.msra.mxu0 0.0
    %3115 = vmatprep.subr.mxu0 0.0
    %3116 = vmatpush1.msra.mxu0 0.0
    %3117 = vmatprep.subr.mxu0 0.0
    %3118 = vmatpush1.msra.mxu0 0.0
    %3119 = vmatprep.subr.mxu0 0.0
    %3120 = vmatpush1.msra.mxu0 0.0
    %3121 = vmatprep.subr.mxu0 0.0
    %3122 = vmatpush1.msra.mxu0 0.0
    %3123 = vmatprep.subr.mxu0 0.0
    %3124 = vmatpush1.msra.mxu0 0.0
    %3125 = vmatprep.subr.mxu0 0.0
    %3126 = vmatpush1.msra.mxu0 0.0
    %3127 = vmatprep.subr.mxu0 0.0
    %3128 = vmatpush1.msra.mxu0 0.0
    %3129 = vmatprep.subr.mxu0 0.0
    %3130 = vmatpush1.msra.mxu0 0.0
    %3131 = vmatprep.subr.mxu0 0.0
    %3132 = vmatpush1.msra.mxu0 0.0
    %3133 = vmatprep.subr.mxu0 0.0
    %3134 = vmatpush1.msra.mxu0 0.0
    %3135 = vmatprep.subr.mxu0 0.0
    %3136 = vmatpush1.msra.mxu0 0.0
    %3137 = vmatprep.subr.mxu0 0.0
    %3138 = vmatpush1.msra.mxu0 0.0
    %3139 = vmatprep.subr.mxu0 0.0
    %3140 = vmatpush1.msra.mxu0 0.0
    %3141 = vmatprep.subr.mxu0 0.0
    %3142 = vmatpush1.msra.mxu0 0.0
    %3143 = vmatprep.subr.mxu0 0.0
    %3144 = vmatpush1.msra.mxu0 0.0
    %3145 = vmatprep.subr.mxu0 0.0
    %3146 = vmatpush1.msra.mxu0 0.0
    %3147 = vmatprep.subr.mxu0 0.0
    %3148 = vmatpush1.msra.mxu0 0.0
    %3149 = vmatprep.subr.mxu0 0.0
    %3150 = vmatpush1.msra.mxu0 0.0
    %3151 = vmatprep.subr.mxu0 0.0
    %3152 = vmatpush1.msra.mxu0 0.0
    %3153 = vmatprep.subr.mxu0 0.0
    %3154 = vmatpush1.msra.mxu0 0.0
    %3155 = vmatprep.subr.mxu0 0.0
    %3156 = vmatpush1.msra.mxu0 0.0
    %3157 = vmatprep.subr.mxu0 0.0
    %3158 = vmatpush1.msra.mxu0 0.0
    %3159 = vmatprep.subr.mxu0 0.0
    %3160 = vmatpush1.msra.mxu0 0.0
    %3161 = vmatprep.subr.mxu0 0.0
    %3162 = vmatpush1.msra.mxu0 0.0
    %3163 = vmatprep.subr.mxu0 0.0
    %3164 = vmatpush1.msra.mxu0 0.0
    %3165 = vmatprep.subr.mxu0 0.0
    %3166 = vmatpush1.msra.mxu0 0.0
    %3167 = vmatprep.mubr.f32.mxu0 0.0
    %3168 = vmatmul.mubr.f32.gmra.mrb[0].mxu0 %v3099
    %v3169 = vpop.f32.mrb[0].mxu0
    %v3170 = vadd.f32 %v3085, %v3169
    %v3171 = vpop.f32.mrb[0].mxu0
    %3172 = vmatprep.mubr.f32.mxu0 0.0
    %3173 = vmatmul.mubr.f32.gmra.mrb[0].mxu0 %v3101
    %v3174 = vpop.f32.mrb[0].mxu0
    %v3175 = vadd.f32 %v3090, %v3174
    %v3176 = vpop.f32.mrb[0].mxu0
    %3177 = vdwg.mxu0
    %v3178 = vadd.f32 %v3170, %v93
    %v3179 = vadd.f32 %v3175, %v93
    %v3180 = vsel %vm97, %v3178, -inf
    %3181 = vmax.xlane.f32.xlu0 %v3180
    %v3182 = vpop.xlane.xlu0 %3181
    %v3183 = vsel %vm97, %v3179, -inf
    %3184 = vmax.xlane.f32.xlu0 %v3183
    %v3185 = vpop.xlane.xlu0 %3184
    %v3186 = vsub.f32 %v3178, %v3182
    %v3187 = vsub.f32 %v3179, %v3185
    %v3188 = vmul.f32 %v3186, 1.442695
    %v3189 = vpow.pop %v3188
    %v3190 = vmul.f32 %v3187, 1.442695
    %v3191 = vpow.pop %v3190
    %v3192 = vsel %vm97, %v3189, 0.0
    %3193 = vadd.xlane.f32.xlu0 %v3192
    %v3194 = vpop.xlane.xlu0 %3193
    %v3195 = vsel %vm97, %v3191, 0.0
    %3196 = vadd.xlane.f32.xlu0 %v3195
    %v3197 = vpop.xlane.xlu0 %3196
    %v3198 = vrcp.pop %v3194
    %v3199 = vmul.f32 %v3189, %v3198
    %v3200 = vrcp.pop %v3197
    %v3201 = vmul.f32 %v3191, %v3200
    %v3202 = vsel %vm1049, %v3178, -inf
    %v3203 = vsel %vm1049, %v3179, -inf
    %v3204 = vmax.f32 %v3202, %v3203
    %v3205 = vrot.slane %v3204, 4
    %v3206 = vmax.f32 %v3204, %v3205
    %v3207 = vrot.slane %v3206, 2
    %v3208 = vmax.f32 %v3206, %v3207
    %v3209 = vrot.slane %v3208, 1
    %v3210 = vmax.f32 %v3208, %v3209
    %v3211 = vsub.f32 %v3178, %v3210
    %v3212 = vsub.f32 %v3179, %v3210
    %v3213 = vmul.f32 %v3211, 1.442695
    %v3214 = vpow.pop %v3213
    %v3215 = vmul.f32 %v3212, 1.442695
    %v3216 = vpow.pop %v3215
    %3219 = vrot.lane.b32.xlu0 %v3214, 96
    %v3220 = vpop.permute.xlu0 %3219
    %3221 = vrot.lane.b32.xlu0 %v3216, 96
    %v3222 = vpop.permute.xlu0 %3221
    %3225 = vxpose.xlu0.b32.start [1/16] %v3220, 128
    %3226 = vxpose.xlu0.b32.cont [2/16] %v3222, 128
    %3227 = vxpose.xlu0.b32.cont [3/16] 0.0, 128
    %3228 = vxpose.xlu0.b32.cont [4/16] 0.0, 128
    %3229 = vxpose.xlu0.b32.cont [5/16] 0.0, 128
    %3230 = vxpose.xlu0.b32.cont [6/16] 0.0, 128
    %3231 = vxpose.xlu0.b32.cont [7/16] 0.0, 128
    %3232 = vxpose.xlu0.b32.cont [8/16] 0.0, 128
    %3233 = vxpose.xlu0.b32.cont [9/16] 0.0, 128
    %3234 = vxpose.xlu0.b32.cont [10/16] 0.0, 128
    %3235 = vxpose.xlu0.b32.cont [11/16] 0.0, 128
    %3236 = vxpose.xlu0.b32.cont [12/16] 0.0, 128
    %3237 = vxpose.xlu0.b32.cont [13/16] 0.0, 128
    %3238 = vxpose.xlu0.b32.cont [14/16] 0.0, 128
    %3239 = vxpose.xlu0.b32.cont [15/16] 0.0, 128
    %3240 = vxpose.xlu0.b32.end [16/16] 0.0, 128
    %v3241 = vpop.trf.xlu0
    %v3242 = vpop.trf.xlu0
    %v3243 = vpop.trf.xlu0
    %v3244 = vpop.trf.xlu0
    %v3245 = vpop.trf.xlu0
    %v3246 = vpop.trf.xlu0
    %v3247 = vpop.trf.xlu0
    %v3248 = vpop.trf.xlu0
    %v3249 = vpop.trf.xlu0
    %v3250 = vpop.trf.xlu0
    %v3251 = vpop.trf.xlu0
    %v3252 = vpop.trf.xlu0
    %v3253 = vpop.trf.xlu0
    %v3254 = vpop.trf.xlu0
    %v3255 = vpop.trf.xlu0
    %v3256 = vpop.trf.xlu0
    %v3258 = vsel %vm189, %v3241, 0
    %3260 = vmatprep.subr.mxu0 0.0
    %3261 = vmatpush1.msra.mxu0 %v3178
    %3262 = vmatprep.subr.mxu0 0.0
    %3263 = vmatpush1.msra.mxu0 %v3179
    %3264 = vmatprep.subr.mxu0 0.0
    %3265 = vmatpush1.msra.mxu0 0.0
    %3266 = vmatprep.subr.mxu0 0.0
    %3267 = vmatpush1.msra.mxu0 0.0
    %3268 = vmatprep.subr.mxu0 0.0
    %3269 = vmatpush1.msra.mxu0 0.0
    %3270 = vmatprep.subr.mxu0 0.0
    %3271 = vmatpush1.msra.mxu0 0.0
    %3272 = vmatprep.subr.mxu0 0.0
    %3273 = vmatpush1.msra.mxu0 0.0
    %3274 = vmatprep.subr.mxu0 0.0
    %3275 = vmatpush1.msra.mxu0 0.0
    %3276 = vmatprep.subr.mxu0 0.0
    %3277 = vmatpush1.msra.mxu0 0.0
    %3278 = vmatprep.subr.mxu0 0.0
    %3279 = vmatpush1.msra.mxu0 0.0
    %3280 = vmatprep.subr.mxu0 0.0
    %3281 = vmatpush1.msra.mxu0 0.0
    %3282 = vmatprep.subr.mxu0 0.0
    %3283 = vmatpush1.msra.mxu0 0.0
    %3284 = vmatprep.subr.mxu0 0.0
    %3285 = vmatpush1.msra.mxu0 0.0
    %3286 = vmatprep.subr.mxu0 0.0
    %3287 = vmatpush1.msra.mxu0 0.0
    %3288 = vmatprep.subr.mxu0 0.0
    %3289 = vmatpush1.msra.mxu0 0.0
    %3290 = vmatprep.subr.mxu0 0.0
    %3291 = vmatpush1.msra.mxu0 0.0
    %3292 = vmatprep.subr.mxu0 0.0
    %3293 = vmatpush1.msra.mxu0 0.0
    %3294 = vmatprep.subr.mxu0 0.0
    %3295 = vmatpush1.msra.mxu0 0.0
    %3296 = vmatprep.subr.mxu0 0.0
    %3297 = vmatpush1.msra.mxu0 0.0
    %3298 = vmatprep.subr.mxu0 0.0
    %3299 = vmatpush1.msra.mxu0 0.0
    %3300 = vmatprep.subr.mxu0 0.0
    %3301 = vmatpush1.msra.mxu0 0.0
    %3302 = vmatprep.subr.mxu0 0.0
    %3303 = vmatpush1.msra.mxu0 0.0
    %3304 = vmatprep.subr.mxu0 0.0
    %3305 = vmatpush1.msra.mxu0 0.0
    %3306 = vmatprep.subr.mxu0 0.0
    %3307 = vmatpush1.msra.mxu0 0.0
    %3308 = vmatprep.subr.mxu0 0.0
    %3309 = vmatpush1.msra.mxu0 0.0
    %3310 = vmatprep.subr.mxu0 0.0
    %3311 = vmatpush1.msra.mxu0 0.0
    %3312 = vmatprep.subr.mxu0 0.0
    %3313 = vmatpush1.msra.mxu0 0.0
    %3314 = vmatprep.subr.mxu0 0.0
    %3315 = vmatpush1.msra.mxu0 0.0
    %3316 = vmatprep.subr.mxu0 0.0
    %3317 = vmatpush1.msra.mxu0 0.0
    %3318 = vmatprep.subr.mxu0 0.0
    %3319 = vmatpush1.msra.mxu0 0.0
    %3320 = vmatprep.subr.mxu0 0.0
    %3321 = vmatpush1.msra.mxu0 0.0
    %3322 = vmatprep.subr.mxu0 0.0
    %3323 = vmatpush1.msra.mxu0 0.0
    %3324 = vmatprep.mubr.f32.mxu0 0.0
    %3325 = vmatmul.mubr.f32.gmra.mrb[0].mxu0 %v3258
    %v3326 = vpop.f32.mrb[0].mxu0
    %v3327 = vadd.f32 0.0, %v3326
    %v3328 = vpop.f32.mrb[0].mxu0
    %3329 = vdwg.mxu0
    %3331 = vset.pattern.permute.xlu0 41
    %3332 = vperm.xlu0 %3331, %v3327
    %v3333 = vpop.permute.xlu0 %3332
    %v3335 = vrcp.pop %v3333
    %v3336 = vmul.f32 %v3327, %v3335
    %v3337 = vadd.f32 %v3336, %v1187
    %v3339 = vsel %vm97, %v3199, 0
    %v3342 = vsel %vm97, %v3201, 0
    %3344 = vmatprep.subr.mxu0 %v61
    %3345 = vmatpush1.msra.mxu0 %v60
    %3346 = vmatprep.subr.mxu0 %v63
    %3347 = vmatpush1.msra.mxu0 %v62
    %3348 = vmatprep.subr.mxu0 %v65
    %3349 = vmatpush1.msra.mxu0 %v64
    %3350 = vmatprep.subr.mxu0 %v67
    %3351 = vmatpush1.msra.mxu0 %v66
    %3352 = vmatprep.subr.mxu0 0.0
    %3353 = vmatpush1.msra.mxu0 0.0
    %3354 = vmatprep.subr.mxu0 0.0
    %3355 = vmatpush1.msra.mxu0 0.0
    %3356 = vmatprep.subr.mxu0 0.0
    %3357 = vmatpush1.msra.mxu0 0.0
    %3358 = vmatprep.subr.mxu0 0.0
    %3359 = vmatpush1.msra.mxu0 0.0
    %3360 = vmatprep.subr.mxu0 0.0
    %3361 = vmatpush1.msra.mxu0 0.0
    %3362 = vmatprep.subr.mxu0 0.0
    %3363 = vmatpush1.msra.mxu0 0.0
    %3364 = vmatprep.subr.mxu0 0.0
    %3365 = vmatpush1.msra.mxu0 0.0
    %3366 = vmatprep.subr.mxu0 0.0
    %3367 = vmatpush1.msra.mxu0 0.0
    %3368 = vmatprep.subr.mxu0 0.0
    %3369 = vmatpush1.msra.mxu0 0.0
    %3370 = vmatprep.subr.mxu0 0.0
    %3371 = vmatpush1.msra.mxu0 0.0
    %3372 = vmatprep.subr.mxu0 0.0
    %3373 = vmatpush1.msra.mxu0 0.0
    %3374 = vmatprep.subr.mxu0 0.0
    %3375 = vmatpush1.msra.mxu0 0.0
    %3376 = vmatprep.subr.mxu0 0.0
    %3377 = vmatpush1.msra.mxu0 0.0
    %3378 = vmatprep.subr.mxu0 0.0
    %3379 = vmatpush1.msra.mxu0 0.0
    %3380 = vmatprep.subr.mxu0 0.0
    %3381 = vmatpush1.msra.mxu0 0.0
    %3382 = vmatprep.subr.mxu0 0.0
    %3383 = vmatpush1.msra.mxu0 0.0
    %3384 = vmatprep.subr.mxu0 0.0
    %3385 = vmatpush1.msra.mxu0 0.0
    %3386 = vmatprep.subr.mxu0 0.0
    %3387 = vmatpush1.msra.mxu0 0.0
    %3388 = vmatprep.subr.mxu0 0.0
    %3389 = vmatpush1.msra.mxu0 0.0
    %3390 = vmatprep.subr.mxu0 0.0
    %3391 = vmatpush1.msra.mxu0 0.0
    %3392 = vmatprep.subr.mxu0 0.0
    %3393 = vmatpush1.msra.mxu0 0.0
    %3394 = vmatprep.subr.mxu0 0.0
    %3395 = vmatpush1.msra.mxu0 0.0
    %3396 = vmatprep.subr.mxu0 0.0
    %3397 = vmatpush1.msra.mxu0 0.0
    %3398 = vmatprep.subr.mxu0 0.0
    %3399 = vmatpush1.msra.mxu0 0.0
    %3400 = vmatprep.subr.mxu0 0.0
    %3401 = vmatpush1.msra.mxu0 0.0
    %3402 = vmatprep.subr.mxu0 0.0
    %3403 = vmatpush1.msra.mxu0 0.0
    %3404 = vmatprep.subr.mxu0 0.0
    %3405 = vmatpush1.msra.mxu0 0.0
    %3406 = vmatprep.subr.mxu0 0.0
    %3407 = vmatpush1.msra.mxu0 0.0
    %3408 = vmatprep.mubr.f32.mxu0 0.0
    %3409 = vmatmul.mubr.f32.gmra.mrb[0].mxu0 %v3339
    %v3410 = vpop.f32.mrb[0].mxu0
    %v3411 = vadd.f32 %v86, %v3410
    %v3412 = vpop.f32.mrb[0].mxu0
    %v3413 = vadd.f32 %v90, %v3412
    %3414 = vmatprep.mubr.f32.mxu0 0.0
    %3415 = vmatmul.mubr.f32.gmra.mrb[0].mxu0 %v3342
    %v3416 = vpop.f32.mrb[0].mxu0
    %v3417 = vadd.f32 %v86, %v3416
    %v3418 = vpop.f32.mrb[0].mxu0
    %v3419 = vadd.f32 %v90, %v3418
    %3420 = vdwg.mxu0
    %3423 = vrot.lane.b32.xlu0 %v3413, 96
    %v3424 = vpop.permute.xlu0 %3423
    %3425 = vrot.lane.b32.xlu0 %v3419, 96
    %v3426 = vpop.permute.xlu0 %3425
    %3429 = vmatprep.subr.mxu0 0.0
    %3430 = vmatpush1.msra.mxu0 %v3424
    %3431 = vmatprep.subr.mxu0 0.0
    %3432 = vmatpush1.msra.mxu0 %v3426
    %3433 = vmatprep.subr.mxu0 0.0
    %3434 = vmatpush1.msra.mxu0 0.0
    %3435 = vmatprep.subr.mxu0 0.0
    %3436 = vmatpush1.msra.mxu0 0.0
    %3437 = vmatprep.subr.mxu0 0.0
    %3438 = vmatpush1.msra.mxu0 0.0
    %3439 = vmatprep.subr.mxu0 0.0
    %3440 = vmatpush1.msra.mxu0 0.0
    %3441 = vmatprep.subr.mxu0 0.0
    %3442 = vmatpush1.msra.mxu0 0.0
    %3443 = vmatprep.subr.mxu0 0.0
    %3444 = vmatpush1.msra.mxu0 0.0
    %3445 = vmatprep.subr.mxu0 0.0
    %3446 = vmatpush1.msra.mxu0 0.0
    %3447 = vmatprep.subr.mxu0 0.0
    %3448 = vmatpush1.msra.mxu0 0.0
    %3449 = vmatprep.subr.mxu0 0.0
    %3450 = vmatpush1.msra.mxu0 0.0
    %3451 = vmatprep.subr.mxu0 0.0
    %3452 = vmatpush1.msra.mxu0 0.0
    %3453 = vmatprep.subr.mxu0 0.0
    %3454 = vmatpush1.msra.mxu0 0.0
    %3455 = vmatprep.subr.mxu0 0.0
    %3456 = vmatpush1.msra.mxu0 0.0
    %3457 = vmatprep.subr.mxu0 0.0
    %3458 = vmatpush1.msra.mxu0 0.0
    %3459 = vmatprep.subr.mxu0 0.0
    %3460 = vmatpush1.msra.mxu0 0.0
    %3461 = vmatprep.subr.mxu0 0.0
    %3462 = vmatpush1.msra.mxu0 0.0
    %3463 = vmatprep.subr.mxu0 0.0
    %3464 = vmatpush1.msra.mxu0 0.0
    %3465 = vmatprep.subr.mxu0 0.0
    %3466 = vmatpush1.msra.mxu0 0.0
    %3467 = vmatprep.subr.mxu0 0.0
    %3468 = vmatpush1.msra.mxu0 0.0
    %3469 = vmatprep.subr.mxu0 0.0
    %3470 = vmatpush1.msra.mxu0 0.0
    %3471 = vmatprep.subr.mxu0 0.0
    %3472 = vmatpush1.msra.mxu0 0.0
    %3473 = vmatprep.subr.mxu0 0.0
    %3474 = vmatpush1.msra.mxu0 0.0
    %3475 = vmatprep.subr.mxu0 0.0
    %3476 = vmatpush1.msra.mxu0 0.0
    %3477 = vmatprep.subr.mxu0 0.0
    %3478 = vmatpush1.msra.mxu0 0.0
    %3479 = vmatprep.subr.mxu0 0.0
    %3480 = vmatpush1.msra.mxu0 0.0
    %3481 = vmatprep.subr.mxu0 0.0
    %3482 = vmatpush1.msra.mxu0 0.0
    %3483 = vmatprep.subr.mxu0 0.0
    %3484 = vmatpush1.msra.mxu0 0.0
    %3485 = vmatprep.subr.mxu0 0.0
    %3486 = vmatpush1.msra.mxu0 0.0
    %3487 = vmatprep.subr.mxu0 0.0
    %3488 = vmatpush1.msra.mxu0 0.0
    %3489 = vmatprep.subr.mxu0 0.0
    %3490 = vmatpush1.msra.mxu0 0.0
    %3491 = vmatprep.subr.mxu0 0.0
    %3492 = vmatpush1.msra.mxu0 0.0
    %3493 = vmatprep.mubr.f32.mxu0 0.0
    %3494 = vmatmul.mubr.f32.gmra.mrb[0].mxu0 %v191
    %v3495 = vpop.f32.mrb[0].mxu0
    %v3496 = vadd.f32 0.0, %v3495
    %v3497 = vpop.f32.mrb[0].mxu0
    %3498 = vmatprep.mubr.f32.mxu0 0.0
    %3499 = vmatmul.mubr.f32.gmra.mrb[0].mxu0 %v194
    %v3500 = vpop.f32.mrb[0].mxu0
    %v3501 = vadd.f32 0.0, %v3500
    %v3502 = vpop.f32.mrb[0].mxu0
    %3503 = vdwg.mxu0
    %3504 = vmatprep.subr.mxu0 0.0
    %3505 = vmatpush1.msra.mxu0 %v3413
    %3506 = vmatprep.subr.mxu0 0.0
    %3507 = vmatpush1.msra.mxu0 %v3419
    %3508 = vmatprep.subr.mxu0 0.0
    %3509 = vmatpush1.msra.mxu0 0.0
    %3510 = vmatprep.subr.mxu0 0.0
    %3511 = vmatpush1.msra.mxu0 0.0
    %3512 = vmatprep.subr.mxu0 0.0
    %3513 = vmatpush1.msra.mxu0 0.0
    %3514 = vmatprep.subr.mxu0 0.0
    %3515 = vmatpush1.msra.mxu0 0.0
    %3516 = vmatprep.subr.mxu0 0.0
    %3517 = vmatpush1.msra.mxu0 0.0
    %3518 = vmatprep.subr.mxu0 0.0
    %3519 = vmatpush1.msra.mxu0 0.0
    %3520 = vmatprep.subr.mxu0 0.0
    %3521 = vmatpush1.msra.mxu0 0.0
    %3522 = vmatprep.subr.mxu0 0.0
    %3523 = vmatpush1.msra.mxu0 0.0
    %3524 = vmatprep.subr.mxu0 0.0
    %3525 = vmatpush1.msra.mxu0 0.0
    %3526 = vmatprep.subr.mxu0 0.0
    %3527 = vmatpush1.msra.mxu0 0.0
    %3528 = vmatprep.subr.mxu0 0.0
    %3529 = vmatpush1.msra.mxu0 0.0
    %3530 = vmatprep.subr.mxu0 0.0
    %3531 = vmatpush1.msra.mxu0 0.0
    %3532 = vmatprep.subr.mxu0 0.0
    %3533 = vmatpush1.msra.mxu0 0.0
    %3534 = vmatprep.subr.mxu0 0.0
    %3535 = vmatpush1.msra.mxu0 0.0
    %3536 = vmatprep.subr.mxu0 0.0
    %3537 = vmatpush1.msra.mxu0 0.0
    %3538 = vmatprep.subr.mxu0 0.0
    %3539 = vmatpush1.msra.mxu0 0.0
    %3540 = vmatprep.subr.mxu0 0.0
    %3541 = vmatpush1.msra.mxu0 0.0
    %3542 = vmatprep.subr.mxu0 0.0
    %3543 = vmatpush1.msra.mxu0 0.0
    %3544 = vmatprep.subr.mxu0 0.0
    %3545 = vmatpush1.msra.mxu0 0.0
    %3546 = vmatprep.subr.mxu0 0.0
    %3547 = vmatpush1.msra.mxu0 0.0
    %3548 = vmatprep.subr.mxu0 0.0
    %3549 = vmatpush1.msra.mxu0 0.0
    %3550 = vmatprep.subr.mxu0 0.0
    %3551 = vmatpush1.msra.mxu0 0.0
    %3552 = vmatprep.subr.mxu0 0.0
    %3553 = vmatpush1.msra.mxu0 0.0
    %3554 = vmatprep.subr.mxu0 0.0
    %3555 = vmatpush1.msra.mxu0 0.0
    %3556 = vmatprep.subr.mxu0 0.0
    %3557 = vmatpush1.msra.mxu0 0.0
    %3558 = vmatprep.subr.mxu0 0.0
    %3559 = vmatpush1.msra.mxu0 0.0
    %3560 = vmatprep.subr.mxu0 0.0
    %3561 = vmatpush1.msra.mxu0 0.0
    %3562 = vmatprep.subr.mxu0 0.0
    %3563 = vmatpush1.msra.mxu0 0.0
    %3564 = vmatprep.subr.mxu0 0.0
    %3565 = vmatpush1.msra.mxu0 0.0
    %3566 = vmatprep.subr.mxu0 0.0
    %3567 = vmatpush1.msra.mxu0 0.0
    %3568 = vmatprep.mubr.f32.mxu0 0.0
    %3569 = vmatmul.mubr.f32.gmra.mrb[0].mxu0 %v272
    %v3570 = vpop.f32.mrb[0].mxu0
    %v3571 = vadd.f32 %v3496, %v3570
    %v3572 = vpop.f32.mrb[0].mxu0
    %3573 = vmatprep.mubr.f32.mxu0 0.0
    %3574 = vmatmul.mubr.f32.gmra.mrb[0].mxu0 %v275
    %v3575 = vpop.f32.mrb[0].mxu0
    %v3576 = vadd.f32 %v3501, %v3575
    %v3577 = vpop.f32.mrb[0].mxu0
    %3578 = vdwg.mxu0
    %v3580 = vsel %vm97, %v3571, 0
    %v3583 = vsel %vm97, %v3576, 0
    %3585 = vmatprep.subr.mxu0 0.0
    %3586 = vmatpush1.msra.mxu0 %v68
    %3587 = vmatprep.subr.mxu0 0.0
    %3588 = vmatpush1.msra.mxu0 %v69
    %3589 = vmatprep.subr.mxu0 0.0
    %3590 = vmatpush1.msra.mxu0 %v70
    %3591 = vmatprep.subr.mxu0 0.0
    %3592 = vmatpush1.msra.mxu0 %v71
    %3593 = vmatprep.subr.mxu0 0.0
    %3594 = vmatpush1.msra.mxu0 0.0
    %3595 = vmatprep.subr.mxu0 0.0
    %3596 = vmatpush1.msra.mxu0 0.0
    %3597 = vmatprep.subr.mxu0 0.0
    %3598 = vmatpush1.msra.mxu0 0.0
    %3599 = vmatprep.subr.mxu0 0.0
    %3600 = vmatpush1.msra.mxu0 0.0
    %3601 = vmatprep.subr.mxu0 0.0
    %3602 = vmatpush1.msra.mxu0 0.0
    %3603 = vmatprep.subr.mxu0 0.0
    %3604 = vmatpush1.msra.mxu0 0.0
    %3605 = vmatprep.subr.mxu0 0.0
    %3606 = vmatpush1.msra.mxu0 0.0
    %3607 = vmatprep.subr.mxu0 0.0
    %3608 = vmatpush1.msra.mxu0 0.0
    %3609 = vmatprep.subr.mxu0 0.0
    %3610 = vmatpush1.msra.mxu0 0.0
    %3611 = vmatprep.subr.mxu0 0.0
    %3612 = vmatpush1.msra.mxu0 0.0
    %3613 = vmatprep.subr.mxu0 0.0
    %3614 = vmatpush1.msra.mxu0 0.0
    %3615 = vmatprep.subr.mxu0 0.0
    %3616 = vmatpush1.msra.mxu0 0.0
    %3617 = vmatprep.subr.mxu0 0.0
    %3618 = vmatpush1.msra.mxu0 0.0
    %3619 = vmatprep.subr.mxu0 0.0
    %3620 = vmatpush1.msra.mxu0 0.0
    %3621 = vmatprep.subr.mxu0 0.0
    %3622 = vmatpush1.msra.mxu0 0.0
    %3623 = vmatprep.subr.mxu0 0.0
    %3624 = vmatpush1.msra.mxu0 0.0
    %3625 = vmatprep.subr.mxu0 0.0
    %3626 = vmatpush1.msra.mxu0 0.0
    %3627 = vmatprep.subr.mxu0 0.0
    %3628 = vmatpush1.msra.mxu0 0.0
    %3629 = vmatprep.subr.mxu0 0.0
    %3630 = vmatpush1.msra.mxu0 0.0
    %3631 = vmatprep.subr.mxu0 0.0
    %3632 = vmatpush1.msra.mxu0 0.0
    %3633 = vmatprep.subr.mxu0 0.0
    %3634 = vmatpush1.msra.mxu0 0.0
    %3635 = vmatprep.subr.mxu0 0.0
    %3636 = vmatpush1.msra.mxu0 0.0
    %3637 = vmatprep.subr.mxu0 0.0
    %3638 = vmatpush1.msra.mxu0 0.0
    %3639 = vmatprep.subr.mxu0 0.0
    %3640 = vmatpush1.msra.mxu0 0.0
    %3641 = vmatprep.subr.mxu0 0.0
    %3642 = vmatpush1.msra.mxu0 0.0
    %3643 = vmatprep.subr.mxu0 0.0
    %3644 = vmatpush1.msra.mxu0 0.0
    %3645 = vmatprep.subr.mxu0 0.0
    %3646 = vmatpush1.msra.mxu0 0.0
    %3647 = vmatprep.subr.mxu0 0.0
    %3648 = vmatpush1.msra.mxu0 0.0
    %3649 = vmatprep.mubr.f32.mxu0 0.0
    %3650 = vmatmul.mubr.f32.gmra.mrb[0].mxu0 %v3580
    %v3651 = vpop.f32.mrb[0].mxu0
    %v3652 = vadd.f32 %v3411, %v3651
    %v3653 = vpop.f32.mrb[0].mxu0
    %3654 = vmatprep.mubr.f32.mxu0 0.0
    %3655 = vmatmul.mubr.f32.gmra.mrb[0].mxu0 %v3583
    %v3656 = vpop.f32.mrb[0].mxu0
    %v3657 = vadd.f32 %v3417, %v3656
    %v3658 = vpop.f32.mrb[0].mxu0
    %3659 = vdwg.mxu0
    %v3660 = vxor.u32 %v3652, 2147483648
    %v3661 = vxor.u32 %v3657, 2147483648
    %v3662 = vmul.f32 %v3660, 1.442695
    %v3663 = vpow.pop %v3662
    %v3664 = vmul.f32 %v3661, 1.442695
    %v3665 = vpow.pop %v3664
    %v3666 = vadd.f32 %v3663, 1.0
    %v3667 = vadd.f32 %v3665, 1.0
    %v3668 = vrcp.pop %v3666
    %v3669 = vmul.f32 1.0, %v3668
    %v3670 = vrcp.pop %v3667
    %v3671 = vmul.f32 1.0, %v3670
    %3674 = vrot.lane.b32.xlu0 %v3652, 32
    %v3675 = vpop.permute.xlu0 %3674
    %3676 = vrot.lane.b32.xlu0 %v3657, 32
    %v3677 = vpop.permute.xlu0 %3676
    %v3680 = vmul.f32 %v3669, %v3675
    %v3681 = vmul.f32 %v3671, %v3677
    %3684 = vrot.lane.b32.xlu0 %v3680, 64
    %v3685 = vpop.permute.xlu0 %3684
    %3686 = vrot.lane.b32.xlu0 %v3681, 64
    %v3687 = vpop.permute.xlu0 %3686
    %v3690 = vadd.f32 %v3652, %v3685
    %v3691 = vadd.f32 %v3657, %v3687
    %v3692 = vtanh.pop %v3690
    %v3693 = vtanh.pop %v3691
    %v3694 = vsub.f32 1.0, %v3669
    %v3695 = vsub.f32 1.0, %v3671
    %3698 = vrot.lane.b32.xlu0 %v3692, 96
    %v3699 = vpop.permute.xlu0 %3698
    %3700 = vrot.lane.b32.xlu0 %v3693, 96
    %v3701 = vpop.permute.xlu0 %3700
    %v3704 = vmul.f32 %v3694, %v3699
    %v3705 = vmul.f32 %v3695, %v3701
    %3706 = vrot.lane.b32.xlu0 %v3199, 32
    %v3707 = vpop.permute.xlu0 %3706
    %3708 = vrot.lane.b32.xlu0 %v3201, 32
    %v3709 = vpop.permute.xlu0 %3708
    %v3712 = vmul.f32 %v3669, %v3707
    %v3713 = vmul.f32 %v3671, %v3709
    %v3714 = vadd.f32 %v3704, %v3712
    %v3715 = vadd.f32 %v3705, %v3713
    %3718 = vrot.lane.b32.xlu0 %v3714, 96
    %v3719 = vpop.permute.xlu0 %3718
    %3720 = vrot.lane.b32.xlu0 %v3715, 96
    %v3721 = vpop.permute.xlu0 %3720
    %v3722 = vsel %vm97, %v3719, 0
    %v3724 = vsel %vm97, %v3721, 0
    %3726 = vmatprep.subr.mxu0 %v61
    %3727 = vmatpush1.msra.mxu0 %v60
    %3728 = vmatprep.subr.mxu0 %v63
    %3729 = vmatpush1.msra.mxu0 %v62
    %3730 = vmatprep.subr.mxu0 %v65
    %3731 = vmatpush1.msra.mxu0 %v64
    %3732 = vmatprep.subr.mxu0 %v67
    %3733 = vmatpush1.msra.mxu0 %v66
    %3734 = vmatprep.subr.mxu0 0.0
    %3735 = vmatpush1.msra.mxu0 0.0
    %3736 = vmatprep.subr.mxu0 0.0
    %3737 = vmatpush1.msra.mxu0 0.0
    %3738 = vmatprep.subr.mxu0 0.0
    %3739 = vmatpush1.msra.mxu0 0.0
    %3740 = vmatprep.subr.mxu0 0.0
    %3741 = vmatpush1.msra.mxu0 0.0
    %3742 = vmatprep.subr.mxu0 0.0
    %3743 = vmatpush1.msra.mxu0 0.0
    %3744 = vmatprep.subr.mxu0 0.0
    %3745 = vmatpush1.msra.mxu0 0.0
    %3746 = vmatprep.subr.mxu0 0.0
    %3747 = vmatpush1.msra.mxu0 0.0
    %3748 = vmatprep.subr.mxu0 0.0
    %3749 = vmatpush1.msra.mxu0 0.0
    %3750 = vmatprep.subr.mxu0 0.0
    %3751 = vmatpush1.msra.mxu0 0.0
    %3752 = vmatprep.subr.mxu0 0.0
    %3753 = vmatpush1.msra.mxu0 0.0
    %3754 = vmatprep.subr.mxu0 0.0
    %3755 = vmatpush1.msra.mxu0 0.0
    %3756 = vmatprep.subr.mxu0 0.0
    %3757 = vmatpush1.msra.mxu0 0.0
    %3758 = vmatprep.subr.mxu0 0.0
    %3759 = vmatpush1.msra.mxu0 0.0
    %3760 = vmatprep.subr.mxu0 0.0
    %3761 = vmatpush1.msra.mxu0 0.0
    %3762 = vmatprep.subr.mxu0 0.0
    %3763 = vmatpush1.msra.mxu0 0.0
    %3764 = vmatprep.subr.mxu0 0.0
    %3765 = vmatpush1.msra.mxu0 0.0
    %3766 = vmatprep.subr.mxu0 0.0
    %3767 = vmatpush1.msra.mxu0 0.0
    %3768 = vmatprep.subr.mxu0 0.0
    %3769 = vmatpush1.msra.mxu0 0.0
    %3770 = vmatprep.subr.mxu0 0.0
    %3771 = vmatpush1.msra.mxu0 0.0
    %3772 = vmatprep.subr.mxu0 0.0
    %3773 = vmatpush1.msra.mxu0 0.0
    %3774 = vmatprep.subr.mxu0 0.0
    %3775 = vmatpush1.msra.mxu0 0.0
    %3776 = vmatprep.subr.mxu0 0.0
    %3777 = vmatpush1.msra.mxu0 0.0
    %3778 = vmatprep.subr.mxu0 0.0
    %3779 = vmatpush1.msra.mxu0 0.0
    %3780 = vmatprep.subr.mxu0 0.0
    %3781 = vmatpush1.msra.mxu0 0.0
    %3782 = vmatprep.subr.mxu0 0.0
    %3783 = vmatpush1.msra.mxu0 0.0
    %3784 = vmatprep.subr.mxu0 0.0
    %3785 = vmatpush1.msra.mxu0 0.0
    %3786 = vmatprep.subr.mxu0 0.0
    %3787 = vmatpush1.msra.mxu0 0.0
    %3788 = vmatprep.subr.mxu0 0.0
    %3789 = vmatpush1.msra.mxu0 0.0
    %3790 = vmatprep.mubr.f32.mxu0 0.0
    %3791 = vmatmul.mubr.f32.gmra.mrb[0].mxu0 %v3722
    %v3792 = vpop.f32.mrb[0].mxu0
    %v3793 = vadd.f32 %v86, %v3792
    %v3794 = vpop.f32.mrb[0].mxu0
    %v3795 = vadd.f32 %v90, %v3794
    %3796 = vmatprep.mubr.f32.mxu0 0.0
    %3797 = vmatmul.mubr.f32.gmra.mrb[0].mxu0 %v3724
    %v3798 = vpop.f32.mrb[0].mxu0
    %v3799 = vadd.f32 %v86, %v3798
    %v3800 = vpop.f32.mrb[0].mxu0
    %v3801 = vadd.f32 %v90, %v3800
    %3802 = vdwg.mxu0
    %3805 = vrot.lane.b32.xlu0 %v3795, 96
    %v3806 = vpop.permute.xlu0 %3805
    %3807 = vrot.lane.b32.xlu0 %v3801, 96
    %v3808 = vpop.permute.xlu0 %3807
    %3811 = vmatprep.subr.mxu0 0.0
    %3812 = vmatpush1.msra.mxu0 %v3806
    %3813 = vmatprep.subr.mxu0 0.0
    %3814 = vmatpush1.msra.mxu0 %v3808
    %3815 = vmatprep.subr.mxu0 0.0
    %3816 = vmatpush1.msra.mxu0 0.0
    %3817 = vmatprep.subr.mxu0 0.0
    %3818 = vmatpush1.msra.mxu0 0.0
    %3819 = vmatprep.subr.mxu0 0.0
    %3820 = vmatpush1.msra.mxu0 0.0
    %3821 = vmatprep.subr.mxu0 0.0
    %3822 = vmatpush1.msra.mxu0 0.0
    %3823 = vmatprep.subr.mxu0 0.0
    %3824 = vmatpush1.msra.mxu0 0.0
    %3825 = vmatprep.subr.mxu0 0.0
    %3826 = vmatpush1.msra.mxu0 0.0
    %3827 = vmatprep.subr.mxu0 0.0
    %3828 = vmatpush1.msra.mxu0 0.0
    %3829 = vmatprep.subr.mxu0 0.0
    %3830 = vmatpush1.msra.mxu0 0.0
    %3831 = vmatprep.subr.mxu0 0.0
    %3832 = vmatpush1.msra.mxu0 0.0
    %3833 = vmatprep.subr.mxu0 0.0
    %3834 = vmatpush1.msra.mxu0 0.0
    %3835 = vmatprep.subr.mxu0 0.0
    %3836 = vmatpush1.msra.mxu0 0.0
    %3837 = vmatprep.subr.mxu0 0.0
    %3838 = vmatpush1.msra.mxu0 0.0
    %3839 = vmatprep.subr.mxu0 0.0
    %3840 = vmatpush1.msra.mxu0 0.0
    %3841 = vmatprep.subr.mxu0 0.0
    %3842 = vmatpush1.msra.mxu0 0.0
    %3843 = vmatprep.subr.mxu0 0.0
    %3844 = vmatpush1.msra.mxu0 0.0
    %3845 = vmatprep.subr.mxu0 0.0
    %3846 = vmatpush1.msra.mxu0 0.0
    %3847 = vmatprep.subr.mxu0 0.0
    %3848 = vmatpush1.msra.mxu0 0.0
    %3849 = vmatprep.subr.mxu0 0.0
    %3850 = vmatpush1.msra.mxu0 0.0
    %3851 = vmatprep.subr.mxu0 0.0
    %3852 = vmatpush1.msra.mxu0 0.0
    %3853 = vmatprep.subr.mxu0 0.0
    %3854 = vmatpush1.msra.mxu0 0.0
    %3855 = vmatprep.subr.mxu0 0.0
    %3856 = vmatpush1.msra.mxu0 0.0
    %3857 = vmatprep.subr.mxu0 0.0
    %3858 = vmatpush1.msra.mxu0 0.0
    %3859 = vmatprep.subr.mxu0 0.0
    %3860 = vmatpush1.msra.mxu0 0.0
    %3861 = vmatprep.subr.mxu0 0.0
    %3862 = vmatpush1.msra.mxu0 0.0
    %3863 = vmatprep.subr.mxu0 0.0
    %3864 = vmatpush1.msra.mxu0 0.0
    %3865 = vmatprep.subr.mxu0 0.0
    %3866 = vmatpush1.msra.mxu0 0.0
    %3867 = vmatprep.subr.mxu0 0.0
    %3868 = vmatpush1.msra.mxu0 0.0
    %3869 = vmatprep.subr.mxu0 0.0
    %3870 = vmatpush1.msra.mxu0 0.0
    %3871 = vmatprep.subr.mxu0 0.0
    %3872 = vmatpush1.msra.mxu0 0.0
    %3873 = vmatprep.subr.mxu0 0.0
    %3874 = vmatpush1.msra.mxu0 0.0
    %3875 = vmatprep.mubr.f32.mxu0 0.0
    %3876 = vmatmul.mubr.f32.gmra.mrb[0].mxu0 %v191
    %v3877 = vpop.f32.mrb[0].mxu0
    %v3878 = vadd.f32 0.0, %v3877
    %v3879 = vpop.f32.mrb[0].mxu0
    %3880 = vmatprep.mubr.f32.mxu0 0.0
    %3881 = vmatmul.mubr.f32.gmra.mrb[0].mxu0 %v194
    %v3882 = vpop.f32.mrb[0].mxu0
    %v3883 = vadd.f32 0.0, %v3882
    %v3884 = vpop.f32.mrb[0].mxu0
    %3885 = vdwg.mxu0
    %3886 = vmatprep.subr.mxu0 0.0
    %3887 = vmatpush1.msra.mxu0 %v3795
    %3888 = vmatprep.subr.mxu0 0.0
    %3889 = vmatpush1.msra.mxu0 %v3801
    %3890 = vmatprep.subr.mxu0 0.0
    %3891 = vmatpush1.msra.mxu0 0.0
    %3892 = vmatprep.subr.mxu0 0.0
    %3893 = vmatpush1.msra.mxu0 0.0
    %3894 = vmatprep.subr.mxu0 0.0
    %3895 = vmatpush1.msra.mxu0 0.0
    %3896 = vmatprep.subr.mxu0 0.0
    %3897 = vmatpush1.msra.mxu0 0.0
    %3898 = vmatprep.subr.mxu0 0.0
    %3899 = vmatpush1.msra.mxu0 0.0
    %3900 = vmatprep.subr.mxu0 0.0
    %3901 = vmatpush1.msra.mxu0 0.0
    %3902 = vmatprep.subr.mxu0 0.0
    %3903 = vmatpush1.msra.mxu0 0.0
    %3904 = vmatprep.subr.mxu0 0.0
    %3905 = vmatpush1.msra.mxu0 0.0
    %3906 = vmatprep.subr.mxu0 0.0
    %3907 = vmatpush1.msra.mxu0 0.0
    %3908 = vmatprep.subr.mxu0 0.0
    %3909 = vmatpush1.msra.mxu0 0.0
    %3910 = vmatprep.subr.mxu0 0.0
    %3911 = vmatpush1.msra.mxu0 0.0
    %3912 = vmatprep.subr.mxu0 0.0
    %3913 = vmatpush1.msra.mxu0 0.0
    %3914 = vmatprep.subr.mxu0 0.0
    %3915 = vmatpush1.msra.mxu0 0.0
    %3916 = vmatprep.subr.mxu0 0.0
    %3917 = vmatpush1.msra.mxu0 0.0
    %3918 = vmatprep.subr.mxu0 0.0
    %3919 = vmatpush1.msra.mxu0 0.0
    %3920 = vmatprep.subr.mxu0 0.0
    %3921 = vmatpush1.msra.mxu0 0.0
    %3922 = vmatprep.subr.mxu0 0.0
    %3923 = vmatpush1.msra.mxu0 0.0
    %3924 = vmatprep.subr.mxu0 0.0
    %3925 = vmatpush1.msra.mxu0 0.0
    %3926 = vmatprep.subr.mxu0 0.0
    %3927 = vmatpush1.msra.mxu0 0.0
    %3928 = vmatprep.subr.mxu0 0.0
    %3929 = vmatpush1.msra.mxu0 0.0
    %3930 = vmatprep.subr.mxu0 0.0
    %3931 = vmatpush1.msra.mxu0 0.0
    %3932 = vmatprep.subr.mxu0 0.0
    %3933 = vmatpush1.msra.mxu0 0.0
    %3934 = vmatprep.subr.mxu0 0.0
    %3935 = vmatpush1.msra.mxu0 0.0
    %3936 = vmatprep.subr.mxu0 0.0
    %3937 = vmatpush1.msra.mxu0 0.0
    %3938 = vmatprep.subr.mxu0 0.0
    %3939 = vmatpush1.msra.mxu0 0.0
    %3940 = vmatprep.subr.mxu0 0.0
    %3941 = vmatpush1.msra.mxu0 0.0
    %3942 = vmatprep.subr.mxu0 0.0
    %3943 = vmatpush1.msra.mxu0 0.0
    %3944 = vmatprep.subr.mxu0 0.0
    %3945 = vmatpush1.msra.mxu0 0.0
    %3946 = vmatprep.subr.mxu0 0.0
    %3947 = vmatpush1.msra.mxu0 0.0
    %3948 = vmatprep.subr.mxu0 0.0
    %3949 = vmatpush1.msra.mxu0 0.0
    %3950 = vmatprep.mubr.f32.mxu0 0.0
    %3951 = vmatmul.mubr.f32.gmra.mrb[0].mxu0 %v272
    %v3952 = vpop.f32.mrb[0].mxu0
    %v3953 = vadd.f32 %v3878, %v3952
    %v3954 = vpop.f32.mrb[0].mxu0
    %3955 = vmatprep.mubr.f32.mxu0 0.0
    %3956 = vmatmul.mubr.f32.gmra.mrb[0].mxu0 %v275
    %v3957 = vpop.f32.mrb[0].mxu0
    %v3958 = vadd.f32 %v3883, %v3957
    %v3959 = vpop.f32.mrb[0].mxu0
    %3960 = vdwg.mxu0
    %v3962 = vsel %vm97, %v3953, 0
    %v3965 = vsel %vm97, %v3958, 0
    %3967 = vmatprep.subr.mxu0 0.0
    %3968 = vmatpush1.msra.mxu0 %v68
    %3969 = vmatprep.subr.mxu0 0.0
    %3970 = vmatpush1.msra.mxu0 %v69
    %3971 = vmatprep.subr.mxu0 0.0
    %3972 = vmatpush1.msra.mxu0 %v70
    %3973 = vmatprep.subr.mxu0 0.0
    %3974 = vmatpush1.msra.mxu0 %v71
    %3975 = vmatprep.subr.mxu0 0.0
    %3976 = vmatpush1.msra.mxu0 0.0
    %3977 = vmatprep.subr.mxu0 0.0
    %3978 = vmatpush1.msra.mxu0 0.0
    %3979 = vmatprep.subr.mxu0 0.0
    %3980 = vmatpush1.msra.mxu0 0.0
    %3981 = vmatprep.subr.mxu0 0.0
    %3982 = vmatpush1.msra.mxu0 0.0
    %3983 = vmatprep.subr.mxu0 0.0
    %3984 = vmatpush1.msra.mxu0 0.0
    %3985 = vmatprep.subr.mxu0 0.0
    %3986 = vmatpush1.msra.mxu0 0.0
    %3987 = vmatprep.subr.mxu0 0.0
    %3988 = vmatpush1.msra.mxu0 0.0
    %3989 = vmatprep.subr.mxu0 0.0
    %3990 = vmatpush1.msra.mxu0 0.0
    %3991 = vmatprep.subr.mxu0 0.0
    %3992 = vmatpush1.msra.mxu0 0.0
    %3993 = vmatprep.subr.mxu0 0.0
    %3994 = vmatpush1.msra.mxu0 0.0
    %3995 = vmatprep.subr.mxu0 0.0
    %3996 = vmatpush1.msra.mxu0 0.0
    %3997 = vmatprep.subr.mxu0 0.0
    %3998 = vmatpush1.msra.mxu0 0.0
    %3999 = vmatprep.subr.mxu0 0.0
    %4000 = vmatpush1.msra.mxu0 0.0
    %4001 = vmatprep.subr.mxu0 0.0
    %4002 = vmatpush1.msra.mxu0 0.0
    %4003 = vmatprep.subr.mxu0 0.0
    %4004 = vmatpush1.msra.mxu0 0.0
    %4005 = vmatprep.subr.mxu0 0.0
    %4006 = vmatpush1.msra.mxu0 0.0
    %4007 = vmatprep.subr.mxu0 0.0
    %4008 = vmatpush1.msra.mxu0 0.0
    %4009 = vmatprep.subr.mxu0 0.0
    %4010 = vmatpush1.msra.mxu0 0.0
    %4011 = vmatprep.subr.mxu0 0.0
    %4012 = vmatpush1.msra.mxu0 0.0
    %4013 = vmatprep.subr.mxu0 0.0
    %4014 = vmatpush1.msra.mxu0 0.0
    %4015 = vmatprep.subr.mxu0 0.0
    %4016 = vmatpush1.msra.mxu0 0.0
    %4017 = vmatprep.subr.mxu0 0.0
    %4018 = vmatpush1.msra.mxu0 0.0
    %4019 = vmatprep.subr.mxu0 0.0
    %4020 = vmatpush1.msra.mxu0 0.0
    %4021 = vmatprep.subr.mxu0 0.0
    %4022 = vmatpush1.msra.mxu0 0.0
    %4023 = vmatprep.subr.mxu0 0.0
    %4024 = vmatpush1.msra.mxu0 0.0
    %4025 = vmatprep.subr.mxu0 0.0
    %4026 = vmatpush1.msra.mxu0 0.0
    %4027 = vmatprep.subr.mxu0 0.0
    %4028 = vmatpush1.msra.mxu0 0.0
    %4029 = vmatprep.subr.mxu0 0.0
    %4030 = vmatpush1.msra.mxu0 0.0
    %4031 = vmatprep.mubr.f32.mxu0 0.0
    %4032 = vmatmul.mubr.f32.gmra.mrb[0].mxu0 %v3962
    %v4033 = vpop.f32.mrb[0].mxu0
    %v4034 = vadd.f32 %v3793, %v4033
    %v4035 = vpop.f32.mrb[0].mxu0
    %4036 = vmatprep.mubr.f32.mxu0 0.0
    %4037 = vmatmul.mubr.f32.gmra.mrb[0].mxu0 %v3965
    %v4038 = vpop.f32.mrb[0].mxu0
    %v4039 = vadd.f32 %v3799, %v4038
    %v4040 = vpop.f32.mrb[0].mxu0
    %4041 = vdwg.mxu0
    %v4042 = vxor.u32 %v4034, 2147483648
    %v4043 = vxor.u32 %v4039, 2147483648
    %v4044 = vmul.f32 %v4042, 1.442695
    %v4045 = vpow.pop %v4044
    %v4046 = vmul.f32 %v4043, 1.442695
    %v4047 = vpow.pop %v4046
    %v4048 = vadd.f32 %v4045, 1.0
    %v4049 = vadd.f32 %v4047, 1.0
    %v4050 = vrcp.pop %v4048
    %v4051 = vmul.f32 1.0, %v4050
    %v4052 = vrcp.pop %v4049
    %v4053 = vmul.f32 1.0, %v4052
    %4056 = vrot.lane.b32.xlu0 %v4034, 32
    %v4057 = vpop.permute.xlu0 %4056
    %4058 = vrot.lane.b32.xlu0 %v4039, 32
    %v4059 = vpop.permute.xlu0 %4058
    %v4062 = vmul.f32 %v4051, %v4057
    %v4063 = vmul.f32 %v4053, %v4059
    %4066 = vrot.lane.b32.xlu0 %v4062, 64
    %v4067 = vpop.permute.xlu0 %4066
    %4068 = vrot.lane.b32.xlu0 %v4063, 64
    %v4069 = vpop.permute.xlu0 %4068
    %v4072 = vadd.f32 %v4034, %v4067
    %v4073 = vadd.f32 %v4039, %v4069
    %v4074 = vtanh.pop %v4072
    %v4075 = vtanh.pop %v4073
    %v4076 = vsub.f32 1.0, %v4051
    %v4077 = vsub.f32 1.0, %v4053
    %4080 = vrot.lane.b32.xlu0 %v4074, 96
    %v4081 = vpop.permute.xlu0 %4080
    %4082 = vrot.lane.b32.xlu0 %v4075, 96
    %v4083 = vpop.permute.xlu0 %4082
    %v4086 = vmul.f32 %v4076, %v4081
    %v4087 = vmul.f32 %v4077, %v4083
    %v4088 = vmul.f32 %v4051, %v3714
    %v4089 = vmul.f32 %v4053, %v3715
    %v4090 = vadd.f32 %v4086, %v4088
    %v4091 = vadd.f32 %v4087, %v4089
    %4092 = vmatprep.subr.mxu0 0.0
    %4093 = vmatpush1.msra.mxu0 %v76
    %4094 = vmatprep.subr.mxu0 0.0
    %4095 = vmatpush1.msra.mxu0 %v77
    %4096 = vmatprep.subr.mxu0 0.0
    %4097 = vmatpush1.msra.mxu0 %v78
    %4098 = vmatprep.subr.mxu0 0.0
    %4099 = vmatpush1.msra.mxu0 %v79
    %4100 = vmatprep.subr.mxu0 0.0
    %4101 = vmatpush1.msra.mxu0 0.0
    %4102 = vmatprep.subr.mxu0 0.0
    %4103 = vmatpush1.msra.mxu0 0.0
    %4104 = vmatprep.subr.mxu0 0.0
    %4105 = vmatpush1.msra.mxu0 0.0
    %4106 = vmatprep.subr.mxu0 0.0
    %4107 = vmatpush1.msra.mxu0 0.0
    %4108 = vmatprep.subr.mxu0 0.0
    %4109 = vmatpush1.msra.mxu0 0.0
    %4110 = vmatprep.subr.mxu0 0.0
    %4111 = vmatpush1.msra.mxu0 0.0
    %4112 = vmatprep.subr.mxu0 0.0
    %4113 = vmatpush1.msra.mxu0 0.0
    %4114 = vmatprep.subr.mxu0 0.0
    %4115 = vmatpush1.msra.mxu0 0.0
    %4116 = vmatprep.subr.mxu0 0.0
    %4117 = vmatpush1.msra.mxu0 0.0
    %4118 = vmatprep.subr.mxu0 0.0
    %4119 = vmatpush1.msra.mxu0 0.0
    %4120 = vmatprep.subr.mxu0 0.0
    %4121 = vmatpush1.msra.mxu0 0.0
    %4122 = vmatprep.subr.mxu0 0.0
    %4123 = vmatpush1.msra.mxu0 0.0
    %4124 = vmatprep.subr.mxu0 0.0
    %4125 = vmatpush1.msra.mxu0 0.0
    %4126 = vmatprep.subr.mxu0 0.0
    %4127 = vmatpush1.msra.mxu0 0.0
    %4128 = vmatprep.subr.mxu0 0.0
    %4129 = vmatpush1.msra.mxu0 0.0
    %4130 = vmatprep.subr.mxu0 0.0
    %4131 = vmatpush1.msra.mxu0 0.0
    %4132 = vmatprep.subr.mxu0 0.0
    %4133 = vmatpush1.msra.mxu0 0.0
    %4134 = vmatprep.subr.mxu0 0.0
    %4135 = vmatpush1.msra.mxu0 0.0
    %4136 = vmatprep.subr.mxu0 0.0
    %4137 = vmatpush1.msra.mxu0 0.0
    %4138 = vmatprep.subr.mxu0 0.0
    %4139 = vmatpush1.msra.mxu0 0.0
    %4140 = vmatprep.subr.mxu0 0.0
    %4141 = vmatpush1.msra.mxu0 0.0
    %4142 = vmatprep.subr.mxu0 0.0
    %4143 = vmatpush1.msra.mxu0 0.0
    %4144 = vmatprep.subr.mxu0 0.0
    %4145 = vmatpush1.msra.mxu0 0.0
    %4146 = vmatprep.subr.mxu0 0.0
    %4147 = vmatpush1.msra.mxu0 0.0
    %4148 = vmatprep.subr.mxu0 0.0
    %4149 = vmatpush1.msra.mxu0 0.0
    %4150 = vmatprep.subr.mxu0 0.0
    %4151 = vmatpush1.msra.mxu0 0.0
    %4152 = vmatprep.subr.mxu0 0.0
    %4153 = vmatpush1.msra.mxu0 0.0
    %4154 = vmatprep.subr.mxu0 0.0
    %4155 = vmatpush1.msra.mxu0 0.0
    %4156 = vmatprep.mubr.f32.mxu0 0.0
    %4157 = vmatmul.mubr.f32.gmra.mrb[0].mxu0 %v3339
    %v4158 = vpop.f32.mrb[0].mxu0
    %v4159 = vadd.f32 0.0, %v4158
    %v4160 = vpop.f32.mrb[0].mxu0
    %4161 = vmatprep.mubr.f32.mxu0 0.0
    %4162 = vmatmul.mubr.f32.gmra.mrb[0].mxu0 %v3342
    %v4163 = vpop.f32.mrb[0].mxu0
    %v4164 = vadd.f32 0.0, %v4163
    %v4165 = vpop.f32.mrb[0].mxu0
    %4166 = vdwg.mxu0
    %4169 = vrot.lane.b32.xlu0 %v4090, 96
    %v4170 = vpop.permute.xlu0 %4169
    %4171 = vrot.lane.b32.xlu0 %v4091, 96
    %v4172 = vpop.permute.xlu0 %4171
    %v4173 = vsel %vm97, %v4170, 0
    %v4175 = vsel %vm97, %v4172, 0
    %4177 = vmatprep.subr.mxu0 0.0
    %4178 = vmatpush1.msra.mxu0 %v72
    %4179 = vmatprep.subr.mxu0 0.0
    %4180 = vmatpush1.msra.mxu0 %v73
    %4181 = vmatprep.subr.mxu0 0.0
    %4182 = vmatpush1.msra.mxu0 %v74
    %4183 = vmatprep.subr.mxu0 0.0
    %4184 = vmatpush1.msra.mxu0 %v75
    %4185 = vmatprep.subr.mxu0 0.0
    %4186 = vmatpush1.msra.mxu0 0.0
    %4187 = vmatprep.subr.mxu0 0.0
    %4188 = vmatpush1.msra.mxu0 0.0
    %4189 = vmatprep.subr.mxu0 0.0
    %4190 = vmatpush1.msra.mxu0 0.0
    %4191 = vmatprep.subr.mxu0 0.0
    %4192 = vmatpush1.msra.mxu0 0.0
    %4193 = vmatprep.subr.mxu0 0.0
    %4194 = vmatpush1.msra.mxu0 0.0
    %4195 = vmatprep.subr.mxu0 0.0
    %4196 = vmatpush1.msra.mxu0 0.0
    %4197 = vmatprep.subr.mxu0 0.0
    %4198 = vmatpush1.msra.mxu0 0.0
    %4199 = vmatprep.subr.mxu0 0.0
    %4200 = vmatpush1.msra.mxu0 0.0
    %4201 = vmatprep.subr.mxu0 0.0
    %4202 = vmatpush1.msra.mxu0 0.0
    %4203 = vmatprep.subr.mxu0 0.0
    %4204 = vmatpush1.msra.mxu0 0.0
    %4205 = vmatprep.subr.mxu0 0.0
    %4206 = vmatpush1.msra.mxu0 0.0
    %4207 = vmatprep.subr.mxu0 0.0
    %4208 = vmatpush1.msra.mxu0 0.0
    %4209 = vmatprep.subr.mxu0 0.0
    %4210 = vmatpush1.msra.mxu0 0.0
    %4211 = vmatprep.subr.mxu0 0.0
    %4212 = vmatpush1.msra.mxu0 0.0
    %4213 = vmatprep.subr.mxu0 0.0
    %4214 = vmatpush1.msra.mxu0 0.0
    %4215 = vmatprep.subr.mxu0 0.0
    %4216 = vmatpush1.msra.mxu0 0.0
    %4217 = vmatprep.subr.mxu0 0.0
    %4218 = vmatpush1.msra.mxu0 0.0
    %4219 = vmatprep.subr.mxu0 0.0
    %4220 = vmatpush1.msra.mxu0 0.0
    %4221 = vmatprep.subr.mxu0 0.0
    %4222 = vmatpush1.msra.mxu0 0.0
    %4223 = vmatprep.subr.mxu0 0.0
    %4224 = vmatpush1.msra.mxu0 0.0
    %4225 = vmatprep.subr.mxu0 0.0
    %4226 = vmatpush1.msra.mxu0 0.0
    %4227 = vmatprep.subr.mxu0 0.0
    %4228 = vmatpush1.msra.mxu0 0.0
    %4229 = vmatprep.subr.mxu0 0.0
    %4230 = vmatpush1.msra.mxu0 0.0
    %4231 = vmatprep.subr.mxu0 0.0
    %4232 = vmatpush1.msra.mxu0 0.0
    %4233 = vmatprep.subr.mxu0 0.0
    %4234 = vmatpush1.msra.mxu0 0.0
    %4235 = vmatprep.subr.mxu0 0.0
    %4236 = vmatpush1.msra.mxu0 0.0
    %4237 = vmatprep.subr.mxu0 0.0
    %4238 = vmatpush1.msra.mxu0 0.0
    %4239 = vmatprep.subr.mxu0 0.0
    %4240 = vmatpush1.msra.mxu0 0.0
    %4241 = vmatprep.mubr.f32.mxu0 0.0
    %4242 = vmatmul.mubr.f32.gmra.mrb[0].mxu0 %v4173
    %v4243 = vpop.f32.mrb[0].mxu0
    %v4244 = vadd.f32 %v4159, %v4243
    %v4245 = vpop.f32.mrb[0].mxu0
    %4246 = vmatprep.mubr.f32.mxu0 0.0
    %4247 = vmatmul.mubr.f32.gmra.mrb[0].mxu0 %v4175
    %v4248 = vpop.f32.mrb[0].mxu0
    %v4249 = vadd.f32 %v4164, %v4248
    %v4250 = vpop.f32.mrb[0].mxu0
    %4251 = vdwg.mxu0
    %v4252 = vadd.f32 %v4244, %v93
    %v4253 = vadd.f32 %v4249, %v93
    %v4254 = vsel %vm1049, %v4252, -inf
    %v4255 = vsel %vm1049, %v4253, -inf
    %v4256 = vmax.f32 %v4254, %v4255
    %v4257 = vrot.slane %v4256, 4
    %v4258 = vmax.f32 %v4256, %v4257
    %v4259 = vrot.slane %v4258, 2
    %v4260 = vmax.f32 %v4258, %v4259
    %v4261 = vrot.slane %v4260, 1
    %v4262 = vmax.f32 %v4260, %v4261
    %v4263 = vsub.f32 %v4252, %v4262
    %v4264 = vsub.f32 %v4253, %v4262
    %v4265 = vmul.f32 %v4263, 1.442695
    %v4266 = vpow.pop %v4265
    %v4267 = vmul.f32 %v4264, 1.442695
    %v4268 = vpow.pop %v4267
    %4271 = vrot.lane.b32.xlu0 %v4266, 96
    %v4272 = vpop.permute.xlu0 %4271
    %4273 = vrot.lane.b32.xlu0 %v4268, 96
    %v4274 = vpop.permute.xlu0 %4273
    %4277 = vxpose.xlu0.b32.start [1/16] %v4272, 128
    %4278 = vxpose.xlu0.b32.cont [2/16] %v4274, 128
    %4279 = vxpose.xlu0.b32.cont [3/16] 0.0, 128
    %4280 = vxpose.xlu0.b32.cont [4/16] 0.0, 128
    %4281 = vxpose.xlu0.b32.cont [5/16] 0.0, 128
    %4282 = vxpose.xlu0.b32.cont [6/16] 0.0, 128
    %4283 = vxpose.xlu0.b32.cont [7/16] 0.0, 128
    %4284 = vxpose.xlu0.b32.cont [8/16] 0.0, 128
    %4285 = vxpose.xlu0.b32.cont [9/16] 0.0, 128
    %4286 = vxpose.xlu0.b32.cont [10/16] 0.0, 128
    %4287 = vxpose.xlu0.b32.cont [11/16] 0.0, 128
    %4288 = vxpose.xlu0.b32.cont [12/16] 0.0, 128
    %4289 = vxpose.xlu0.b32.cont [13/16] 0.0, 128
    %4290 = vxpose.xlu0.b32.cont [14/16] 0.0, 128
    %4291 = vxpose.xlu0.b32.cont [15/16] 0.0, 128
    %4292 = vxpose.xlu0.b32.end [16/16] 0.0, 128
    %v4293 = vpop.trf.xlu0
    %v4294 = vpop.trf.xlu0
    %v4295 = vpop.trf.xlu0
    %v4296 = vpop.trf.xlu0
    %v4297 = vpop.trf.xlu0
    %v4298 = vpop.trf.xlu0
    %v4299 = vpop.trf.xlu0
    %v4300 = vpop.trf.xlu0
    %v4301 = vpop.trf.xlu0
    %v4302 = vpop.trf.xlu0
    %v4303 = vpop.trf.xlu0
    %v4304 = vpop.trf.xlu0
    %v4305 = vpop.trf.xlu0
    %v4306 = vpop.trf.xlu0
    %v4307 = vpop.trf.xlu0
    %v4308 = vpop.trf.xlu0
    %v4310 = vsel %vm189, %v4293, 0
    %4312 = vmatprep.subr.mxu0 0.0
    %4313 = vmatpush1.msra.mxu0 %v4252
    %4314 = vmatprep.subr.mxu0 0.0
    %4315 = vmatpush1.msra.mxu0 %v4253
    %4316 = vmatprep.subr.mxu0 0.0
    %4317 = vmatpush1.msra.mxu0 0.0
    %4318 = vmatprep.subr.mxu0 0.0
    %4319 = vmatpush1.msra.mxu0 0.0
    %4320 = vmatprep.subr.mxu0 0.0
    %4321 = vmatpush1.msra.mxu0 0.0
    %4322 = vmatprep.subr.mxu0 0.0
    %4323 = vmatpush1.msra.mxu0 0.0
    %4324 = vmatprep.subr.mxu0 0.0
    %4325 = vmatpush1.msra.mxu0 0.0
    %4326 = vmatprep.subr.mxu0 0.0
    %4327 = vmatpush1.msra.mxu0 0.0
    %4328 = vmatprep.subr.mxu0 0.0
    %4329 = vmatpush1.msra.mxu0 0.0
    %4330 = vmatprep.subr.mxu0 0.0
    %4331 = vmatpush1.msra.mxu0 0.0
    %4332 = vmatprep.subr.mxu0 0.0
    %4333 = vmatpush1.msra.mxu0 0.0
    %4334 = vmatprep.subr.mxu0 0.0
    %4335 = vmatpush1.msra.mxu0 0.0
    %4336 = vmatprep.subr.mxu0 0.0
    %4337 = vmatpush1.msra.mxu0 0.0
    %4338 = vmatprep.subr.mxu0 0.0
    %4339 = vmatpush1.msra.mxu0 0.0
    %4340 = vmatprep.subr.mxu0 0.0
    %4341 = vmatpush1.msra.mxu0 0.0
    %4342 = vmatprep.subr.mxu0 0.0
    %4343 = vmatpush1.msra.mxu0 0.0
    %4344 = vmatprep.subr.mxu0 0.0
    %4345 = vmatpush1.msra.mxu0 0.0
    %4346 = vmatprep.subr.mxu0 0.0
    %4347 = vmatpush1.msra.mxu0 0.0
    %4348 = vmatprep.subr.mxu0 0.0
    %4349 = vmatpush1.msra.mxu0 0.0
    %4350 = vmatprep.subr.mxu0 0.0
    %4351 = vmatpush1.msra.mxu0 0.0
    %4352 = vmatprep.subr.mxu0 0.0
    %4353 = vmatpush1.msra.mxu0 0.0
    %4354 = vmatprep.subr.mxu0 0.0
    %4355 = vmatpush1.msra.mxu0 0.0
    %4356 = vmatprep.subr.mxu0 0.0
    %4357 = vmatpush1.msra.mxu0 0.0
    %4358 = vmatprep.subr.mxu0 0.0
    %4359 = vmatpush1.msra.mxu0 0.0
    %4360 = vmatprep.subr.mxu0 0.0
    %4361 = vmatpush1.msra.mxu0 0.0
    %4362 = vmatprep.subr.mxu0 0.0
    %4363 = vmatpush1.msra.mxu0 0.0
    %4364 = vmatprep.subr.mxu0 0.0
    %4365 = vmatpush1.msra.mxu0 0.0
    %4366 = vmatprep.subr.mxu0 0.0
    %4367 = vmatpush1.msra.mxu0 0.0
    %4368 = vmatprep.subr.mxu0 0.0
    %4369 = vmatpush1.msra.mxu0 0.0
    %4370 = vmatprep.subr.mxu0 0.0
    %4371 = vmatpush1.msra.mxu0 0.0
    %4372 = vmatprep.subr.mxu0 0.0
    %4373 = vmatpush1.msra.mxu0 0.0
    %4374 = vmatprep.subr.mxu0 0.0
    %4375 = vmatpush1.msra.mxu0 0.0
    %4376 = vmatprep.mubr.f32.mxu0 0.0
    %4377 = vmatmul.mubr.f32.gmra.mrb[0].mxu0 %v4310
    %v4378 = vpop.f32.mrb[0].mxu0
    %v4379 = vadd.f32 0.0, %v4378
    %v4380 = vpop.f32.mrb[0].mxu0
    %4381 = vdwg.mxu0
    %4383 = vset.pattern.permute.xlu0 41
    %4384 = vperm.xlu0 %4383, %v4379
    %v4385 = vpop.permute.xlu0 %4384
    %v4387 = vrcp.pop %v4385
    %v4388 = vmul.f32 %v4379, %v4387
    %v4389 = vadd.f32 %v4388, %v1187
    %v4391 = vrot.slane %v2263, 7
    %v4394 = vrot.slane %v3337, 6
    %v4397 = vrot.slane %v4389, 5
    %vm4399 = vcmask 1040384
    %v4400 = vsel %vm4399, %v1189, %v4391
    %vm4401 = vcmask 1041408
    %v4402 = vsel %vm4401, %v4400, %v4394
    %vm4403 = vcmask 1042432
    %v4404 = vsel %vm4403, %v4402, %v4397
    %4406 = vrot.lane.b32.xlu0 %v4404, 95
    %v4407 = vpop.permute.xlu0 %4406
    %vm4409 = vcmask 60416
    %4410 = vst.msk [vmem:[#allocation8] sm:$0xf] %vm4409, %v4407
    // Predicated region
    $region26: #{tpu_custom_call.1} parent=1 // pred_check
      _
    $region27: #{tpu_custom_call.1} parent=1 // pred_check_branch
      %4412 = sbr.rel (0) target = $region29
    $region28: #{tpu_custom_call.1} parent=1 // pred_region
      %s4414 = ssub.s32 64, 64
      %4415 = vsyncadd [#allocation4], %s4414
      %s4417 = sshll.u32 [#allocation8], 4
      %s4418 = int_to_ptr.vmem [resolvable:$true] %s4417
      %4420 = dma.vmem_to_hbm [thread:$0]  %s4418, 64, %s3, [#allocation4]
    $region29: #{tpu_custom_call.1} parent=1 // pred_fallthru
      _
    // Predicated region
    $region30: #{tpu_custom_call.1} parent=1 // pred_check
      _
    $region31: #{tpu_custom_call.1} parent=1 // pred_check_branch
      %4422 = sbr.rel (0) target = $region33
    $region32: #{tpu_custom_call.1} parent=1 // pred_region
      %4423 = dma.done [#allocation4], 64
    $region33: #{tpu_custom_call.1} parent=1 // pred_fallthru
      _
    %4424 = vsyncpa [#allocation3], 1
    %4425 = vsyncpa [#allocation6], 1
    %4426 = vsyncpa [#allocation4], 1

</llo_original>
